<compile_context>
chip_gen: v7x
topology: tpu7x:2x2x1
jax: 0.10.0
libtpu: 0.0.40
codegen_flags: <defaults>
</compile_context>

<pallas_src>
import functools

import numpy as np

import jax
import jax.numpy as jnp
from jax.experimental import pallas as pl
from jax.experimental.pallas import tpu as pltpu


_VMEM_LIMIT = 64 * 1024 * 1024          # explicit scoped-VMEM cap (safe on v5e/v6e/v7x)
# Set to jnp.bfloat16 on v5e/v6e/v7x for ~2x MXU throughput on the hw-sized
# matmuls (accumulation stays f32).  f32 keeps bit-level parity with the
# PyTorch reference.
_MXU_DTYPE = jnp.float32


def _pick_row_tile(h):
    for th in (64, 32, 16, 8):
        if h % th == 0 and h // th >= 2:
            return th
    return h


def _pick_hw_tile(hw):
    for t in (2048, 1024, 512, 256, 128):
        if hw % t == 0 and hw // t >= 2:
            return t
    return hw


# --------------- Stage 1: fused 1x1 qkv conv + 3x3 depthwise conv -----------
def _qkv_dw_kernel(xc_ref, xp_ref, xn_ref, w1_ref, b1_ref, wdw_ref, bdw_ref,
                   qk_ref, v_ref, ypad_ref, *, TH, W, C, C3):
    f32 = jnp.float32
    t = pl.program_id(1)
    n_t = pl.num_programs(1)

    w1 = w1_ref[...].astype(f32)                              # (C, 3C)
    b1 = b1_ref[...].astype(f32)                              # (1, 3C)

    # 1x1 conv on the centre rows and on the two 1-row halos.
    xc = xc_ref[0].astype(f32).reshape(TH * W, C)
    yc = jnp.dot(xc, w1, preferred_element_type=f32) + b1     # (TH*W, 3C)
    prev_ok = jnp.where(t > 0, 1.0, 0.0).astype(f32)          # image-border zero pad
    next_ok = jnp.where(t < n_t - 1, 1.0, 0.0).astype(f32)
    yp = (jnp.dot(xp_ref[0, 0].astype(f32), w1,
                  preferred_element_type=f32) + b1) * prev_ok  # (W, 3C)
    yn = (jnp.dot(xn_ref[0, 0].astype(f32), w1,
                  preferred_element_type=f32) + b1) * next_ok  # (W, 3C)

    # Assemble the haloed tile in VMEM: zero ONLY the 1-px left/right border,
    # single interior store (no full zero-fill + full copy).
    ypad_ref[:, 0:1, :] = jnp.zeros((TH + 2, 1, C3), f32)
    ypad_ref[:, W + 1:W + 2, :] = jnp.zeros((TH + 2, 1, C3), f32)
    ypad_ref[0:1, 1:W + 1, :] = yp[None]
    ypad_ref[TH + 1:TH + 2, 1:W + 1, :] = yn[None]
    ypad_ref[1:TH + 1, 1:W + 1, :] = yc.reshape(TH, W, C3)

    # 9-tap depthwise 3x3.  Row (dy) offsets slice the outer dim (aligned);
    # weights are read once.
    # TODO(synk): the dx (sublane) offsets could use pltpu.roll + edge masks to
    # avoid sublane-misaligned loads on vld-bound chips (v5e).
    wdw = wdw_ref[...].astype(f32)                            # (3, 3, 3C)
    acc = jnp.zeros((TH, W, C3), f32)
    for dy in range(3):
        for dx in range(3):
            acc = acc + (ypad_ref[dy:dy + TH, dx:dx + W, :]
                         * wdw[dy:dy + 1, dx:dx + 1, :])
    acc = acc + bdw_ref[...].astype(f32)

    # Split channels so downstream stages never re-read unused planes.
    qk_ref[0] = acc[:, :, :2 * C].astype(qk_ref.dtype)
    v_ref[0] = acc[:, :, 2 * C:].astype(v_ref.dtype)


def qkv_dwconv_fused(x_nhwc, w1, b1, wdw, bdw):
    B, H, W, C = x_nhwc.shape
    C3 = w1.shape[1]
    TH = _pick_row_tile(H)
    nH = H // TH
    kern = functools.partial(_qkv_dw_kernel, TH=TH, W=W, C=C, C3=C3)
    return pl.pallas_call(
        kern,
        out_shape=(jax.ShapeDtypeStruct((B, H, W, 2 * C), x_nhwc.dtype),
                   jax.ShapeDtypeStruct((B, H, W, C), x_nhwc.dtype)),
        grid=(B, nH),
        in_specs=[
            pl.BlockSpec((1, TH, W, C), lambda b, t: (b, t, 0, 0)),
            # 1-row halos; block size 1 on H so the block index IS the row index.
            pl.BlockSpec((1, 1, W, C),
                         lambda b, t: (b, jnp.maximum(t * TH - 1, 0), 0, 0)),
            pl.BlockSpec((1, 1, W, C),
                         lambda b, t: (b, jnp.minimum((t + 1) * TH, H - 1), 0, 0)),
            pl.BlockSpec((C, C3), lambda b, t: (0, 0)),
            pl.BlockSpec((1, C3), lambda b, t: (0, 0)),
            pl.BlockSpec((3, 3, C3), lambda b, t: (0, 0, 0)),
            pl.BlockSpec((1, C3), lambda b, t: (0, 0)),
        ],
        out_specs=[pl.BlockSpec((1, TH, W, 2 * C), lambda b, t: (b, t, 0, 0)),
                   pl.BlockSpec((1, TH, W, C), lambda b, t: (b, t, 0, 0))],
        scratch_shapes=[pltpu.VMEM((TH + 2, W + 2, C3), jnp.float32)],
        compiler_params=pltpu.CompilerParams(
            dimension_semantics=("parallel", "parallel"),
            vmem_limit_bytes=_VMEM_LIMIT),
    )(x_nhwc, x_nhwc, x_nhwc, w1, b1.reshape(1, C3), wdw, bdw.reshape(1, C3))


# ---------- tiny constant masks for the per-head gather / scatter -----------
def _make_constants(dim, num_heads):
    C, NH = dim, num_heads
    cph = C // NH
    n = cph * cph
    r = np.arange(C)
    m = np.arange(n)
    c = np.arange(C)
    h_r, i_r = r // cph, r % cph
    i_m, j_m = m // cph, m % cph
    h_c, j_c = c // cph, c % cph
    arrs = dict(
        MBLK=(h_r[:, None] == h_c[None, :]).astype(np.float32),          # (C, C)
        MJ=(j_c[:, None] == j_m[None, :]).astype(np.float32),            # (C, n)
        RS=(np.arange(NH)[:, None] == h_r[None, :]).astype(np.float32),  # (NH, C)
        MI=(i_r[:, None] == i_m[None, :]).astype(np.float32),            # (C, n)
    )
    return {k: jnp.asarray(v) for k, v in arrs.items()}


# ----- Stage 2: hw-tiled Gram accumulation + normalize + EMAU + fold proj ---
def _gram_emau_kernel(qk_ref, temp_ref, mblk_ref, mj_ref, rs_ref, mi_ref,
                      wem1_ref, bem1_ref, wem2_ref, bem2_ref, mu0_ref,
                      wproj_ref, m_ref, gram_ref, ssq_ref, *, C, stages):
    f32 = jnp.float32
    t = pl.program_id(1)

    @pl.when(t == 0)
    def _():
        gram_ref[...] = jnp.zeros_like(gram_ref)
        ssq_ref[...] = jnp.zeros_like(ssq_ref)

    qk = qk_ref[0].astype(f32)                       # (T, 2C)
    q = qk[:, :C].astype(_MXU_DTYPE)                 # static lane slices — no
    k = qk[:, C:].astype(_MXU_DTYPE)                 # selection matmuls
    gram_ref[...] += jax.lax.dot_general(q, k, (((0,), (0,)), ((), ())),
                                         preferred_element_type=f32)   # (C, C)
    ssq_ref[...] += jnp.sum(qk * qk, axis=0, keepdims=True)            # (1, 2C)

    @pl.when(t == pl.num_programs(1) - 1)
    def _():
        # ---- F.normalize(q/k, dim=-1) folded in as per-channel scales ------
        inv = jax.lax.rsqrt(jnp.maximum(ssq_ref[...], 1e-24))   # (1, 2C), eps matches torch
        inv_q = inv[:, :C]
        inv_k = inv[:, C:]
        gram = gram_ref[...]                                     # (C, C), raw q@k^T
        mblk = mblk_ref[...]
        mj = mj_ref[...]
        rs = rs_ref[...]
        mi = mi_ref[...]

        # gather per-head diagonal blocks into EMAU layout (NH, n); everything
        # here is hw-independent and runs once per batch element.
        d = jnp.dot(gram * mblk, mj, preferred_element_type=f32)          # (C, n)
        x_raw = jnp.dot(rs, d * mi, preferred_element_type=f32)           # (NH, n)
        q_scale = jnp.dot(rs * inv_q, mi, preferred_element_type=f32)     # (NH, n)
        k_scale = jnp.dot(rs * inv_k, mj, preferred_element_type=f32)     # (NH, n)
        x_idn = x_raw * q_scale * k_scale * temp_ref[...]                 # (NH, n)

        # ---- EMAU: conv1 -> EM iterations -> reconstruction -> conv2+BN ----
        x = jax.lax.dot_general(wem1_ref[...], x_idn, (((0,), (0,)), ((), ())),
                                preferred_element_type=f32) + bem1_ref[...]
        mu = mu0_ref[...].astype(f32)                                      # (NH, K)
        z = None
        for _ in range(stages):
            s = jax.lax.dot_general(x, mu, (((0,), (0,)), ((), ())),
                                    preferred_element_type=f32)            # (n, K)
            s = s - jnp.max(s, axis=-1, keepdims=True)
            e = jnp.exp(s)
            z = e / jnp.sum(e, axis=-1, keepdims=True)                     # softmax over K
            z_n = z / (1e-6 + jnp.sum(z, axis=0, keepdims=True))
            mu = jnp.dot(x, z_n, preferred_element_type=f32)               # (NH, K)
            mu = mu / (1e-6 + jnp.sqrt(jnp.sum(mu * mu, axis=0, keepdims=True)))
        x_rec = jax.lax.dot_general(mu, z, (((1,), (1,)), ((), ())),
                                    preferred_element_type=f32)            # (NH, n)
        x_rec = jnp.maximum(x_rec, 0.0)
        y2 = jax.lax.dot_general(wem2_ref[...], x_rec, (((0,), (0,)), ((), ())),
                                 preferred_element_type=f32) + bem2_ref[...] + x_idn
        attn_f = jnp.maximum(y2, 0.0)                                      # (NH, n)

        # ---- scatter back to block-diagonal (C, C) and fold project_out ----
        rep = jax.lax.dot_general(rs, attn_f, (((0,), (0,)), ((), ())),
                                  preferred_element_type=f32)              # (C, n)
        a_bd = jax.lax.dot_general(rep * mi, mj, (((1,), (1,)), ((), ())),
                                   preferred_element_type=f32) * mblk      # (C, C)
        m_full = jax.lax.dot_general(wproj_ref[...], a_bd, (((0,), (0,)), ((), ())),
                                     preferred_element_type=f32)           # (C, C)
        m_ref[0] = m_full.astype(m_ref.dtype)


def gram_emau_project(qk, params, consts, dim, stages):
    B, hw, C2 = qk.shape
    C = dim
    NH = params['temperature'].shape[0]
    n = (C // NH) ** 2
    K = params['mu0'].shape[-1]
    T = _pick_hw_tile(hw)
    kern = functools.partial(_gram_emau_kernel, C=C, stages=stages)

    def full(shape):
        nd = len(shape)
        return pl.BlockSpec(shape, lambda b, t, _nd=nd: (0,) * _nd)

    return pl.pallas_call(
        kern,
        out_shape=jax.ShapeDtypeStruct((B, C, C), jnp.float32),
        grid=(B, hw // T),
        in_specs=[pl.BlockSpec((1, T, C2), lambda b, t: (b, t, 0)),
                  full((NH, 1)),                              # temperature
                  full((C, C)), full((C, n)),                 # MBLK, MJ
                  full((NH, C)), full((C, n)),                # RS, MI
                  full((NH, NH)), full((NH, 1)),              # w_em1, b_em1
                  full((NH, NH)), full((NH, 1)),              # w_em2, b_em2
                  full((NH, K)),                              # mu0
                  full((C, C))],                              # w_proj
        out_specs=pl.BlockSpec((1, C, C), lambda b, t: (b, 0, 0)),
        scratch_shapes=[pltpu.VMEM((C, C), jnp.float32),      # Gram accumulator
                        pltpu.VMEM((1, 2 * C), jnp.float32)], # sum-of-squares
        compiler_params=pltpu.CompilerParams(
            dimension_semantics=("parallel", "arbitrary"),
            vmem_limit_bytes=_VMEM_LIMIT),
    )(qk,
      params['temperature'].reshape(NH, 1),
      consts['MBLK'], consts['MJ'], consts['RS'], consts['MI'],
      params['w_em1'], params['b_em1'].reshape(NH, 1),
      params['w_em2'], params['b_em2'].reshape(NH, 1),
      params['mu0'], params['w_proj'])


# ----------- Stage 3: hw-tiled  out = (W_proj @ A_bd) @ v + b_proj ----------
def _apply_attn_kernel(m_ref, v_ref, bp_ref, o_ref):
    f32 = jnp.float32
    m = m_ref[0].astype(_MXU_DTYPE)                 # (C, C)
    v = v_ref[0].astype(_MXU_DTYPE)                 # (T, C)
    y = jax.lax.dot_general(m, v, (((1,), (1,)), ((), ())),
                            preferred_element_type=f32)        # (C, T) lane-dense
    o_ref[0] = (y + bp_ref[...].astype(f32)).astype(o_ref.dtype)


def apply_attn_project(m, v, b_proj):
    B, hw, C = v.shape
    T = _pick_hw_tile(hw)
    return pl.pallas_call(
        _apply_attn_kernel,
        out_shape=jax.ShapeDtypeStruct((B, C, hw), v.dtype),
        grid=(B, hw // T),
        in_specs=[pl.BlockSpec((1, C, C), lambda b, t: (b, 0, 0)),
                  pl.BlockSpec((1, T, C), lambda b, t: (b, t, 0)),
                  pl.BlockSpec((C, 1), lambda b, t: (0, 0))],
        out_specs=pl.BlockSpec((1, C, T), lambda b, t: (b, 0, t)),
        compiler_params=pltpu.CompilerParams(
            dimension_semantics=("parallel", "parallel"),
            vmem_limit_bytes=_VMEM_LIMIT),
    )(m, v, b_proj.reshape(C, 1))


# ------------------------------ full forward pass ---------------------------
def attention_forward(x_nchw, params, num_heads, em_stages=3):
    assert em_stages >= 1, "EMAU needs at least one EM iteration"
    B, C, H, W = x_nchw.shape
    hw = H * W
    consts = _make_constants(C, num_heads)

    # NCHW -> NHWC once (XLA); everything downstream stays inside Pallas.
    x_nhwc = jnp.transpose(x_nchw, (0, 2, 3, 1))
    qk, v = qkv_dwconv_fused(x_nhwc, params['w_qkv'], params['b_qkv'],
                             params['w_dw'], params['b_dw'])
    qk = qk.reshape(B, hw, 2 * C)                     # free reshapes
    v = v.reshape(B, hw, C)

    m = gram_emau_project(qk, params, consts, C, em_stages)   # (B, C, C)
    out = apply_attn_project(m, v, params['b_proj'])          # (B, C, hw) lane-dense
    return out.reshape(B, C, H, W)                            # free reshape to NCHW


# ------------------------------ parameter init ------------------------------
def init_params(key, dim, num_heads, bias=True, k_bases=64):
    keys = jax.random.split(key, 9)

    def nrm(kk, shape, scale):
        return scale * jax.random.normal(kk, shape, jnp.float32)

    p = {}
    # 1x1 conv weights stored as (Cin, Cout) (= PyTorch weight[:, :, 0, 0].T)
    p['w_qkv'] = nrm(keys[0], (dim, dim * 3), 0.1)
    p['b_qkv'] = nrm(keys[1], (dim * 3,), 0.02) if bias else jnp.zeros((dim * 3,), jnp.float32)
    # depthwise 3x3 weight stored as (ky, kx, C)
    p['w_dw'] = nrm(keys[2], (3, 3, dim * 3), 0.1)
    p['b_dw'] = nrm(keys[3], (dim * 3,), 0.02) if bias else jnp.zeros((dim * 3,), jnp.float32)
    p['temperature'] = jnp.ones((num_heads, 1, 1), jnp.float32)        # torch.ones init
    p['w_proj'] = nrm(keys[4], (dim, dim), 0.1)
    p['b_proj'] = nrm(keys[5], (dim,), 0.02) if bias else jnp.zeros((dim,), jnp.float32)

    # EMAU(c=num_heads, k=64)
    p['w_em1'] = nrm(keys[6], (num_heads, num_heads), (2.0 / num_heads) ** 0.5)
    p['b_em1'] = jnp.zeros((num_heads,), jnp.float32)
    w_em2 = nrm(keys[7], (num_heads, num_heads), (2.0 / num_heads) ** 0.5)
    # eval-mode BatchNorm2d (gamma=1, beta=0, mean=0, var=1, eps=1e-5) folded in
    gamma = jnp.ones((num_heads,), jnp.float32)
    beta = jnp.zeros((num_heads,), jnp.float32)
    r_mean = jnp.zeros((num_heads,), jnp.float32)
    r_var = jnp.ones((num_heads,), jnp.float32)
    scale = gamma / jnp.sqrt(r_var + 1e-5)
    p['w_em2'] = w_em2 * scale[None, :]
    p['b_em2'] = beta - r_mean * scale
    mu0 = nrm(keys[8], (num_heads, k_bases), (2.0 / k_bases) ** 0.5)
    p['mu0'] = mu0 / (1e-6 + jnp.linalg.norm(mu0, axis=0, keepdims=True))
    return p


if __name__ == "__main__":
    dim, num_heads, bias = 16, 4, True
    B, H, W = 2, 16, 16

    key = jax.random.PRNGKey(0)
    kx, kp = jax.random.split(key)
    x = jax.random.normal(kx, (B, dim, H, W), jnp.float32)   # NCHW, like the reference
    params = init_params(kp, dim, num_heads, bias)

    fwd = jax.jit(functools.partial(attention_forward, num_heads=num_heads))
    out = fwd(x, params)
    out = jax.block_until_ready(out)
    assert out.shape == (B, dim, H, W)
    assert bool(jnp.all(jnp.isfinite(out)))
    print("KERNEL_OK")
</pallas_src>

<mosaic_0001>
module attributes {stable_mosaic.version = 11 : i64} {
  func.func @_gram_emau_kernel(%arg0: i32, %arg1: i32, %arg2: memref<1x128x32xf32, #tpu.memory_space<vmem>>, %arg3: memref<4x1xf32, #tpu.memory_space<vmem>>, %arg4: memref<16x16xf32, #tpu.memory_space<vmem>>, %arg5: memref<16x16xf32, #tpu.memory_space<vmem>>, %arg6: memref<4x16xf32, #tpu.memory_space<vmem>>, %arg7: memref<16x16xf32, #tpu.memory_space<vmem>>, %arg8: memref<4x4xf32, #tpu.memory_space<vmem>>, %arg9: memref<4x1xf32, #tpu.memory_space<vmem>>, %arg10: memref<4x4xf32, #tpu.memory_space<vmem>>, %arg11: memref<4x1xf32, #tpu.memory_space<vmem>>, %arg12: memref<4x64xf32, #tpu.memory_space<vmem>>, %arg13: memref<16x16xf32, #tpu.memory_space<vmem>>, %arg14: memref<1x16x16xf32, #tpu.memory_space<vmem>>, %arg15: memref<16x16xf32, #tpu.memory_space<vmem>>, %arg16: memref<1x32xf32, #tpu.memory_space<vmem>>) attributes {dimension_semantics = [#tpu.dimension_semantics<parallel>, #tpu.dimension_semantics<arbitrary>], iteration_bounds = array<i64: 2, 2>, scalar_prefetch = 0 : i64, scratch_operands = 2 : i64, tpu.core_type = #tpu.core_type<tc>, window_params = [{transform_indices = @transform_0, window_bounds = array<i64: 1, 128, 32>}, {pipeline_mode = #tpu.pipeline_mode<synchronous>, transform_indices = @transform_1, window_bounds = array<i64: 4, 1>}, {pipeline_mode = #tpu.pipeline_mode<synchronous>, transform_indices = @transform_2, window_bounds = array<i64: 16, 16>}, {pipeline_mode = #tpu.pipeline_mode<synchronous>, transform_indices = @transform_3, window_bounds = array<i64: 16, 16>}, {pipeline_mode = #tpu.pipeline_mode<synchronous>, transform_indices = @transform_4, window_bounds = array<i64: 4, 16>}, {pipeline_mode = #tpu.pipeline_mode<synchronous>, transform_indices = @transform_5, window_bounds = array<i64: 16, 16>}, {pipeline_mode = #tpu.pipeline_mode<synchronous>, transform_indices = @transform_6, window_bounds = array<i64: 4, 4>}, {pipeline_mode = #tpu.pipeline_mode<synchronous>, transform_indices = @transform_7, window_bounds = array<i64: 4, 1>}, {pipeline_mode = #tpu.pipeline_mode<synchronous>, transform_indices = @transform_8, window_bounds = array<i64: 4, 4>}, {pipeline_mode = #tpu.pipeline_mode<synchronous>, transform_indices = @transform_9, window_bounds = array<i64: 4, 1>}, {pipeline_mode = #tpu.pipeline_mode<synchronous>, transform_indices = @transform_10, window_bounds = array<i64: 4, 64>}, {pipeline_mode = #tpu.pipeline_mode<synchronous>, transform_indices = @transform_11, window_bounds = array<i64: 16, 16>}, {transform_indices = @transform_12, window_bounds = array<i64: 1, 16, 16>}]} {
    %c0_i32 = arith.constant 0 : i32
    %0 = arith.cmpi eq, %arg1, %c0_i32 : i32
    %1 = arith.extui %0 : i1 to i32
    %c0_i32_0 = arith.constant 0 : i32
    %2 = arith.cmpi ne, %1, %c0_i32_0 : i32
    scf.if %2 {
      %cst_13 = arith.constant 0.000000e+00 : f32
      %20 = vector.broadcast %cst_13 : f32 to vector<16x16xf32>
      %c0_14 = arith.constant 0 : index
      %c0_15 = arith.constant 0 : index
      %21 = vector.load %arg15[%c0_14, %c0_15] : memref<16x16xf32, #tpu.memory_space<vmem>>, vector<16x16xf32>
      tpu.vector_store %arg15[%c0_14, %c0_15], %20 {strides = array<i32>} : memref<16x16xf32, #tpu.memory_space<vmem>>, vector<16x16xf32>,
      %cst_16 = arith.constant 0.000000e+00 : f32
      %22 = vector.broadcast %cst_16 : f32 to vector<1x32xf32>
      %c0_17 = arith.constant 0 : index
      %c0_18 = arith.constant 0 : index
      %23 = vector.load %arg16[%c0_17, %c0_18] : memref<1x32xf32, #tpu.memory_space<vmem>>, vector<1x32xf32>
      tpu.vector_store %arg16[%c0_17, %c0_18], %22 {strides = array<i32>} : memref<1x32xf32, #tpu.memory_space<vmem>>, vector<1x32xf32>,
    } else {
    }
    %c0 = arith.constant 0 : index
    %c0_1 = arith.constant 0 : index
    %c0_2 = arith.constant 0 : index
    %3 = vector.load %arg2[%c0, %c0_1, %c0_2] : memref<1x128x32xf32, #tpu.memory_space<vmem>>, vector<1x128x32xf32>
    %4 = vector.shape_cast %3 : vector<1x128x32xf32> to vector<128x32xf32>
    %5 = vector.extract_strided_slice %4 {offsets = [0, 0], sizes = [128, 16], strides = [1, 1]} : vector<128x32xf32> to vector<128x16xf32>
    %6 = vector.extract_strided_slice %4 {offsets = [0, 16], sizes = [128, 16], strides = [1, 1]} : vector<128x32xf32> to vector<128x16xf32>
    %c0_3 = arith.constant 0 : index
    %c0_4 = arith.constant 0 : index
    %7 = vector.load %arg15[%c0_3, %c0_4] : memref<16x16xf32, #tpu.memory_space<vmem>>, vector<16x16xf32>
    %cst = arith.constant dense<0.000000e+00> : vector<16x16xf32>
    %8 = tpu.matmul %5, %6, %cst {dimension_numbers = #tpu.dot_dimension_numbers<[0], [0], [1], [1], [0, 1, 1, 1], [], []>} : vector<128x16xf32>, vector<128x16xf32>, vector<16x16xf32> -> vector<16x16xf32>
    %9 = arith.addf %7, %8 : vector<16x16xf32>
    %c0_5 = arith.constant 0 : index
    %c0_6 = arith.constant 0 : index
    %10 = vector.load %arg15[%c0_5, %c0_6] : memref<16x16xf32, #tpu.memory_space<vmem>>, vector<16x16xf32>
    tpu.vector_store %arg15[%c0_5, %c0_6], %9 {strides = array<i32>} : memref<16x16xf32, #tpu.memory_space<vmem>>, vector<16x16xf32>,
    %c0_7 = arith.constant 0 : index
    %c0_8 = arith.constant 0 : index
    %11 = vector.load %arg16[%c0_7, %c0_8] : memref<1x32xf32, #tpu.memory_space<vmem>>, vector<1x32xf32>
    %12 = arith.mulf %4, %4 : vector<128x32xf32>
    %cst_9 = arith.constant dense<0.000000e+00> : vector<32xf32>
    %13 = vector.multi_reduction <add>, %12, %cst_9 [0] : vector<128x32xf32> to vector<32xf32>
    %14 = vector.shape_cast %13 : vector<32xf32> to vector<1x32xf32>
    %15 = arith.addf %11, %14 : vector<1x32xf32>
    %c0_10 = arith.constant 0 : index
    %c0_11 = arith.constant 0 : index
    %16 = vector.load %arg16[%c0_10, %c0_11] : memref<1x32xf32, #tpu.memory_space<vmem>>, vector<1x32xf32>
    tpu.vector_store %arg16[%c0_10, %c0_11], %15 {strides = array<i32>} : memref<1x32xf32, #tpu.memory_space<vmem>>, vector<1x32xf32>,
    %c1_i32 = arith.constant 1 : i32
    %17 = arith.cmpi eq, %arg1, %c1_i32 : i32
    %18 = arith.extui %17 : i1 to i32
    %c0_i32_12 = arith.constant 0 : i32
    %19 = arith.cmpi ne, %18, %c0_i32_12 : i32
    scf.if %19 {
      %c0_13 = arith.constant 0 : index
      %c0_14 = arith.constant 0 : index
      %20 = vector.load %arg16[%c0_13, %c0_14] : memref<1x32xf32, #tpu.memory_space<vmem>>, vector<1x32xf32>
      %cst_15 = arith.constant 1.000000e-24 : f32
      %21 = vector.broadcast %cst_15 : f32 to vector<1x32xf32>
      %22 = arith.maximumf %20, %21 : vector<1x32xf32>
      %23 = math.rsqrt %22 : vector<1x32xf32>
      %24 = vector.extract_strided_slice %23 {offsets = [0, 0], sizes = [1, 16], strides = [1, 1]} : vector<1x32xf32> to vector<1x16xf32>
      %25 = vector.extract_strided_slice %23 {offsets = [0, 16], sizes = [1, 16], strides = [1, 1]} : vector<1x32xf32> to vector<1x16xf32>
      %c0_16 = arith.constant 0 : index
      %c0_17 = arith.constant 0 : index
      %26 = vector.load %arg15[%c0_16, %c0_17] : memref<16x16xf32, #tpu.memory_space<vmem>>, vector<16x16xf32>
      %c0_18 = arith.constant 0 : index
      %c0_19 = arith.constant 0 : index
      %27 = vector.load %arg4[%c0_18, %c0_19] : memref<16x16xf32, #tpu.memory_space<vmem>>, vector<16x16xf32>
      %c0_20 = arith.constant 0 : index
      %c0_21 = arith.constant 0 : index
      %28 = vector.load %arg5[%c0_20, %c0_21] : memref<16x16xf32, #tpu.memory_space<vmem>>, vector<16x16xf32>
      %c0_22 = arith.constant 0 : index
      %c0_23 = arith.constant 0 : index
      %29 = vector.load %arg6[%c0_22, %c0_23] : memref<4x16xf32, #tpu.memory_space<vmem>>, vector<4x16xf32>
      %c0_24 = arith.constant 0 : index
      %c0_25 = arith.constant 0 : index
      %30 = vector.load %arg7[%c0_24, %c0_25] : memref<16x16xf32, #tpu.memory_space<vmem>>, vector<16x16xf32>
      %31 = arith.mulf %26, %27 : vector<16x16xf32>
      %cst_26 = arith.constant dense<0.000000e+00> : vector<16x16xf32>
      %32 = tpu.matmul %31, %28, %cst_26 {dimension_numbers = #tpu.dot_dimension_numbers<[1], [0], [0], [1], [0, 0, 1, 1], [], []>} : vector<16x16xf32>, vector<16x16xf32>, vector<16x16xf32> -> vector<16x16xf32>
      %33 = arith.mulf %32, %30 : vector<16x16xf32>
      %cst_27 = arith.constant dense<0.000000e+00> : vector<4x16xf32>
      %34 = tpu.matmul %29, %33, %cst_27 {dimension_numbers = #tpu.dot_dimension_numbers<[1], [0], [0], [1], [0, 0, 1, 1], [], []>} : vector<4x16xf32>, vector<16x16xf32>, vector<4x16xf32> -> vector<4x16xf32>
      %35 = vector.broadcast %24 : vector<1x16xf32> to vector<4x16xf32>
      %36 = arith.mulf %29, %35 : vector<4x16xf32>
      %cst_28 = arith.constant dense<0.000000e+00> : vector<4x16xf32>
      %37 = tpu.matmul %36, %30, %cst_28 {dimension_numbers = #tpu.dot_dimension_numbers<[1], [0], [0], [1], [0, 0, 1, 1], [], []>} : vector<4x16xf32>, vector<16x16xf32>, vector<4x16xf32> -> vector<4x16xf32>
      %38 = vector.broadcast %25 : vector<1x16xf32> to vector<4x16xf32>
      %39 = arith.mulf %29, %38 : vector<4x16xf32>
      %cst_29 = arith.constant dense<0.000000e+00> : vector<4x16xf32>
      %40 = tpu.matmul %39, %28, %cst_29 {dimension_numbers = #tpu.dot_dimension_numbers<[1], [0], [0], [1], [0, 0, 1, 1], [], []>} : vector<4x16xf32>, vector<16x16xf32>, vector<4x16xf32> -> vector<4x16xf32>
      %41 = arith.mulf %34, %37 : vector<4x16xf32>
      %42 = arith.mulf %41, %40 : vector<4x16xf32>
      %c0_30 = arith.constant 0 : index
      %c0_31 = arith.constant 0 : index
      %43 = vector.load %arg3[%c0_30, %c0_31] : memref<4x1xf32, #tpu.memory_space<vmem>>, vector<4x1xf32>
      %44 = vector.broadcast %43 : vector<4x1xf32> to vector<4x16xf32>
      %45 = arith.mulf %42, %44 : vector<4x16xf32>
      %c0_32 = arith.constant 0 : index
      %c0_33 = arith.constant 0 : index
      %46 = vector.load %arg8[%c0_32, %c0_33] : memref<4x4xf32, #tpu.memory_space<vmem>>, vector<4x4xf32>
      %cst_34 = arith.constant dense<0.000000e+00> : vector<4x16xf32>
      %47 = tpu.matmul %46, %45, %cst_34 {dimension_numbers = #tpu.dot_dimension_numbers<[0], [0], [1], [1], [0, 1, 1, 1], [], []>} : vector<4x4xf32>, vector<4x16xf32>, vector<4x16xf32> -> vector<4x16xf32>
      %c0_35 = arith.constant 0 : index
      %c0_36 = arith.constant 0 : index
      %48 = vector.load %arg9[%c0_35, %c0_36] : memref<4x1xf32, #tpu.memory_space<vmem>>, vector<4x1xf32>
      %49 = vector.broadcast %48 : vector<4x1xf32> to vector<4x16xf32>
      %50 = arith.addf %47, %49 : vector<4x16xf32>
      %c0_37 = arith.constant 0 : index
      %c0_38 = arith.constant 0 : index
      %51 = vector.load %arg12[%c0_37, %c0_38] : memref<4x64xf32, #tpu.memory_space<vmem>>, vector<4x64xf32>
      %cst_39 = arith.constant dense<0.000000e+00> : vector<16x64xf32>
      %52 = tpu.matmul %50, %51, %cst_39 {dimension_numbers = #tpu.dot_dimension_numbers<[0], [0], [1], [1], [0, 1, 1, 1], [], []>} : vector<4x16xf32>, vector<4x64xf32>, vector<16x64xf32> -> vector<16x64xf32>
      %cst_40 = arith.constant dense<0xFF800000> : vector<16xf32>
      %53 = vector.multi_reduction <maximumf>, %52, %cst_40 [1] : vector<16x64xf32> to vector<16xf32>
      %54 = vector.shape_cast %53 : vector<16xf32> to vector<16x1xf32>
      %55 = vector.broadcast %54 : vector<16x1xf32> to vector<16x64xf32>
      %56 = arith.subf %52, %55 : vector<16x64xf32>
      %57 = math.exp %56 : vector<16x64xf32>
      %cst_41 = arith.constant dense<0.000000e+00> : vector<16xf32>
      %58 = vector.multi_reduction <add>, %57, %cst_41 [1] : vector<16x64xf32> to vector<16xf32>
      %59 = vector.shape_cast %58 : vector<16xf32> to vector<16x1xf32>
      %60 = vector.broadcast %59 : vector<16x1xf32> to vector<16x64xf32>
      %61 = arith.divf %57, %60 : vector<16x64xf32>
      %cst_42 = arith.constant dense<0.000000e+00> : vector<64xf32>
      %62 = vector.multi_reduction <add>, %61, %cst_42 [0] : vector<16x64xf32> to vector<64xf32>
      %63 = vector.shape_cast %62 : vector<64xf32> to vector<1x64xf32>
      %cst_43 = arith.constant 9.99999997E-7 : f32
      %64 = vector.broadcast %cst_43 : f32 to vector<1x64xf32>
      %65 = arith.addf %64, %63 : vector<1x64xf32>
      %66 = vector.broadcast %65 : vector<1x64xf32> to vector<16x64xf32>
      %67 = arith.divf %61, %66 : vector<16x64xf32>
      %cst_44 = arith.constant dense<0.000000e+00> : vector<4x64xf32>
      %68 = tpu.matmul %50, %67, %cst_44 {dimension_numbers = #tpu.dot_dimension_numbers<[1], [0], [0], [1], [0, 0, 1, 1], [], []>} : vector<4x16xf32>, vector<16x64xf32>, vector<4x64xf32> -> vector<4x64xf32>
      %69 = arith.mulf %68, %68 : vector<4x64xf32>
      %cst_45 = arith.constant dense<0.000000e+00> : vector<64xf32>
      %70 = vector.multi_reduction <add>, %69, %cst_45 [0] : vector<4x64xf32> to vector<64xf32>
      %71 = vector.shape_cast %70 : vector<64xf32> to vector<1x64xf32>
      %72 = math.sqrt %71 : vector<1x64xf32>
      %cst_46 = arith.constant 9.99999997E-7 : f32
      %73 = vector.broadcast %cst_46 : f32 to vector<1x64xf32>
      %74 = arith.addf %73, %72 : vector<1x64xf32>
      %75 = vector.broadcast %74 : vector<1x64xf32> to vector<4x64xf32>
      %76 = arith.divf %68, %75 : vector<4x64xf32>
      %cst_47 = arith.constant dense<0.000000e+00> : vector<16x64xf32>
      %77 = tpu.matmul %50, %76, %cst_47 {dimension_numbers = #tpu.dot_dimension_numbers<[0], [0], [1], [1], [0, 1, 1, 1], [], []>} : vector<4x16xf32>, vector<4x64xf32>, vector<16x64xf32> -> vector<16x64xf32>
      %cst_48 = arith.constant dense<0xFF800000> : vector<16xf32>
      %78 = vector.multi_reduction <maximumf>, %77, %cst_48 [1] : vector<16x64xf32> to vector<16xf32>
      %79 = vector.shape_cast %78 : vector<16xf32> to vector<16x1xf32>
      %80 = vector.broadcast %79 : vector<16x1xf32> to vector<16x64xf32>
      %81 = arith.subf %77, %80 : vector<16x64xf32>
      %82 = math.exp %81 : vector<16x64xf32>
      %cst_49 = arith.constant dense<0.000000e+00> : vector<16xf32>
      %83 = vector.multi_reduction <add>, %82, %cst_49 [1] : vector<16x64xf32> to vector<16xf32>
      %84 = vector.shape_cast %83 : vector<16xf32> to vector<16x1xf32>
      %85 = vector.broadcast %84 : vector<16x1xf32> to vector<16x64xf32>
      %86 = arith.divf %82, %85 : vector<16x64xf32>
      %cst_50 = arith.constant dense<0.000000e+00> : vector<64xf32>
      %87 = vector.multi_reduction <add>, %86, %cst_50 [0] : vector<16x64xf32> to vector<64xf32>
      %88 = vector.shape_cast %87 : vector<64xf32> to vector<1x64xf32>
      %cst_51 = arith.constant 9.99999997E-7 : f32
      %89 = vector.broadcast %cst_51 : f32 to vector<1x64xf32>
      %90 = arith.addf %89, %88 : vector<1x64xf32>
      %91 = vector.broadcast %90 : vector<1x64xf32> to vector<16x64xf32>
      %92 = arith.divf %86, %91 : vector<16x64xf32>
      %cst_52 = arith.constant dense<0.000000e+00> : vector<4x64xf32>
      %93 = tpu.matmul %50, %92, %cst_52 {dimension_numbers = #tpu.dot_dimension_numbers<[1], [0], [0], [1], [0, 0, 1, 1], [], []>} : vector<4x16xf32>, vector<16x64xf32>, vector<4x64xf32> -> vector<4x64xf32>
      %94 = arith.mulf %93, %93 : vector<4x64xf32>
      %cst_53 = arith.constant dense<0.000000e+00> : vector<64xf32>
      %95 = vector.multi_reduction <add>, %94, %cst_53 [0] : vector<4x64xf32> to vector<64xf32>
      %96 = vector.shape_cast %95 : vector<64xf32> to vector<1x64xf32>
      %97 = math.sqrt %96 : vector<1x64xf32>
      %cst_54 = arith.constant 9.99999997E-7 : f32
      %98 = vector.broadcast %cst_54 : f32 to vector<1x64xf32>
      %99 = arith.addf %98, %97 : vector<1x64xf32>
      %100 = vector.broadcast %99 : vector<1x64xf32> to vector<4x64xf32>
      %101 = arith.divf %93, %100 : vector<4x64xf32>
      %cst_55 = arith.constant dense<0.000000e+00> : vector<16x64xf32>
      %102 = tpu.matmul %50, %101, %cst_55 {dimension_numbers = #tpu.dot_dimension_numbers<[0], [0], [1], [1], [0, 1, 1, 1], [], []>} : vector<4x16xf32>, vector<4x64xf32>, vector<16x64xf32> -> vector<16x64xf32>
      %cst_56 = arith.constant dense<0xFF800000> : vector<16xf32>
      %103 = vector.multi_reduction <maximumf>, %102, %cst_56 [1] : vector<16x64xf32> to vector<16xf32>
      %104 = vector.shape_cast %103 : vector<16xf32> to vector<16x1xf32>
      %105 = vector.broadcast %104 : vector<16x1xf32> to vector<16x64xf32>
      %106 = arith.subf %102, %105 : vector<16x64xf32>
      %107 = math.exp %106 : vector<16x64xf32>
      %cst_57 = arith.constant dense<0.000000e+00> : vector<16xf32>
      %108 = vector.multi_reduction <add>, %107, %cst_57 [1] : vector<16x64xf32> to vector<16xf32>
      %109 = vector.shape_cast %108 : vector<16xf32> to vector<16x1xf32>
      %110 = vector.broadcast %109 : vector<16x1xf32> to vector<16x64xf32>
      %111 = arith.divf %107, %110 : vector<16x64xf32>
      %cst_58 = arith.constant dense<0.000000e+00> : vector<64xf32>
      %112 = vector.multi_reduction <add>, %111, %cst_58 [0] : vector<16x64xf32> to vector<64xf32>
      %113 = vector.shape_cast %112 : vector<64xf32> to vector<1x64xf32>
      %cst_59 = arith.constant 9.99999997E-7 : f32
      %114 = vector.broadcast %cst_59 : f32 to vector<1x64xf32>
      %115 = arith.addf %114, %113 : vector<1x64xf32>
      %116 = vector.broadcast %115 : vector<1x64xf32> to vector<16x64xf32>
      %117 = arith.divf %111, %116 : vector<16x64xf32>
      %cst_60 = arith.constant dense<0.000000e+00> : vector<4x64xf32>
      %118 = tpu.matmul %50, %117, %cst_60 {dimension_numbers = #tpu.dot_dimension_numbers<[1], [0], [0], [1], [0, 0, 1, 1], [], []>} : vector<4x16xf32>, vector<16x64xf32>, vector<4x64xf32> -> vector<4x64xf32>
      %119 = arith.mulf %118, %118 : vector<4x64xf32>
      %cst_61 = arith.constant dense<0.000000e+00> : vector<64xf32>
      %120 = vector.multi_reduction <add>, %119, %cst_61 [0] : vector<4x64xf32> to vector<64xf32>
      %121 = vector.shape_cast %120 : vector<64xf32> to vector<1x64xf32>
      %122 = math.sqrt %121 : vector<1x64xf32>
      %cst_62 = arith.constant 9.99999997E-7 : f32
      %123 = vector.broadcast %cst_62 : f32 to vector<1x64xf32>
      %124 = arith.addf %123, %122 : vector<1x64xf32>
      %125 = vector.broadcast %124 : vector<1x64xf32> to vector<4x64xf32>
      %126 = arith.divf %118, %125 : vector<4x64xf32>
      %cst_63 = arith.constant dense<0.000000e+00> : vector<4x16xf32>
      %127 = tpu.matmul %126, %111, %cst_63 {dimension_numbers = #tpu.dot_dimension_numbers<[1], [1], [0], [0], [0, 0, 1, 0], [], []>} : vector<4x64xf32>, vector<16x64xf32>, vector<4x16xf32> -> vector<4x16xf32>
      %cst_64 = arith.constant 0.000000e+00 : f32
      %128 = vector.broadcast %cst_64 : f32 to vector<4x16xf32>
      %129 = arith.maximumf %127, %128 : vector<4x16xf32>
      %c0_65 = arith.constant 0 : index
      %c0_66 = arith.constant 0 : index
      %130 = vector.load %arg10[%c0_65, %c0_66] : memref<4x4xf32, #tpu.memory_space<vmem>>, vector<4x4xf32>
      %cst_67 = arith.constant dense<0.000000e+00> : vector<4x16xf32>
      %131 = tpu.matmul %130, %129, %cst_67 {dimension_numbers = #tpu.dot_dimension_numbers<[0], [0], [1], [1], [0, 1, 1, 1], [], []>} : vector<4x4xf32>, vector<4x16xf32>, vector<4x16xf32> -> vector<4x16xf32>
      %c0_68 = arith.constant 0 : index
      %c0_69 = arith.constant 0 : index
      %132 = vector.load %arg11[%c0_68, %c0_69] : memref<4x1xf32, #tpu.memory_space<vmem>>, vector<4x1xf32>
      %133 = vector.broadcast %132 : vector<4x1xf32> to vector<4x16xf32>
      %134 = arith.addf %131, %133 : vector<4x16xf32>
      %135 = arith.addf %134, %45 : vector<4x16xf32>
      %cst_70 = arith.constant 0.000000e+00 : f32
      %136 = vector.broadcast %cst_70 : f32 to vector<4x16xf32>
      %137 = arith.maximumf %135, %136 : vector<4x16xf32>
      %cst_71 = arith.constant dense<0.000000e+00> : vector<16x16xf32>
      %138 = tpu.matmul %29, %137, %cst_71 {dimension_numbers = #tpu.dot_dimension_numbers<[0], [0], [1], [1], [0, 1, 1, 1], [], []>} : vector<4x16xf32>, vector<4x16xf32>, vector<16x16xf32> -> vector<16x16xf32>
      %139 = arith.mulf %138, %30 : vector<16x16xf32>
      %cst_72 = arith.constant dense<0.000000e+00> : vector<16x16xf32>
      %140 = tpu.matmul %139, %28, %cst_72 {dimension_numbers = #tpu.dot_dimension_numbers<[1], [1], [0], [0], [0, 0, 1, 0], [], []>} : vector<16x16xf32>, vector<16x16xf32>, vector<16x16xf32> -> vector<16x16xf32>
      %141 = arith.mulf %140, %27 : vector<16x16xf32>
      %c0_73 = arith.constant 0 : index
      %c0_74 = arith.constant 0 : index
      %142 = vector.load %arg13[%c0_73, %c0_74] : memref<16x16xf32, #tpu.memory_space<vmem>>, vector<16x16xf32>
      %cst_75 = arith.constant dense<0.000000e+00> : vector<16x16xf32>
      %143 = tpu.matmul %142, %141, %cst_75 {dimension_numbers = #tpu.dot_dimension_numbers<[0], [0], [1], [1], [0, 1, 1, 1], [], []>} : vector<16x16xf32>, vector<16x16xf32>, vector<16x16xf32> -> vector<16x16xf32>
      %c0_76 = arith.constant 0 : index
      %c0_77 = arith.constant 0 : index
      %c0_78 = arith.constant 0 : index
      %144 = vector.load %arg14[%c0_76, %c0_77, %c0_78] : memref<1x16x16xf32, #tpu.memory_space<vmem>>, vector<1x16x16xf32>
      %145 = vector.shape_cast %144 : vector<1x16x16xf32> to vector<16x16xf32>
      %146 = vector.shape_cast %143 : vector<16x16xf32> to vector<1x16x16xf32>
      tpu.vector_store %arg14[%c0_76, %c0_77, %c0_78], %146 {strides = array<i32>} : memref<1x16x16xf32, #tpu.memory_space<vmem>>, vector<1x16x16xf32>,
    } else {
    }
    return
  }
  func.func @transform_0(%arg0: i32, %arg1: i32) -> (i32, i32, i32) {
    %c0_i32 = arith.constant 0 : i32
    %c0_i32_0 = arith.constant 0 : i32
    return %arg0, %arg1, %c0_i32 : i32, i32, i32
  }
  func.func @transform_1(%arg0: i32, %arg1: i32) -> (i32, i32) {
    %c0_i32 = arith.constant 0 : i32
    %c0_i32_0 = arith.constant 0 : i32
    %c0_i32_1 = arith.constant 0 : i32
    return %c0_i32, %c0_i32_0 : i32, i32
  }
  func.func @transform_2(%arg0: i32, %arg1: i32) -> (i32, i32) {
    %c0_i32 = arith.constant 0 : i32
    %c0_i32_0 = arith.constant 0 : i32
    %c0_i32_1 = arith.constant 0 : i32
    return %c0_i32, %c0_i32_0 : i32, i32
  }
  func.func @transform_3(%arg0: i32, %arg1: i32) -> (i32, i32) {
    %c0_i32 = arith.constant 0 : i32
    %c0_i32_0 = arith.constant 0 : i32
    %c0_i32_1 = arith.constant 0 : i32
    return %c0_i32, %c0_i32_0 : i32, i32
  }
  func.func @transform_4(%arg0: i32, %arg1: i32) -> (i32, i32) {
    %c0_i32 = arith.constant 0 : i32
    %c0_i32_0 = arith.constant 0 : i32
    %c0_i32_1 = arith.constant 0 : i32
    return %c0_i32, %c0_i32_0 : i32, i32
  }
  func.func @transform_5(%arg0: i32, %arg1: i32) -> (i32, i32) {
    %c0_i32 = arith.constant 0 : i32
    %c0_i32_0 = arith.constant 0 : i32
    %c0_i32_1 = arith.constant 0 : i32
    return %c0_i32, %c0_i32_0 : i32, i32
  }
  func.func @transform_6(%arg0: i32, %arg1: i32) -> (i32, i32) {
    %c0_i32 = arith.constant 0 : i32
    %c0_i32_0 = arith.constant 0 : i32
    %c0_i32_1 = arith.constant 0 : i32
    return %c0_i32, %c0_i32_0 : i32, i32
  }
  func.func @transform_7(%arg0: i32, %arg1: i32) -> (i32, i32) {
    %c0_i32 = arith.constant 0 : i32
    %c0_i32_0 = arith.constant 0 : i32
    %c0_i32_1 = arith.constant 0 : i32
    return %c0_i32, %c0_i32_0 : i32, i32
  }
  func.func @transform_8(%arg0: i32, %arg1: i32) -> (i32, i32) {
    %c0_i32 = arith.constant 0 : i32
    %c0_i32_0 = arith.constant 0 : i32
    %c0_i32_1 = arith.constant 0 : i32
    return %c0_i32, %c0_i32_0 : i32, i32
  }
  func.func @transform_9(%arg0: i32, %arg1: i32) -> (i32, i32) {
    %c0_i32 = arith.constant 0 : i32
    %c0_i32_0 = arith.constant 0 : i32
    %c0_i32_1 = arith.constant 0 : i32
    return %c0_i32, %c0_i32_0 : i32, i32
  }
  func.func @transform_10(%arg0: i32, %arg1: i32) -> (i32, i32) {
    %c0_i32 = arith.constant 0 : i32
    %c0_i32_0 = arith.constant 0 : i32
    %c0_i32_1 = arith.constant 0 : i32
    return %c0_i32, %c0_i32_0 : i32, i32
  }
  func.func @transform_11(%arg0: i32, %arg1: i32) -> (i32, i32) {
    %c0_i32 = arith.constant 0 : i32
    %c0_i32_0 = arith.constant 0 : i32
    %c0_i32_1 = arith.constant 0 : i32
    return %c0_i32, %c0_i32_0 : i32, i32
  }
  func.func @transform_12(%arg0: i32, %arg1: i32) -> (i32, i32, i32) {
    %c0_i32 = arith.constant 0 : i32
    %c0_i32_0 = arith.constant 0 : i32
    %c0_i32_1 = arith.constant 0 : i32
    return %arg0, %c0_i32, %c0_i32_0 : i32, i32, i32
  }
}

module attributes {stable_mosaic.version = 11 : i64} {
  func.func @_qkv_dw_kernel(%arg0: i32, %arg1: i32, %arg2: memref<1x8x16x16xf32, #tpu.memory_space<vmem>>, %arg3: memref<1x1x16x16xf32, #tpu.memory_space<vmem>>, %arg4: memref<1x1x16x16xf32, #tpu.memory_space<vmem>>, %arg5: memref<16x48xf32, #tpu.memory_space<vmem>>, %arg6: memref<1x48xf32, #tpu.memory_space<vmem>>, %arg7: memref<3x3x48xf32, #tpu.memory_space<vmem>>, %arg8: memref<1x48xf32, #tpu.memory_space<vmem>>, %arg9: memref<1x8x16x32xf32, #tpu.memory_space<vmem>>, %arg10: memref<1x8x16x16xf32, #tpu.memory_space<vmem>>, %arg11: memref<10x18x48xf32, #tpu.memory_space<vmem>>) attributes {dimension_semantics = [#tpu.dimension_semantics<parallel>, #tpu.dimension_semantics<parallel>], iteration_bounds = array<i64: 2, 2>, scalar_prefetch = 0 : i64, scratch_operands = 1 : i64, tpu.core_type = #tpu.core_type<tc>, window_params = [{transform_indices = @transform_0, window_bounds = array<i64: 1, 8, 16, 16>}, {transform_indices = @transform_1, window_bounds = array<i64: 1, 1, 16, 16>}, {transform_indices = @transform_2, window_bounds = array<i64: 1, 1, 16, 16>}, {pipeline_mode = #tpu.pipeline_mode<synchronous>, transform_indices = @transform_3, window_bounds = array<i64: 16, 48>}, {pipeline_mode = #tpu.pipeline_mode<synchronous>, transform_indices = @transform_4, window_bounds = array<i64: 1, 48>}, {pipeline_mode = #tpu.pipeline_mode<synchronous>, transform_indices = @transform_5, window_bounds = array<i64: 3, 3, 48>}, {pipeline_mode = #tpu.pipeline_mode<synchronous>, transform_indices = @transform_6, window_bounds = array<i64: 1, 48>}, {transform_indices = @transform_7, window_bounds = array<i64: 1, 8, 16, 32>}, {transform_indices = @transform_8, window_bounds = array<i64: 1, 8, 16, 16>}]} {
    %c0 = arith.constant 0 : index
    %c0_0 = arith.constant 0 : index
    %0 = vector.load %arg5[%c0, %c0_0] : memref<16x48xf32, #tpu.memory_space<vmem>>, vector<16x48xf32>
    %c0_1 = arith.constant 0 : index
    %c0_2 = arith.constant 0 : index
    %1 = vector.load %arg6[%c0_1, %c0_2] : memref<1x48xf32, #tpu.memory_space<vmem>>, vector<1x48xf32>
    %c0_3 = arith.constant 0 : index
    %c0_4 = arith.constant 0 : index
    %c0_5 = arith.constant 0 : index
    %c0_6 = arith.constant 0 : index
    %2 = vector.load %arg2[%c0_3, %c0_4, %c0_5, %c0_6] : memref<1x8x16x16xf32, #tpu.memory_space<vmem>>, vector<1x8x16x16xf32>
    %3 = vector.shape_cast %2 : vector<1x8x16x16xf32> to vector<8x16x16xf32>
    %4 = vector.shape_cast %3 : vector<8x16x16xf32> to vector<128x16xf32>
    %cst = arith.constant dense<0.000000e+00> : vector<128x48xf32>
    %5 = tpu.matmul %4, %0, %cst {dimension_numbers = #tpu.dot_dimension_numbers<[1], [0], [0], [1], [0, 0, 1, 1], [], []>} : vector<128x16xf32>, vector<16x48xf32>, vector<128x48xf32> -> vector<128x48xf32>
    %6 = vector.broadcast %1 : vector<1x48xf32> to vector<128x48xf32>
    %7 = arith.addf %5, %6 : vector<128x48xf32>
    %c0_i32 = arith.constant 0 : i32
    %8 = arith.cmpi sgt, %arg1, %c0_i32 : i32
    %cst_7 = arith.constant 1.000000e+00 : f32
    %cst_8 = arith.constant 0.000000e+00 : f32
    %9 = arith.select %8, %cst_7, %cst_8 : f32
    %c1_i32 = arith.constant 1 : i32
    %10 = arith.cmpi slt, %arg1, %c1_i32 : i32
    %cst_9 = arith.constant 1.000000e+00 : f32
    %cst_10 = arith.constant 0.000000e+00 : f32
    %11 = arith.select %10, %cst_9, %cst_10 : f32
    %c0_11 = arith.constant 0 : index
    %c0_12 = arith.constant 0 : index
    %c0_13 = arith.constant 0 : index
    %c0_14 = arith.constant 0 : index
    %12 = vector.load %arg3[%c0_11, %c0_12, %c0_13, %c0_14] : memref<1x1x16x16xf32, #tpu.memory_space<vmem>>, vector<1x1x16x16xf32>
    %13 = vector.shape_cast %12 : vector<1x1x16x16xf32> to vector<16x16xf32>
    %cst_15 = arith.constant dense<0.000000e+00> : vector<16x48xf32>
    %14 = tpu.matmul %13, %0, %cst_15 {dimension_numbers = #tpu.dot_dimension_numbers<[1], [0], [0], [1], [0, 0, 1, 1], [], []>} : vector<16x16xf32>, vector<16x48xf32>, vector<16x48xf32> -> vector<16x48xf32>
    %15 = vector.broadcast %1 : vector<1x48xf32> to vector<16x48xf32>
    %16 = arith.addf %14, %15 : vector<16x48xf32>
    %17 = vector.broadcast %9 : f32 to vector<16x48xf32>
    %18 = arith.mulf %16, %17 : vector<16x48xf32>
    %c0_16 = arith.constant 0 : index
    %c0_17 = arith.constant 0 : index
    %c0_18 = arith.constant 0 : index
    %c0_19 = arith.constant 0 : index
    %19 = vector.load %arg4[%c0_16, %c0_17, %c0_18, %c0_19] : memref<1x1x16x16xf32, #tpu.memory_space<vmem>>, vector<1x1x16x16xf32>
    %20 = vector.shape_cast %19 : vector<1x1x16x16xf32> to vector<16x16xf32>
    %cst_20 = arith.constant dense<0.000000e+00> : vector<16x48xf32>
    %21 = tpu.matmul %20, %0, %cst_20 {dimension_numbers = #tpu.dot_dimension_numbers<[1], [0], [0], [1], [0, 0, 1, 1], [], []>} : vector<16x16xf32>, vector<16x48xf32>, vector<16x48xf32> -> vector<16x48xf32>
    %22 = vector.broadcast %1 : vector<1x48xf32> to vector<16x48xf32>
    %23 = arith.addf %21, %22 : vector<16x48xf32>
    %24 = vector.broadcast %11 : f32 to vector<16x48xf32>
    %25 = arith.mulf %23, %24 : vector<16x48xf32>
    %cst_21 = arith.constant 0.000000e+00 : f32
    %26 = vector.broadcast %cst_21 : f32 to vector<10x1x48xf32>
    %c0_22 = arith.constant 0 : index
    %c0_23 = arith.constant 0 : index
    %c0_24 = arith.constant 0 : index
    %27 = vector.load %arg11[%c0_22, %c0_23, %c0_24] : memref<10x18x48xf32, #tpu.memory_space<vmem>>, vector<10x1x48xf32>
    tpu.vector_store %arg11[%c0_22, %c0_23, %c0_24], %26 {strides = array<i32>} : memref<10x18x48xf32, #tpu.memory_space<vmem>>, vector<10x1x48xf32>,
    %cst_25 = arith.constant 0.000000e+00 : f32
    %28 = vector.broadcast %cst_25 : f32 to vector<10x1x48xf32>
    %c0_26 = arith.constant 0 : index
    %c17 = arith.constant 17 : index
    %c0_27 = arith.constant 0 : index
    %29 = vector.load %arg11[%c0_26, %c17, %c0_27] : memref<10x18x48xf32, #tpu.memory_space<vmem>>, vector<10x1x48xf32>
    tpu.vector_store %arg11[%c0_26, %c17, %c0_27], %28 {strides = array<i32>} : memref<10x18x48xf32, #tpu.memory_space<vmem>>, vector<10x1x48xf32>,
    %30 = vector.shape_cast %18 : vector<16x48xf32> to vector<1x16x48xf32>
    %c0_28 = arith.constant 0 : index
    %c1 = arith.constant 1 : index
    %c0_29 = arith.constant 0 : index
    %31 = vector.load %arg11[%c0_28, %c1, %c0_29] : memref<10x18x48xf32, #tpu.memory_space<vmem>>, vector<1x16x48xf32>
    tpu.vector_store %arg11[%c0_28, %c1, %c0_29], %30 {strides = array<i32>} : memref<10x18x48xf32, #tpu.memory_space<vmem>>, vector<1x16x48xf32>,
    %32 = vector.shape_cast %25 : vector<16x48xf32> to vector<1x16x48xf32>
    %c9 = arith.constant 9 : index
    %c1_30 = arith.constant 1 : index
    %c0_31 = arith.constant 0 : index
    %33 = vector.load %arg11[%c9, %c1_30, %c0_31] : memref<10x18x48xf32, #tpu.memory_space<vmem>>, vector<1x16x48xf32>
    tpu.vector_store %arg11[%c9, %c1_30, %c0_31], %32 {strides = array<i32>} : memref<10x18x48xf32, #tpu.memory_space<vmem>>, vector<1x16x48xf32>,
    %34 = vector.shape_cast %7 : vector<128x48xf32> to vector<8x16x48xf32>
    %c1_32 = arith.constant 1 : index
    %c1_33 = arith.constant 1 : index
    %c0_34 = arith.constant 0 : index
    %35 = vector.load %arg11[%c1_32, %c1_33, %c0_34] : memref<10x18x48xf32, #tpu.memory_space<vmem>>, vector<8x16x48xf32>
    tpu.vector_store %arg11[%c1_32, %c1_33, %c0_34], %34 {strides = array<i32>} : memref<10x18x48xf32, #tpu.memory_space<vmem>>, vector<8x16x48xf32>,
    %c0_35 = arith.constant 0 : index
    %c0_36 = arith.constant 0 : index
    %c0_37 = arith.constant 0 : index
    %36 = vector.load %arg7[%c0_35, %c0_36, %c0_37] : memref<3x3x48xf32, #tpu.memory_space<vmem>>, vector<3x3x48xf32>
    %cst_38 = arith.constant 0.000000e+00 : f32
    %37 = vector.broadcast %cst_38 : f32 to vector<8x16x48xf32>
    %c0_39 = arith.constant 0 : index
    %c0_40 = arith.constant 0 : index
    %c0_41 = arith.constant 0 : index
    %38 = vector.load %arg11[%c0_39, %c0_40, %c0_41] : memref<10x18x48xf32, #tpu.memory_space<vmem>>, vector<8x16x48xf32>
    %39 = vector.extract_strided_slice %36 {offsets = [0, 0, 0], sizes = [1, 1, 48], strides = [1, 1, 1]} : vector<3x3x48xf32> to vector<1x1x48xf32>
    %40 = vector.broadcast %39 : vector<1x1x48xf32> to vector<8x16x48xf32>
    %41 = arith.mulf %38, %40 : vector<8x16x48xf32>
    %42 = arith.addf %37, %41 : vector<8x16x48xf32>
    %c0_42 = arith.constant 0 : index
    %c1_43 = arith.constant 1 : index
    %c0_44 = arith.constant 0 : index
    %43 = vector.load %arg11[%c0_42, %c1_43, %c0_44] : memref<10x18x48xf32, #tpu.memory_space<vmem>>, vector<8x16x48xf32>
    %44 = vector.extract_strided_slice %36 {offsets = [0, 1, 0], sizes = [1, 1, 48], strides = [1, 1, 1]} : vector<3x3x48xf32> to vector<1x1x48xf32>
    %45 = vector.broadcast %44 : vector<1x1x48xf32> to vector<8x16x48xf32>
    %46 = arith.mulf %43, %45 : vector<8x16x48xf32>
    %47 = arith.addf %42, %46 : vector<8x16x48xf32>
    %c0_45 = arith.constant 0 : index
    %c2 = arith.constant 2 : index
    %c0_46 = arith.constant 0 : index
    %48 = vector.load %arg11[%c0_45, %c2, %c0_46] : memref<10x18x48xf32, #tpu.memory_space<vmem>>, vector<8x16x48xf32>
    %49 = vector.extract_strided_slice %36 {offsets = [0, 2, 0], sizes = [1, 1, 48], strides = [1, 1, 1]} : vector<3x3x48xf32> to vector<1x1x48xf32>
    %50 = vector.broadcast %49 : vector<1x1x48xf32> to vector<8x16x48xf32>
    %51 = arith.mulf %48, %50 : vector<8x16x48xf32>
    %52 = arith.addf %47, %51 : vector<8x16x48xf32>
    %c1_47 = arith.constant 1 : index
    %c0_48 = arith.constant 0 : index
    %c0_49 = arith.constant 0 : index
    %53 = vector.load %arg11[%c1_47, %c0_48, %c0_49] : memref<10x18x48xf32, #tpu.memory_space<vmem>>, vector<8x16x48xf32>
    %54 = vector.extract_strided_slice %36 {offsets = [1, 0, 0], sizes = [1, 1, 48], strides = [1, 1, 1]} : vector<3x3x48xf32> to vector<1x1x48xf32>
    %55 = vector.broadcast %54 : vector<1x1x48xf32> to vector<8x16x48xf32>
    %56 = arith.mulf %53, %55 : vector<8x16x48xf32>
    %57 = arith.addf %52, %56 : vector<8x16x48xf32>
    %c1_50 = arith.constant 1 : index
    %c1_51 = arith.constant 1 : index
    %c0_52 = arith.constant 0 : index
    %58 = vector.load %arg11[%c1_50, %c1_51, %c0_52] : memref<10x18x48xf32, #tpu.memory_space<vmem>>, vector<8x16x48xf32>
    %59 = vector.extract_strided_slice %36 {offsets = [1, 1, 0], sizes = [1, 1, 48], strides = [1, 1, 1]} : vector<3x3x48xf32> to vector<1x1x48xf32>
    %60 = vector.broadcast %59 : vector<1x1x48xf32> to vector<8x16x48xf32>
    %61 = arith.mulf %58, %60 : vector<8x16x48xf32>
    %62 = arith.addf %57, %61 : vector<8x16x48xf32>
    %c1_53 = arith.constant 1 : index
    %c2_54 = arith.constant 2 : index
    %c0_55 = arith.constant 0 : index
    %63 = vector.load %arg11[%c1_53, %c2_54, %c0_55] : memref<10x18x48xf32, #tpu.memory_space<vmem>>, vector<8x16x48xf32>
    %64 = vector.extract_strided_slice %36 {offsets = [1, 2, 0], sizes = [1, 1, 48], strides = [1, 1, 1]} : vector<3x3x48xf32> to vector<1x1x48xf32>
    %65 = vector.broadcast %64 : vector<1x1x48xf32> to vector<8x16x48xf32>
    %66 = arith.mulf %63, %65 : vector<8x16x48xf32>
    %67 = arith.addf %62, %66 : vector<8x16x48xf32>
    %c2_56 = arith.constant 2 : index
    %c0_57 = arith.constant 0 : index
    %c0_58 = arith.constant 0 : index
    %68 = vector.load %arg11[%c2_56, %c0_57, %c0_58] : memref<10x18x48xf32, #tpu.memory_space<vmem>>, vector<8x16x48xf32>
    %69 = vector.extract_strided_slice %36 {offsets = [2, 0, 0], sizes = [1, 1, 48], strides = [1, 1, 1]} : vector<3x3x48xf32> to vector<1x1x48xf32>
    %70 = vector.broadcast %69 : vector<1x1x48xf32> to vector<8x16x48xf32>
    %71 = arith.mulf %68, %70 : vector<8x16x48xf32>
    %72 = arith.addf %67, %71 : vector<8x16x48xf32>
    %c2_59 = arith.constant 2 : index
    %c1_60 = arith.constant 1 : index
    %c0_61 = arith.constant 0 : index
    %73 = vector.load %arg11[%c2_59, %c1_60, %c0_61] : memref<10x18x48xf32, #tpu.memory_space<vmem>>, vector<8x16x48xf32>
    %74 = vector.extract_strided_slice %36 {offsets = [2, 1, 0], sizes = [1, 1, 48], strides = [1, 1, 1]} : vector<3x3x48xf32> to vector<1x1x48xf32>
    %75 = vector.broadcast %74 : vector<1x1x48xf32> to vector<8x16x48xf32>
    %76 = arith.mulf %73, %75 : vector<8x16x48xf32>
    %77 = arith.addf %72, %76 : vector<8x16x48xf32>
    %c2_62 = arith.constant 2 : index
    %c2_63 = arith.constant 2 : index
    %c0_64 = arith.constant 0 : index
    %78 = vector.load %arg11[%c2_62, %c2_63, %c0_64] : memref<10x18x48xf32, #tpu.memory_space<vmem>>, vector<8x16x48xf32>
    %79 = vector.extract_strided_slice %36 {offsets = [2, 2, 0], sizes = [1, 1, 48], strides = [1, 1, 1]} : vector<3x3x48xf32> to vector<1x1x48xf32>
    %80 = vector.broadcast %79 : vector<1x1x48xf32> to vector<8x16x48xf32>
    %81 = arith.mulf %78, %80 : vector<8x16x48xf32>
    %82 = arith.addf %77, %81 : vector<8x16x48xf32>
    %c0_65 = arith.constant 0 : index
    %c0_66 = arith.constant 0 : index
    %83 = vector.load %arg8[%c0_65, %c0_66] : memref<1x48xf32, #tpu.memory_space<vmem>>, vector<1x48xf32>
    %84 = vector.shape_cast %83 : vector<1x48xf32> to vector<1x1x48xf32>
    %85 = vector.broadcast %84 : vector<1x1x48xf32> to vector<8x16x48xf32>
    %86 = arith.addf %82, %85 : vector<8x16x48xf32>
    %87 = vector.extract_strided_slice %86 {offsets = [0, 0, 0], sizes = [8, 16, 32], strides = [1, 1, 1]} : vector<8x16x48xf32> to vector<8x16x32xf32>
    %c0_67 = arith.constant 0 : index
    %c0_68 = arith.constant 0 : index
    %c0_69 = arith.constant 0 : index
    %c0_70 = arith.constant 0 : index
    %88 = vector.load %arg9[%c0_67, %c0_68, %c0_69, %c0_70] : memref<1x8x16x32xf32, #tpu.memory_space<vmem>>, vector<1x8x16x32xf32>
    %89 = vector.shape_cast %88 : vector<1x8x16x32xf32> to vector<8x16x32xf32>
    %90 = vector.shape_cast %87 : vector<8x16x32xf32> to vector<1x8x16x32xf32>
    tpu.vector_store %arg9[%c0_67, %c0_68, %c0_69, %c0_70], %90 {strides = array<i32>} : memref<1x8x16x32xf32, #tpu.memory_space<vmem>>, vector<1x8x16x32xf32>,
    %91 = vector.extract_strided_slice %86 {offsets = [0, 0, 32], sizes = [8, 16, 16], strides = [1, 1, 1]} : vector<8x16x48xf32> to vector<8x16x16xf32>
    %c0_71 = arith.constant 0 : index
    %c0_72 = arith.constant 0 : index
    %c0_73 = arith.constant 0 : index
    %c0_74 = arith.constant 0 : index
    %92 = vector.load %arg10[%c0_71, %c0_72, %c0_73, %c0_74] : memref<1x8x16x16xf32, #tpu.memory_space<vmem>>, vector<1x8x16x16xf32>
    %93 = vector.shape_cast %92 : vector<1x8x16x16xf32> to vector<8x16x16xf32>
    %94 = vector.shape_cast %91 : vector<8x16x16xf32> to vector<1x8x16x16xf32>
    tpu.vector_store %arg10[%c0_71, %c0_72, %c0_73, %c0_74], %94 {strides = array<i32>} : memref<1x8x16x16xf32, #tpu.memory_space<vmem>>, vector<1x8x16x16xf32>,
    return
  }
  func.func @transform_0(%arg0: i32, %arg1: i32) -> (i32, i32, i32, i32) {
    %c0_i32 = arith.constant 0 : i32
    %c0_i32_0 = arith.constant 0 : i32
    %c0_i32_1 = arith.constant 0 : i32
    return %arg0, %arg1, %c0_i32, %c0_i32_0 : i32, i32, i32, i32
  }
  func.func @transform_1(%arg0: i32, %arg1: i32) -> (i32, i32, i32, i32) {
    %c8_i32 = arith.constant 8 : i32
    %0 = arith.muli %arg1, %c8_i32 : i32
    %c1_i32 = arith.constant 1 : i32
    %1 = arith.subi %0, %c1_i32 : i32
    %c0_i32 = arith.constant 0 : i32
    %2 = arith.maxsi %1, %c0_i32 : i32
    %c0_i32_0 = arith.constant 0 : i32
    %c0_i32_1 = arith.constant 0 : i32
    %c0_i32_2 = arith.constant 0 : i32
    return %arg0, %2, %c0_i32_0, %c0_i32_1 : i32, i32, i32, i32
  }
  func.func @transform_2(%arg0: i32, %arg1: i32) -> (i32, i32, i32, i32) {
    %c1_i32 = arith.constant 1 : i32
    %0 = arith.addi %arg1, %c1_i32 : i32
    %c8_i32 = arith.constant 8 : i32
    %1 = arith.muli %0, %c8_i32 : i32
    %c15_i32 = arith.constant 15 : i32
    %2 = arith.minsi %1, %c15_i32 : i32
    %c0_i32 = arith.constant 0 : i32
    %c0_i32_0 = arith.constant 0 : i32
    %c0_i32_1 = arith.constant 0 : i32
    return %arg0, %2, %c0_i32, %c0_i32_0 : i32, i32, i32, i32
  }
  func.func @transform_3(%arg0: i32, %arg1: i32) -> (i32, i32) {
    %c0_i32 = arith.constant 0 : i32
    %c0_i32_0 = arith.constant 0 : i32
    %c0_i32_1 = arith.constant 0 : i32
    return %c0_i32, %c0_i32_0 : i32, i32
  }
  func.func @transform_4(%arg0: i32, %arg1: i32) -> (i32, i32) {
    %c0_i32 = arith.constant 0 : i32
    %c0_i32_0 = arith.constant 0 : i32
    %c0_i32_1 = arith.constant 0 : i32
    return %c0_i32, %c0_i32_0 : i32, i32
  }
  func.func @transform_5(%arg0: i32, %arg1: i32) -> (i32, i32, i32) {
    %c0_i32 = arith.constant 0 : i32
    %c0_i32_0 = arith.constant 0 : i32
    %c0_i32_1 = arith.constant 0 : i32
    %c0_i32_2 = arith.constant 0 : i32
    return %c0_i32, %c0_i32_0, %c0_i32_1 : i32, i32, i32
  }
  func.func @transform_6(%arg0: i32, %arg1: i32) -> (i32, i32) {
    %c0_i32 = arith.constant 0 : i32
    %c0_i32_0 = arith.constant 0 : i32
    %c0_i32_1 = arith.constant 0 : i32
    return %c0_i32, %c0_i32_0 : i32, i32
  }
  func.func @transform_7(%arg0: i32, %arg1: i32) -> (i32, i32, i32, i32) {
    %c0_i32 = arith.constant 0 : i32
    %c0_i32_0 = arith.constant 0 : i32
    %c0_i32_1 = arith.constant 0 : i32
    return %arg0, %arg1, %c0_i32, %c0_i32_0 : i32, i32, i32, i32
  }
  func.func @transform_8(%arg0: i32, %arg1: i32) -> (i32, i32, i32, i32) {
    %c0_i32 = arith.constant 0 : i32
    %c0_i32_0 = arith.constant 0 : i32
    %c0_i32_1 = arith.constant 0 : i32
    return %arg0, %arg1, %c0_i32, %c0_i32_0 : i32, i32, i32, i32
  }
}

module attributes {stable_mosaic.version = 11 : i64} {
  func.func @_apply_attn_kernel(%arg0: i32, %arg1: i32, %arg2: memref<1x16x16xf32, #tpu.memory_space<vmem>>, %arg3: memref<1x128x16xf32, #tpu.memory_space<vmem>>, %arg4: memref<16x1xf32, #tpu.memory_space<vmem>>, %arg5: memref<1x16x128xf32, #tpu.memory_space<vmem>>) attributes {dimension_semantics = [#tpu.dimension_semantics<parallel>, #tpu.dimension_semantics<parallel>], iteration_bounds = array<i64: 2, 2>, scalar_prefetch = 0 : i64, scratch_operands = 0 : i64, tpu.core_type = #tpu.core_type<tc>, window_params = [{transform_indices = @transform_0, window_bounds = array<i64: 1, 16, 16>}, {transform_indices = @transform_1, window_bounds = array<i64: 1, 128, 16>}, {pipeline_mode = #tpu.pipeline_mode<synchronous>, transform_indices = @transform_2, window_bounds = array<i64: 16, 1>}, {transform_indices = @transform_3, window_bounds = array<i64: 1, 16, 128>}]} {
    %c0 = arith.constant 0 : index
    %c0_0 = arith.constant 0 : index
    %c0_1 = arith.constant 0 : index
    %0 = vector.load %arg2[%c0, %c0_0, %c0_1] : memref<1x16x16xf32, #tpu.memory_space<vmem>>, vector<1x16x16xf32>
    %1 = vector.shape_cast %0 : vector<1x16x16xf32> to vector<16x16xf32>
    %c0_2 = arith.constant 0 : index
    %c0_3 = arith.constant 0 : index
    %c0_4 = arith.constant 0 : index
    %2 = vector.load %arg3[%c0_2, %c0_3, %c0_4] : memref<1x128x16xf32, #tpu.memory_space<vmem>>, vector<1x128x16xf32>
    %3 = vector.shape_cast %2 : vector<1x128x16xf32> to vector<128x16xf32>
    %cst = arith.constant dense<0.000000e+00> : vector<16x128xf32>
    %4 = tpu.matmul %1, %3, %cst {dimension_numbers = #tpu.dot_dimension_numbers<[1], [1], [0], [0], [0, 0, 1, 0], [], []>} : vector<16x16xf32>, vector<128x16xf32>, vector<16x128xf32> -> vector<16x128xf32>
    %c0_5 = arith.constant 0 : index
    %c0_6 = arith.constant 0 : index
    %5 = vector.load %arg4[%c0_5, %c0_6] : memref<16x1xf32, #tpu.memory_space<vmem>>, vector<16x1xf32>
    %6 = vector.broadcast %5 : vector<16x1xf32> to vector<16x128xf32>
    %7 = arith.addf %4, %6 : vector<16x128xf32>
    %c0_7 = arith.constant 0 : index
    %c0_8 = arith.constant 0 : index
    %c0_9 = arith.constant 0 : index
    %8 = vector.load %arg5[%c0_7, %c0_8, %c0_9] : memref<1x16x128xf32, #tpu.memory_space<vmem>>, vector<1x16x128xf32>
    %9 = vector.shape_cast %8 : vector<1x16x128xf32> to vector<16x128xf32>
    %10 = vector.shape_cast %7 : vector<16x128xf32> to vector<1x16x128xf32>
    tpu.vector_store %arg5[%c0_7, %c0_8, %c0_9], %10 {strides = array<i32>} : memref<1x16x128xf32, #tpu.memory_space<vmem>>, vector<1x16x128xf32>,
    return
  }
  func.func @transform_0(%arg0: i32, %arg1: i32) -> (i32, i32, i32) {
    %c0_i32 = arith.constant 0 : i32
    %c0_i32_0 = arith.constant 0 : i32
    %c0_i32_1 = arith.constant 0 : i32
    return %arg0, %c0_i32, %c0_i32_0 : i32, i32, i32
  }
  func.func @transform_1(%arg0: i32, %arg1: i32) -> (i32, i32, i32) {
    %c0_i32 = arith.constant 0 : i32
    %c0_i32_0 = arith.constant 0 : i32
    return %arg0, %arg1, %c0_i32 : i32, i32, i32
  }
  func.func @transform_2(%arg0: i32, %arg1: i32) -> (i32, i32) {
    %c0_i32 = arith.constant 0 : i32
    %c0_i32_0 = arith.constant 0 : i32
    %c0_i32_1 = arith.constant 0 : i32
    return %c0_i32, %c0_i32_0 : i32, i32
  }
  func.func @transform_3(%arg0: i32, %arg1: i32) -> (i32, i32, i32) {
    %c0_i32 = arith.constant 0 : i32
    %c0_i32_0 = arith.constant 0 : i32
    return %arg0, %c0_i32, %arg1 : i32, i32, i32
  }
}

</mosaic_0001>

<llo_original>
// kernel: attention_forward.5
$region0: #{attention_forward.5}
  #allocation0 [shape = 'u32[]', space=smem, size = 0x4, offset = 0x4, fixed_abs, tag = 'smem constant byte address 0x4 - core index']
  #allocation1 [shape = 'u32[144,128]{1,0:T(1,128)}', space=vmem, size = 0x12000, scoped, tag = 'internal scratch']
  %s0 = inlined_call_operand.hbm [shape: f32[2,16,16], index: 0, kind: input, shape index: {}]
  %s1 = inlined_call_operand.hbm [shape: f32[2,256,16], index: 1, kind: input, shape index: {}]
  %s2 = inlined_call_operand.hbm [shape: f32[16,1], index: 2, kind: input, shape index: {}]
  %s3 = inlined_call_operand.hbm [shape: f32[2,16,256], index: 3, kind: output, shape index: {}]
  %s4 = sld [smem:[#allocation0]]
  $region57: #{attention_forward.5} parent=0
    _
  %s6 = ssub.s32 1, %s4
  %s7 = scalar_select 0, %s6, %s4
  $region1: #{attention_forward.5} parent=0
    #allocation2 [shape = 'u8[16384]{0}', space=vmem, size = 0x4000, scoped, tag = 'input window, operand 0']
    #allocation3 [shape = 's32[2]{0}', space=sflag, size = 0x8, scoped, tag = 'scoped memory for attention_forward.5']
    #allocation4 [shape = 's32[2]{0}', space=sflag, size = 0x8, scoped, tag = 'scoped memory for attention_forward.5']
    #allocation5 [shape = 'u8[131072]{0}', space=vmem, size = 0x20000, scoped, tag = 'input window, operand 1']
    #allocation6 [shape = 's32[2]{0}', space=sflag, size = 0x8, scoped, tag = 'scoped memory for attention_forward.5']
    #allocation7 [shape = 'u8[8192]{0}', space=vmem, size = 0x2000, scoped, tag = 'input window, operand 2, single buffered']
    #allocation8 [shape = 'u8[16384]{0}', space=vmem, size = 0x4000, scoped, tag = 'output window, operand 0']
    %8 = vsyncpa [#allocation3], 0
    %s9 = scalar_lea.sflag [#allocation3], 1
    %10 = vsyncpa %s9, 0
    %11 = vsyncpa [#allocation6], 0
    %s12 = scalar_lea.sflag [#allocation6], 1
    %13 = vsyncpa %s12, 0
    %14 = vsyncpa [#allocation4], 0
    %s15 = scalar_lea.sflag [#allocation4], 1
    %16 = vsyncpa %s15, 0
    loop: start=0, step=1, limit=6
    $region2: #{attention_forward.5} parent=1 // loop_pre_header
      _
    $region3: #{attention_forward.5} parent=1 // loop_header
      %s18 = sphi 0, %s22
      %p19 = scmp.ge.s32.totalorder %s18, 6
      %s25 = sphi 0, %s37
      %s26 = sphi 0, %s33
      %s27 = sphi 0, %s25
      %s28 = sphi 0, %s26
      %s29 = sphi 0, %s27
      %s30 = sphi 0, %s28
      %s40 = sphi 0, %s42
      %s43 = sphi 0, %s40
      %s44 = sphi 0, %s43
      %s60 = sphi 0, %s44
      %s68 = sphi 0, %s70
      %s71 = sphi 0, %s68
      %s72 = sphi 0, %s71
      %s88 = sphi 0, %s72
      %s92 = sphi 0, %s92
      %s94 = sphi 0, %s92
      %s95 = sphi 0, %s94
      %s109 = sphi 0, %s95
      %s117 = sphi 0, %s119
      %s120 = sphi 0, %s117
      %s121 = sphi 0, %s120
      %s137 = sphi 0, %s121
    $region4: #{attention_forward.5} parent=1 // loop_header_branch
      %21 = sbr.rel (%p19) target = $region8
    $region5: #{attention_forward.5} parent=1 // loop_body
      %s23 = ssub.s32 %s18, 1
      %s24 = ssub.s32 %s18, 2
      %s31 = sadd.s32 1, %s26
      %p32 = scmp.ge.s32.totalorder %s31, 2
      %s33 = scalar_select %p32, 0, %s31
      %s34 = sadd.s32 1, %s25
      %s35 = scalar_select %p32, %s34, %s25
      %p36 = scmp.ge.s32.totalorder %s35, 2
      %s37 = scalar_select %p36, 0, %s35
      %s38 = ssub.s32 %s25, %s37
      %p39 = scmp.eq.s32.totalorder %s38, 0
      %s41 = sadd.s32 %s40, 1
      %s42 = scalar_select %p39, %s40, %s41
      %p45 = pneg %p39
      %p46 = scmp.eq.s32.totalorder %s18, 3
      %p47 = por %p45, %p46
      %p48 = scmp.ne.s32.totalorder %s40, %s43
      %p49 = scmp.eq.s32.totalorder %s18, 0
      %p50 = por %p48, %p49
      %p51 = scmp.ne.s32.totalorder %s40, %s43
      %p52 = scmp.eq.s32.totalorder %s23, 3
      %p53 = por %p51, %p52
      %p54 = scmp.ne.s32.totalorder %s43, %s44
      %p55 = scmp.eq.s32.totalorder %s23, 0
      %p56 = por %p54, %p55
      %p57 = scmp.ne.s32.totalorder %s43, %s44
      %p58 = scmp.eq.s32.totalorder %s24, 3
      %p59 = por %p57, %p58
      %p61 = scmp.ne.s32.totalorder %s44, %s60
      %p62 = scmp.eq.s32.totalorder %s24, 0
      %p63 = por %p61, %p62
      %s64 = ssub.s32 %s25, %s37
      %s65 = ssub.s32 %s26, %s33
      %s66 = sor.u32 %s64, %s65
      %p67 = scmp.eq.s32.totalorder %s66, 0
      %s69 = sadd.s32 %s68, 1
      %s70 = scalar_select %p67, %s68, %s69
      %p73 = pneg %p67
      %p74 = scmp.eq.s32.totalorder %s18, 3
      %p75 = por %p73, %p74
      %p76 = scmp.ne.s32.totalorder %s68, %s71
      %p77 = scmp.eq.s32.totalorder %s18, 0
      %p78 = por %p76, %p77
      %p79 = scmp.ne.s32.totalorder %s68, %s71
      %p80 = scmp.eq.s32.totalorder %s23, 3
      %p81 = por %p79, %p80
      %p82 = scmp.ne.s32.totalorder %s71, %s72
      %p83 = scmp.eq.s32.totalorder %s23, 0
      %p84 = por %p82, %p83
      %p85 = scmp.ne.s32.totalorder %s71, %s72
      %p86 = scmp.eq.s32.totalorder %s24, 3
      %p87 = por %p85, %p86
      %p89 = scmp.ne.s32.totalorder %s72, %s88
      %p90 = scmp.eq.s32.totalorder %s24, 0
      %p91 = por %p89, %p90
      %s93 = sadd.s32 %s92, 1
      %p96 = scmp.eq.s32.totalorder %s18, 3
      %p97 = scmp.ne.s32.totalorder %s92, %s94
      %p98 = scmp.eq.s32.totalorder %s18, 0
      %p99 = por %p97, %p98
      %p100 = scmp.ne.s32.totalorder %s92, %s94
      %p101 = scmp.eq.s32.totalorder %s23, 3
      %p102 = por %p100, %p101
      %p103 = scmp.ne.s32.totalorder %s94, %s95
      %p104 = scmp.eq.s32.totalorder %s23, 0
      %p105 = por %p103, %p104
      %p106 = scmp.ne.s32.totalorder %s94, %s95
      %p107 = scmp.eq.s32.totalorder %s24, 3
      %p108 = por %p106, %p107
      %p110 = scmp.ne.s32.totalorder %s95, %s109
      %p111 = scmp.eq.s32.totalorder %s24, 0
      %p112 = por %p110, %p111
      %s113 = ssub.s32 %s25, %s37
      %s114 = ssub.s32 %s26, %s33
      %s115 = sor.u32 %s113, %s114
      %p116 = scmp.eq.s32.totalorder %s115, 0
      %s118 = sadd.s32 %s117, 1
      %s119 = scalar_select %p116, %s117, %s118
      %p122 = pneg %p116
      %p123 = scmp.eq.s32.totalorder %s18, 3
      %p124 = por %p122, %p123
      %p125 = scmp.ne.s32.totalorder %s117, %s120
      %p126 = scmp.eq.s32.totalorder %s18, 0
      %p127 = por %p125, %p126
      %p128 = scmp.ne.s32.totalorder %s117, %s120
      %p129 = scmp.eq.s32.totalorder %s23, 3
      %p130 = por %p128, %p129
      %p131 = scmp.ne.s32.totalorder %s120, %s121
      %p132 = scmp.eq.s32.totalorder %s23, 0
      %p133 = por %p131, %p132
      %p134 = scmp.ne.s32.totalorder %s120, %s121
      %p135 = scmp.eq.s32.totalorder %s24, 3
      %p136 = por %p134, %p135
      %p138 = scmp.ne.s32.totalorder %s121, %s137
      %p139 = scmp.eq.s32.totalorder %s24, 0
      %p140 = por %p138, %p139
      %p141 = scmp.le.s32.totalorder 1, %s18
      %p142 = scmp.lt.s32.totalorder %s18, 5
      %p143 = pnand %p141, %p142
      %p144 = pneg %p143
      // Predicated region
      $region9: #{attention_forward.5} parent=5 // pred_check
        _
      $region10: #{attention_forward.5} parent=5 // pred_check_branch
        %146 = sbr.rel (%p143) target = $region12
      $region11: #{attention_forward.5} parent=5 // pred_region
        %s147 = ssub.s32 %s18, 1
        // Predicated region
        $region13: #{attention_forward.5} parent=11 // pred_check
          %p148 = pneg %p105
        $region14: #{attention_forward.5} parent=11 // pred_check_branch
          %150 = sbr.rel (%p148) target = $region16
        $region15: #{attention_forward.5} parent=11 // pred_region
          %s152 = ssub.s32 256, 256
          %153 = vsyncadd [#allocation6], %s152
          %s154 = sshll.u32 [#allocation7], 4
          %s155 = int_to_ptr.vmem [resolvable:$true] %s154
          %160 = dma.hbm_to_vmem [thread:$0]  %s2, 256, %s155, [#allocation6], 128, 128, 8
        $region16: #{attention_forward.5} parent=11 // pred_fallthru
          _
      $region12: #{attention_forward.5} parent=5 // pred_fallthru
        _
      %p161 = scmp.lt.s32.totalorder %s18, 4
      // Predicated region
      $region17: #{attention_forward.5} parent=5 // pred_check
        %p162 = pneg %p161
      $region18: #{attention_forward.5} parent=5 // pred_check_branch
        %164 = sbr.rel (%p162) target = $region20
      $region19: #{attention_forward.5} parent=5 // pred_region
        // Predicated region
        $region21: #{attention_forward.5} parent=19 // pred_check
          %p165 = pneg %p50
        $region22: #{attention_forward.5} parent=19 // pred_check_branch
          %167 = sbr.rel (%p165) target = $region24
        $region23: #{attention_forward.5} parent=19 // pred_region
          %s168 = sand.u32 %s40, 1
          %s169 = scalar_lea.sflag [#allocation3], %s168
          %s170 = sand.u32 %s40, 1
          %s171 = smul.addr %s170, 16
          %s172 = scalar_lea.vmem [#allocation2], %s171
          %s174 = ssub.s32 256, 256
          %175 = vsyncadd %s169, %s174
          %s176 = smul.addr %s25, 2
          %s177 = smul.addr %s176, 128
          %s178 = scalar_lea.hbm %s0, %s177
          %s179 = sshll.u32 %s172, 4
          %s180 = int_to_ptr.vmem [resolvable:$true] %s179
          %185 = dma.hbm_to_vmem [thread:$0]  %s178, 256, %s180, %s169, 128, 128, 8
        $region24: #{attention_forward.5} parent=19 // pred_fallthru
          _
        // Predicated region
        $region25: #{attention_forward.5} parent=19 // pred_check
          %p186 = pneg %p78
        $region26: #{attention_forward.5} parent=19 // pred_check_branch
          %188 = sbr.rel (%p186) target = $region28
        $region27: #{attention_forward.5} parent=19 // pred_region
          %s189 = sand.u32 %s18, 1
          %s190 = scalar_lea.sflag [#allocation6], %s189
          %s191 = sand.u32 %s68, 1
          %s192 = smul.addr %s191, 128
          %s193 = scalar_lea.vmem [#allocation5], %s192
          %s194 = smul.u32 16, %s26
          %s196 = ssub.s32 2048, 2048
          %197 = vsyncadd %s190, %s196
          %s198 = smul.addr %s25, 32
          %s199 = sadd.s32 %s194, %s198
          %s200 = smul.addr %s199, 128
          %s201 = scalar_lea.hbm %s1, %s200
          %s202 = sshll.u32 %s193, 4
          %s203 = int_to_ptr.vmem [resolvable:$true] %s202
          %208 = dma.hbm_to_vmem [thread:$0]  %s201, 2048, %s203, %s190, 128, 128, 8
        $region28: #{attention_forward.5} parent=19 // pred_fallthru
          _
      $region20: #{attention_forward.5} parent=5 // pred_fallthru
        _
      %p209 = scmp.le.s32.totalorder 1, %s18
      %p210 = scmp.lt.s32.totalorder %s18, 5
      %p211 = pnand %p209, %p210
      %p212 = pneg %p211
      // Predicated region
      $region29: #{attention_forward.5} parent=5 // pred_check
        _
      $region30: #{attention_forward.5} parent=5 // pred_check_branch
        %214 = sbr.rel (%p211) target = $region32
      $region31: #{attention_forward.5} parent=5 // pred_region
        %s215 = ssub.s32 %s18, 1
        %s216 = sand.u32 %s43, 1
        %s217 = scalar_lea.sflag [#allocation3], %s216
        %s218 = sand.u32 %s43, 1
        %s219 = smul.addr %s218, 16
        %s220 = scalar_lea.vmem [#allocation2], %s219
        // Predicated region
        $region33: #{attention_forward.5} parent=31 // pred_check
          %p221 = pneg %p56
        $region34: #{attention_forward.5} parent=31 // pred_check_branch
          %223 = sbr.rel (%p221) target = $region36
        $region35: #{attention_forward.5} parent=31 // pred_region
          %224 = dma.done %s217, 256
        $region36: #{attention_forward.5} parent=31 // pred_fallthru
          _
        %s225 = sand.u32 %s23, 1
        %s226 = scalar_lea.sflag [#allocation6], %s225
        %s227 = sand.u32 %s71, 1
        %s228 = smul.addr %s227, 128
        %s229 = scalar_lea.vmem [#allocation5], %s228
        // Predicated region
        $region37: #{attention_forward.5} parent=31 // pred_check
          %p230 = pneg %p84
        $region38: #{attention_forward.5} parent=31 // pred_check_branch
          %232 = sbr.rel (%p230) target = $region40
        $region39: #{attention_forward.5} parent=31 // pred_region
          %233 = dma.done %s226, 2048
        $region40: #{attention_forward.5} parent=31 // pred_fallthru
          _
        // Predicated region
        $region41: #{attention_forward.5} parent=31 // pred_check
          %p234 = pneg %p105
        $region42: #{attention_forward.5} parent=31 // pred_check_branch
          %236 = sbr.rel (%p234) target = $region44
        $region43: #{attention_forward.5} parent=31 // pred_region
          %237 = dma.done [#allocation6], 256
        $region44: #{attention_forward.5} parent=31 // pred_fallthru
          _
        %s238 = sand.u32 %s43, 1
        %s239 = scalar_lea.sflag [#allocation3], %s238
        %s240 = sand.u32 %s43, 1
        %s241 = smul.addr %s240, 16
        %s242 = scalar_lea.vmem [#allocation2], %s241
        %p243 = pneg %p56
        %p244 = pneg %p53
        %s245 = sand.u32 %s23, 1
        %s246 = scalar_lea.sflag [#allocation6], %s245
        %s247 = sand.u32 %s71, 1
        %s248 = smul.addr %s247, 128
        %s249 = scalar_lea.vmem [#allocation5], %s248
        %p250 = pneg %p84
        %p251 = pneg %p81
        %p252 = pneg %p105
        %p253 = pneg %p102
        %p254 = pneg %p133
        %p255 = pneg %p130
        %s256 = sand.u32 %s120, 1
        %s257 = scalar_lea.sflag [#allocation4], %s256
        %s258 = sand.u32 %s120, 1
        %s259 = smul.addr %s258, 16
        %s260 = scalar_lea.vmem [#allocation8], %s259
        %s261 = smul.u32 16, %s28
        %v262 = vld [vmem:[%s220] sm:$0xff]
        %v263 = vld [vmem:[%s220 + $0x8] sm:$0xff]
        %v264 = vld [vmem:[%s229] sm:$0xff]
        %v265 = vld [vmem:[%s229 + $0x8] sm:$0xff]
        %v266 = vld [vmem:[%s229 + $0x10] sm:$0xff]
        %v267 = vld [vmem:[%s229 + $0x18] sm:$0xff]
        %v268 = vld [vmem:[%s229 + $0x20] sm:$0xff]
        %v269 = vld [vmem:[%s229 + $0x28] sm:$0xff]
        %v270 = vld [vmem:[%s229 + $0x30] sm:$0xff]
        %v271 = vld [vmem:[%s229 + $0x38] sm:$0xff]
        %v272 = vld [vmem:[%s229 + $0x40] sm:$0xff]
        %v273 = vld [vmem:[%s229 + $0x48] sm:$0xff]
        %v274 = vld [vmem:[%s229 + $0x50] sm:$0xff]
        %v275 = vld [vmem:[%s229 + $0x58] sm:$0xff]
        %v276 = vld [vmem:[%s229 + $0x60] sm:$0xff]
        %v277 = vld [vmem:[%s229 + $0x68] sm:$0xff]
        %v278 = vld [vmem:[%s229 + $0x70] sm:$0xff]
        %v279 = vld [vmem:[%s229 + $0x78] sm:$0xff]
        %v280 = vld [vmem:[#allocation7] sm:$0xff]
        %v281 = vld [vmem:[#allocation7 + $0x8] sm:$0xff]
        %283 = vset.pattern.permute.xlu0 0
        %284 = vperm.xlu0 %283, %v280
        %v285 = vpop.permute.xlu0 %284
        %288 = vset.pattern.permute.xlu0 0
        %289 = vperm.xlu0 %288, %v281
        %v290 = vpop.permute.xlu0 %289
        %vm292 = vcmask 130048
        %v294 = vsel %vm292, %v262, 0
        %v297 = vsel %vm292, %v263, 0
        %v300 = vsel %vm292, %v264, 0
        %v303 = vsel %vm292, %v265, 0
        %v306 = vsel %vm292, %v266, 0
        %v309 = vsel %vm292, %v267, 0
        %v312 = vsel %vm292, %v268, 0
        %v315 = vsel %vm292, %v269, 0
        %v318 = vsel %vm292, %v270, 0
        %v321 = vsel %vm292, %v271, 0
        %v324 = vsel %vm292, %v272, 0
        %v327 = vsel %vm292, %v273, 0
        %v330 = vsel %vm292, %v274, 0
        %v333 = vsel %vm292, %v275, 0
        %v336 = vsel %vm292, %v276, 0
        %v339 = vsel %vm292, %v277, 0
        %v342 = vsel %vm292, %v278, 0
        %v345 = vsel %vm292, %v279, 0
        %347 = vmatprep.subr.mxu0 0.0
        %348 = vmatpush1.xpose.msra.mxu0 %v300
        %349 = vmatprep.subr.mxu0 0.0
        %350 = vmatpush1.xpose.msra.mxu0 %v303
        %351 = vmatprep.subr.mxu0 0.0
        %352 = vmatpush1.xpose.msra.mxu0 %v306
        %353 = vmatprep.subr.mxu0 0.0
        %354 = vmatpush1.xpose.msra.mxu0 %v309
        %355 = vmatprep.subr.mxu0 0.0
        %356 = vmatpush1.xpose.msra.mxu0 %v312
        %357 = vmatprep.subr.mxu0 0.0
        %358 = vmatpush1.xpose.msra.mxu0 %v315
        %359 = vmatprep.subr.mxu0 0.0
        %360 = vmatpush1.xpose.msra.mxu0 %v318
        %361 = vmatprep.subr.mxu0 0.0
        %362 = vmatpush1.xpose.msra.mxu0 %v321
        %363 = vmatprep.subr.mxu0 0.0
        %364 = vmatpush1.xpose.msra.mxu0 %v324
        %365 = vmatprep.subr.mxu0 0.0
        %366 = vmatpush1.xpose.msra.mxu0 %v327
        %367 = vmatprep.subr.mxu0 0.0
        %368 = vmatpush1.xpose.msra.mxu0 %v330
        %369 = vmatprep.subr.mxu0 0.0
        %370 = vmatpush1.xpose.msra.mxu0 %v333
        %371 = vmatprep.subr.mxu0 0.0
        %372 = vmatpush1.xpose.msra.mxu0 %v336
        %373 = vmatprep.subr.mxu0 0.0
        %374 = vmatpush1.xpose.msra.mxu0 %v339
        %375 = vmatprep.subr.mxu0 0.0
        %376 = vmatpush1.xpose.msra.mxu0 %v342
        %377 = vmatprep.subr.mxu0 0.0
        %378 = vmatpush1.xpose.msra.mxu0 %v345
        %379 = vmatprep.subr.mxu0 0.0
        %380 = vmatpush1.xpose.msra.mxu0 0.0
        %381 = vmatprep.subr.mxu0 0.0
        %382 = vmatpush1.xpose.msra.mxu0 0.0
        %383 = vmatprep.subr.mxu0 0.0
        %384 = vmatpush1.xpose.msra.mxu0 0.0
        %385 = vmatprep.subr.mxu0 0.0
        %386 = vmatpush1.xpose.msra.mxu0 0.0
        %387 = vmatprep.subr.mxu0 0.0
        %388 = vmatpush1.xpose.msra.mxu0 0.0
        %389 = vmatprep.subr.mxu0 0.0
        %390 = vmatpush1.xpose.msra.mxu0 0.0
        %391 = vmatprep.subr.mxu0 0.0
        %392 = vmatpush1.xpose.msra.mxu0 0.0
        %393 = vmatprep.subr.mxu0 0.0
        %394 = vmatpush1.xpose.msra.mxu0 0.0
        %395 = vmatprep.subr.mxu0 0.0
        %396 = vmatpush1.xpose.msra.mxu0 0.0
        %397 = vmatprep.subr.mxu0 0.0
        %398 = vmatpush1.xpose.msra.mxu0 0.0
        %399 = vmatprep.subr.mxu0 0.0
        %400 = vmatpush1.xpose.msra.mxu0 0.0
        %401 = vmatprep.subr.mxu0 0.0
        %402 = vmatpush1.xpose.msra.mxu0 0.0
        %403 = vmatprep.subr.mxu0 0.0
        %404 = vmatpush1.xpose.msra.mxu0 0.0
        %405 = vmatprep.subr.mxu0 0.0
        %406 = vmatpush1.xpose.msra.mxu0 0.0
        %407 = vmatprep.subr.mxu0 0.0
        %408 = vmatpush1.xpose.msra.mxu0 0.0
        %409 = vmatprep.subr.mxu0 0.0
        %410 = vmatpush1.xpose.msra.mxu0 0.0
        %411 = vmatprep.mubr.f32.mxu0 0.0
        %412 = vmatmul.mubr.f32.gmra.mrb[0].mxu0 %v294
        %v413 = vpop.f32.mrb[0].mxu0
        %v414 = vadd.f32 %v285, %v413
        %v415 = vpop.f32.mrb[0].mxu0
        %416 = vmatprep.mubr.f32.mxu0 0.0
        %417 = vmatmul.mubr.f32.gmra.mrb[0].mxu0 %v297
        %v418 = vpop.f32.mrb[0].mxu0
        %v419 = vadd.f32 %v290, %v418
        %v420 = vpop.f32.mrb[0].mxu0
        %421 = vdwg.mxu0
        %422 = vst [vmem:[%s260] sm:$0xff] %v414
        %423 = vst [vmem:[%s260 + $0x8] sm:$0xff] %v419
        %s424 = sand.u32 %s120, 1
        %s425 = scalar_lea.sflag [#allocation4], %s424
        %s426 = sand.u32 %s120, 1
        %s427 = smul.addr %s426, 16
        %s428 = scalar_lea.vmem [#allocation8], %s427
        // Predicated region
        $region45: #{attention_forward.5} parent=31 // pred_check
          %p429 = pneg %p130
        $region46: #{attention_forward.5} parent=31 // pred_check_branch
          %431 = sbr.rel (%p429) target = $region48
        $region47: #{attention_forward.5} parent=31 // pred_region
          %s433 = ssub.s32 256, 256
          %434 = vsyncadd %s425, %s433
          %s435 = smul.addr %s27, 4
          %s436 = sadd.s32 %s28, %s435
          %s437 = smul.addr %s436, 128
          %s438 = scalar_lea.hbm %s3, %s437
          %s439 = sshll.u32 %s428, 4
          %s440 = int_to_ptr.vmem [resolvable:$true] %s439
          %445 = dma.vmem_to_hbm [thread:$0]  %s440, 256, %s438, %s425, 128, 256, 8
        $region48: #{attention_forward.5} parent=31 // pred_fallthru
          _
      $region32: #{attention_forward.5} parent=5 // pred_fallthru
        _
      %p446 = scmp.le.s32.totalorder 2, %s18
      // Predicated region
      $region49: #{attention_forward.5} parent=5 // pred_check
        %p447 = pneg %p446
      $region50: #{attention_forward.5} parent=5 // pred_check_branch
        %449 = sbr.rel (%p447) target = $region52
      $region51: #{attention_forward.5} parent=5 // pred_region
        %s450 = ssub.s32 %s18, 2
        // Predicated region
        $region53: #{attention_forward.5} parent=51 // pred_check
          %p451 = pneg %p136
        $region54: #{attention_forward.5} parent=51 // pred_check_branch
          %453 = sbr.rel (%p451) target = $region56
        $region55: #{attention_forward.5} parent=51 // pred_region
          %s454 = sand.u32 %s121, 1
          %s455 = scalar_lea.sflag [#allocation4], %s454
          %s456 = sand.u32 %s121, 1
          %s457 = smul.addr %s456, 16
          %s458 = scalar_lea.vmem [#allocation8], %s457
          %459 = dma.done %s455, 256
        $region56: #{attention_forward.5} parent=51 // pred_fallthru
          _
      $region52: #{attention_forward.5} parent=5 // pred_fallthru
        _
    $region6: #{attention_forward.5} parent=1 // loop_footer
      %s22 = sadd.s32 1, %s18
    $region7: #{attention_forward.5} parent=1 // loop_footer_branch
      %17 = sbr.rel target = $region3
    $region8: #{attention_forward.5} parent=1 // loop_exit
      _
    %460 = vsyncpa [#allocation3], 1
    %s461 = scalar_lea.sflag [#allocation3], 1
    %462 = vsyncpa %s461, 1
    %463 = vsyncpa [#allocation6], 1
    %s464 = scalar_lea.sflag [#allocation6], 1
    %465 = vsyncpa %s464, 1
    %466 = vsyncpa [#allocation4], 1
    %s467 = scalar_lea.sflag [#allocation4], 1
    %468 = vsyncpa %s467, 1

// kernel: attention_forward.3
$region0: #{attention_forward.3}
  #allocation0 [shape = 'u32[]', space=smem, size = 0x4, offset = 0x4, fixed_abs, tag = 'smem constant byte address 0x4 - core index']
  #allocation1 [shape = 'u32[144,128]{1,0:T(1,128)}', space=vmem, size = 0x12000, scoped, tag = 'internal scratch']
  #allocation2 [shape = 'f32[10,18,48]{2,1,0:T(8,128)}', space=vmem, size = 0x1e000, scoped, tag = 'scratch operand']
  %s0 = inlined_call_operand.hbm [shape: f32[2,16,16,16], index: 0, kind: input, shape index: {}, may-alias: {0,1,2}]
  %s1 = inlined_call_operand.hbm [shape: f32[2,16,16,16], index: 1, kind: input, shape index: {}, may-alias: {0,1,2}]
  %s2 = inlined_call_operand.hbm [shape: f32[2,16,16,16], index: 2, kind: input, shape index: {}, may-alias: {0,1,2}]
  %s3 = inlined_call_operand.hbm [shape: f32[16,48], index: 3, kind: input, shape index: {}]
  %s4 = inlined_call_operand.hbm [shape: f32[1,48], index: 4, kind: input, shape index: {}]
  %s5 = inlined_call_operand.hbm [shape: f32[3,3,48], index: 5, kind: input, shape index: {}]
  %s6 = inlined_call_operand.hbm [shape: f32[1,48], index: 6, kind: input, shape index: {}]
  %s7 = inlined_call_operand.hbm [shape: f32[2,16,16,32], index: 7, kind: output, shape index: {0}]
  %s8 = inlined_call_operand.hbm [shape: f32[2,16,16,16], index: 8, kind: output, shape index: {1}]
  %9 = xla_tuple %s7, %s8
  %s10 = sld [smem:[#allocation0]]
  $region97: #{attention_forward.3} parent=0
    _
  %s12 = ssub.s32 1, %s10
  %s13 = scalar_select 0, %s12, %s10
  $region1: #{attention_forward.3} parent=0
    #allocation3 [shape = 'u8[131072]{0}', space=vmem, size = 0x20000, scoped, tag = 'input window, operand 0']
    #allocation4 [shape = 's32[2]{0}', space=sflag, size = 0x8, scoped, tag = 'scoped memory for attention_forward.3']
    #allocation5 [shape = 's32[2]{0}', space=sflag, size = 0x8, scoped, tag = 'scoped memory for attention_forward.3']
    #allocation6 [shape = 'u8[16384]{0}', space=vmem, size = 0x4000, scoped, tag = 'input window, operand 1']
    #allocation7 [shape = 's32[2]{0}', space=sflag, size = 0x8, scoped, tag = 'scoped memory for attention_forward.3']
    #allocation8 [shape = 'u8[16384]{0}', space=vmem, size = 0x4000, scoped, tag = 'input window, operand 2']
    #allocation9 [shape = 'u8[8192]{0}', space=vmem, size = 0x2000, scoped, tag = 'input window, operand 3, single buffered']
    #allocation10 [shape = 's32[1]{0}', space=sflag, size = 0x4, scoped, tag = 'scoped memory for attention_forward.3']
    #allocation11 [shape = 'u8[512]{0}', space=vmem, size = 0x400, scoped, tag = 'input window, operand 4, single buffered']
    #allocation12 [shape = 'u8[6144]{0}', space=vmem, size = 0x1800, scoped, tag = 'input window, operand 5, single buffered']
    #allocation13 [shape = 's32[1]{0}', space=sflag, size = 0x4, scoped, tag = 'scoped memory for attention_forward.3']
    #allocation14 [shape = 'u8[512]{0}', space=vmem, size = 0x400, scoped, tag = 'input window, operand 6, single buffered']
    #allocation15 [shape = 'u8[131072]{0}', space=vmem, size = 0x20000, scoped, tag = 'output window, operand 0']
    #allocation16 [shape = 'u8[131072]{0}', space=vmem, size = 0x20000, scoped, tag = 'output window, operand 1']
    #allocation17 [shape = 's32[2]{0}', space=sflag, size = 0x8, scoped, tag = 'scoped memory for attention_forward.3']
    %14 = vsyncpa [#allocation4], 0
    %s15 = scalar_lea.sflag [#allocation4], 1
    %16 = vsyncpa %s15, 0
    %17 = vsyncpa [#allocation7], 0
    %s18 = scalar_lea.sflag [#allocation7], 1
    %19 = vsyncpa %s18, 0
    %20 = vsyncpa [#allocation10], 0
    %21 = vsyncpa [#allocation13], 0
    %22 = vsyncpa [#allocation5], 0
    %s23 = scalar_lea.sflag [#allocation5], 1
    %24 = vsyncpa %s23, 0
    %25 = vsyncpa [#allocation17], 0
    %s26 = scalar_lea.sflag [#allocation17], 1
    %27 = vsyncpa %s26, 0
    loop: start=0, step=1, limit=6
    $region2: #{attention_forward.3} parent=1 // loop_pre_header
      _
    $region3: #{attention_forward.3} parent=1 // loop_header
      %s29 = sphi 0, %s33
      %p30 = scmp.ge.s32.totalorder %s29, 6
      %s36 = sphi 0, %s48
      %s37 = sphi 0, %s44
      %s38 = sphi 0, %s36
      %s39 = sphi 0, %s37
      %s40 = sphi 0, %s38
      %s41 = sphi 0, %s39
      %s53 = sphi 0, %s55
      %s56 = sphi 0, %s53
      %s57 = sphi 0, %s56
      %s73 = sphi 0, %s57
      %s89 = sphi 0, %s91
      %s92 = sphi 0, %s89
      %s93 = sphi 0, %s92
      %s109 = sphi 0, %s93
      %s125 = sphi 0, %s127
      %s128 = sphi 0, %s125
      %s129 = sphi 0, %s128
      %s145 = sphi 0, %s129
      %s149 = sphi 0, %s149
      %s151 = sphi 0, %s149
      %s152 = sphi 0, %s151
      %s166 = sphi 0, %s152
      %s170 = sphi 0, %s170
      %s172 = sphi 0, %s170
      %s173 = sphi 0, %s172
      %s187 = sphi 0, %s173
      %s191 = sphi 0, %s191
      %s193 = sphi 0, %s191
      %s194 = sphi 0, %s193
      %s208 = sphi 0, %s194
      %s212 = sphi 0, %s212
      %s214 = sphi 0, %s212
      %s215 = sphi 0, %s214
      %s229 = sphi 0, %s215
      %s237 = sphi 0, %s239
      %s240 = sphi 0, %s237
      %s241 = sphi 0, %s240
      %s257 = sphi 0, %s241
      %s265 = sphi 0, %s267
      %s268 = sphi 0, %s265
      %s269 = sphi 0, %s268
      %s285 = sphi 0, %s269
    $region4: #{attention_forward.3} parent=1 // loop_header_branch
      %32 = sbr.rel (%p30) target = $region8
    $region5: #{attention_forward.3} parent=1 // loop_body
      %s34 = ssub.s32 %s29, 1
      %s35 = ssub.s32 %s29, 2
      %s42 = sadd.s32 1, %s37
      %p43 = scmp.ge.s32.totalorder %s42, 2
      %s44 = scalar_select %p43, 0, %s42
      %s45 = sadd.s32 1, %s36
      %s46 = scalar_select %p43, %s45, %s36
      %p47 = scmp.ge.s32.totalorder %s46, 2
      %s48 = scalar_select %p47, 0, %s46
      %s49 = ssub.s32 %s36, %s48
      %s50 = ssub.s32 %s37, %s44
      %s51 = sor.u32 %s49, %s50
      %p52 = scmp.eq.s32.totalorder %s51, 0
      %s54 = sadd.s32 %s53, 1
      %s55 = scalar_select %p52, %s53, %s54
      %p58 = pneg %p52
      %p59 = scmp.eq.s32.totalorder %s29, 3
      %p60 = por %p58, %p59
      %p61 = scmp.ne.s32.totalorder %s53, %s56
      %p62 = scmp.eq.s32.totalorder %s29, 0
      %p63 = por %p61, %p62
      %p64 = scmp.ne.s32.totalorder %s53, %s56
      %p65 = scmp.eq.s32.totalorder %s34, 3
      %p66 = por %p64, %p65
      %p67 = scmp.ne.s32.totalorder %s56, %s57
      %p68 = scmp.eq.s32.totalorder %s34, 0
      %p69 = por %p67, %p68
      %p70 = scmp.ne.s32.totalorder %s56, %s57
      %p71 = scmp.eq.s32.totalorder %s35, 3
      %p72 = por %p70, %p71
      %p74 = scmp.ne.s32.totalorder %s57, %s73
      %p75 = scmp.eq.s32.totalorder %s35, 0
      %p76 = por %p74, %p75
      %s77 = smul.u32 %s37, 8
      %s78 = ssub.s32 %s77, 1
      %p79 = scmp.gt.s32.totalorder %s78, 0
      %s80 = scalar_select %p79, %s78, 0
      %s81 = smul.u32 %s44, 8
      %s82 = ssub.s32 %s81, 1
      %p83 = scmp.gt.s32.totalorder %s82, 0
      %s84 = scalar_select %p83, %s82, 0
      %s85 = ssub.s32 %s36, %s48
      %s86 = ssub.s32 %s80, %s84
      %s87 = sor.u32 %s85, %s86
      %p88 = scmp.eq.s32.totalorder %s87, 0
      %s90 = sadd.s32 %s89, 1
      %s91 = scalar_select %p88, %s89, %s90
      %p94 = pneg %p88
      %p95 = scmp.eq.s32.totalorder %s29, 3
      %p96 = por %p94, %p95
      %p97 = scmp.ne.s32.totalorder %s89, %s92
      %p98 = scmp.eq.s32.totalorder %s29, 0
      %p99 = por %p97, %p98
      %p100 = scmp.ne.s32.totalorder %s89, %s92
      %p101 = scmp.eq.s32.totalorder %s34, 3
      %p102 = por %p100, %p101
      %p103 = scmp.ne.s32.totalorder %s92, %s93
      %p104 = scmp.eq.s32.totalorder %s34, 0
      %p105 = por %p103, %p104
      %p106 = scmp.ne.s32.totalorder %s92, %s93
      %p107 = scmp.eq.s32.totalorder %s35, 3
      %p108 = por %p106, %p107
      %p110 = scmp.ne.s32.totalorder %s93, %s109
      %p111 = scmp.eq.s32.totalorder %s35, 0
      %p112 = por %p110, %p111
      %s113 = sadd.s32 %s37, 1
      %s114 = smul.u32 %s113, 8
      %p115 = scmp.lt.s32.totalorder %s114, 15
      %s116 = scalar_select %p115, %s114, 15
      %s117 = sadd.s32 %s44, 1
      %s118 = smul.u32 %s117, 8
      %p119 = scmp.lt.s32.totalorder %s118, 15
      %s120 = scalar_select %p119, %s118, 15
      %s121 = ssub.s32 %s36, %s48
      %s122 = ssub.s32 %s116, %s120
      %s123 = sor.u32 %s121, %s122
      %p124 = scmp.eq.s32.totalorder %s123, 0
      %s126 = sadd.s32 %s125, 1
      %s127 = scalar_select %p124, %s125, %s126
      %p130 = pneg %p124
      %p131 = scmp.eq.s32.totalorder %s29, 3
      %p132 = por %p130, %p131
      %p133 = scmp.ne.s32.totalorder %s125, %s128
      %p134 = scmp.eq.s32.totalorder %s29, 0
      %p135 = por %p133, %p134
      %p136 = scmp.ne.s32.totalorder %s125, %s128
      %p137 = scmp.eq.s32.totalorder %s34, 3
      %p138 = por %p136, %p137
      %p139 = scmp.ne.s32.totalorder %s128, %s129
      %p140 = scmp.eq.s32.totalorder %s34, 0
      %p141 = por %p139, %p140
      %p142 = scmp.ne.s32.totalorder %s128, %s129
      %p143 = scmp.eq.s32.totalorder %s35, 3
      %p144 = por %p142, %p143
      %p146 = scmp.ne.s32.totalorder %s129, %s145
      %p147 = scmp.eq.s32.totalorder %s35, 0
      %p148 = por %p146, %p147
      %s150 = sadd.s32 %s149, 1
      %p153 = scmp.eq.s32.totalorder %s29, 3
      %p154 = scmp.ne.s32.totalorder %s149, %s151
      %p155 = scmp.eq.s32.totalorder %s29, 0
      %p156 = por %p154, %p155
      %p157 = scmp.ne.s32.totalorder %s149, %s151
      %p158 = scmp.eq.s32.totalorder %s34, 3
      %p159 = por %p157, %p158
      %p160 = scmp.ne.s32.totalorder %s151, %s152
      %p161 = scmp.eq.s32.totalorder %s34, 0
      %p162 = por %p160, %p161
      %p163 = scmp.ne.s32.totalorder %s151, %s152
      %p164 = scmp.eq.s32.totalorder %s35, 3
      %p165 = por %p163, %p164
      %p167 = scmp.ne.s32.totalorder %s152, %s166
      %p168 = scmp.eq.s32.totalorder %s35, 0
      %p169 = por %p167, %p168
      %s171 = sadd.s32 %s170, 1
      %p174 = scmp.eq.s32.totalorder %s29, 3
      %p175 = scmp.ne.s32.totalorder %s170, %s172
      %p176 = scmp.eq.s32.totalorder %s29, 0
      %p177 = por %p175, %p176
      %p178 = scmp.ne.s32.totalorder %s170, %s172
      %p179 = scmp.eq.s32.totalorder %s34, 3
      %p180 = por %p178, %p179
      %p181 = scmp.ne.s32.totalorder %s172, %s173
      %p182 = scmp.eq.s32.totalorder %s34, 0
      %p183 = por %p181, %p182
      %p184 = scmp.ne.s32.totalorder %s172, %s173
      %p185 = scmp.eq.s32.totalorder %s35, 3
      %p186 = por %p184, %p185
      %p188 = scmp.ne.s32.totalorder %s173, %s187
      %p189 = scmp.eq.s32.totalorder %s35, 0
      %p190 = por %p188, %p189
      %s192 = sadd.s32 %s191, 1
      %p195 = scmp.eq.s32.totalorder %s29, 3
      %p196 = scmp.ne.s32.totalorder %s191, %s193
      %p197 = scmp.eq.s32.totalorder %s29, 0
      %p198 = por %p196, %p197
      %p199 = scmp.ne.s32.totalorder %s191, %s193
      %p200 = scmp.eq.s32.totalorder %s34, 3
      %p201 = por %p199, %p200
      %p202 = scmp.ne.s32.totalorder %s193, %s194
      %p203 = scmp.eq.s32.totalorder %s34, 0
      %p204 = por %p202, %p203
      %p205 = scmp.ne.s32.totalorder %s193, %s194
      %p206 = scmp.eq.s32.totalorder %s35, 3
      %p207 = por %p205, %p206
      %p209 = scmp.ne.s32.totalorder %s194, %s208
      %p210 = scmp.eq.s32.totalorder %s35, 0
      %p211 = por %p209, %p210
      %s213 = sadd.s32 %s212, 1
      %p216 = scmp.eq.s32.totalorder %s29, 3
      %p217 = scmp.ne.s32.totalorder %s212, %s214
      %p218 = scmp.eq.s32.totalorder %s29, 0
      %p219 = por %p217, %p218
      %p220 = scmp.ne.s32.totalorder %s212, %s214
      %p221 = scmp.eq.s32.totalorder %s34, 3
      %p222 = por %p220, %p221
      %p223 = scmp.ne.s32.totalorder %s214, %s215
      %p224 = scmp.eq.s32.totalorder %s34, 0
      %p225 = por %p223, %p224
      %p226 = scmp.ne.s32.totalorder %s214, %s215
      %p227 = scmp.eq.s32.totalorder %s35, 3
      %p228 = por %p226, %p227
      %p230 = scmp.ne.s32.totalorder %s215, %s229
      %p231 = scmp.eq.s32.totalorder %s35, 0
      %p232 = por %p230, %p231
      %s233 = ssub.s32 %s36, %s48
      %s234 = ssub.s32 %s37, %s44
      %s235 = sor.u32 %s233, %s234
      %p236 = scmp.eq.s32.totalorder %s235, 0
      %s238 = sadd.s32 %s237, 1
      %s239 = scalar_select %p236, %s237, %s238
      %p242 = pneg %p236
      %p243 = scmp.eq.s32.totalorder %s29, 3
      %p244 = por %p242, %p243
      %p245 = scmp.ne.s32.totalorder %s237, %s240
      %p246 = scmp.eq.s32.totalorder %s29, 0
      %p247 = por %p245, %p246
      %p248 = scmp.ne.s32.totalorder %s237, %s240
      %p249 = scmp.eq.s32.totalorder %s34, 3
      %p250 = por %p248, %p249
      %p251 = scmp.ne.s32.totalorder %s240, %s241
      %p252 = scmp.eq.s32.totalorder %s34, 0
      %p253 = por %p251, %p252
      %p254 = scmp.ne.s32.totalorder %s240, %s241
      %p255 = scmp.eq.s32.totalorder %s35, 3
      %p256 = por %p254, %p255
      %p258 = scmp.ne.s32.totalorder %s241, %s257
      %p259 = scmp.eq.s32.totalorder %s35, 0
      %p260 = por %p258, %p259
      %s261 = ssub.s32 %s36, %s48
      %s262 = ssub.s32 %s37, %s44
      %s263 = sor.u32 %s261, %s262
      %p264 = scmp.eq.s32.totalorder %s263, 0
      %s266 = sadd.s32 %s265, 1
      %s267 = scalar_select %p264, %s265, %s266
      %p270 = pneg %p264
      %p271 = scmp.eq.s32.totalorder %s29, 3
      %p272 = por %p270, %p271
      %p273 = scmp.ne.s32.totalorder %s265, %s268
      %p274 = scmp.eq.s32.totalorder %s29, 0
      %p275 = por %p273, %p274
      %p276 = scmp.ne.s32.totalorder %s265, %s268
      %p277 = scmp.eq.s32.totalorder %s34, 3
      %p278 = por %p276, %p277
      %p279 = scmp.ne.s32.totalorder %s268, %s269
      %p280 = scmp.eq.s32.totalorder %s34, 0
      %p281 = por %p279, %p280
      %p282 = scmp.ne.s32.totalorder %s268, %s269
      %p283 = scmp.eq.s32.totalorder %s35, 3
      %p284 = por %p282, %p283
      %p286 = scmp.ne.s32.totalorder %s269, %s285
      %p287 = scmp.eq.s32.totalorder %s35, 0
      %p288 = por %p286, %p287
      %p289 = scmp.le.s32.totalorder 1, %s29
      %p290 = scmp.lt.s32.totalorder %s29, 5
      %p291 = pnand %p289, %p290
      %p292 = pneg %p291
      // Predicated region
      $region9: #{attention_forward.3} parent=5 // pred_check
        _
      $region10: #{attention_forward.3} parent=5 // pred_check_branch
        %294 = sbr.rel (%p291) target = $region12
      $region11: #{attention_forward.3} parent=5 // pred_region
        %s295 = ssub.s32 %s29, 1
        // Predicated region
        $region13: #{attention_forward.3} parent=11 // pred_check
          %p296 = pneg %p162
        $region14: #{attention_forward.3} parent=11 // pred_check_branch
          %298 = sbr.rel (%p296) target = $region16
        $region15: #{attention_forward.3} parent=11 // pred_region
          %s300 = ssub.s32 256, 256
          %301 = vsyncadd [#allocation10], %s300
          %s302 = sshll.u32 [#allocation9], 4
          %s303 = int_to_ptr.vmem [resolvable:$true] %s302
          %308 = dma.hbm_to_vmem [thread:$0]  %s3, 256, %s303, [#allocation10], 128, 128, 8
        $region16: #{attention_forward.3} parent=11 // pred_fallthru
          _
        // Predicated region
        $region17: #{attention_forward.3} parent=11 // pred_check
          %p309 = pneg %p183
        $region18: #{attention_forward.3} parent=11 // pred_check_branch
          %311 = sbr.rel (%p309) target = $region20
        $region19: #{attention_forward.3} parent=11 // pred_region
          %s313 = ssub.s32 16, 16
          %314 = vsyncadd [#allocation10], %s313
          %s316 = sshll.u32 [#allocation11], 4
          %s317 = int_to_ptr.vmem [resolvable:$true] %s316
          %319 = dma.hbm_to_vmem [thread:$0]  %s4, 16, %s317, [#allocation10]
        $region20: #{attention_forward.3} parent=11 // pred_fallthru
          _
        // Predicated region
        $region21: #{attention_forward.3} parent=11 // pred_check
          %p320 = pneg %p204
        $region22: #{attention_forward.3} parent=11 // pred_check_branch
          %322 = sbr.rel (%p320) target = $region24
        $region23: #{attention_forward.3} parent=11 // pred_region
          %s324 = ssub.s32 192, 192
          %325 = vsyncadd [#allocation13], %s324
          %s326 = sshll.u32 [#allocation12], 4
          %s327 = int_to_ptr.vmem [resolvable:$true] %s326
          %332 = dma.hbm_to_vmem [thread:$0]  %s5, 192, %s327, [#allocation13], 64, 64, 4
        $region24: #{attention_forward.3} parent=11 // pred_fallthru
          _
        // Predicated region
        $region25: #{attention_forward.3} parent=11 // pred_check
          %p333 = pneg %p225
        $region26: #{attention_forward.3} parent=11 // pred_check_branch
          %335 = sbr.rel (%p333) target = $region28
        $region27: #{attention_forward.3} parent=11 // pred_region
          %s337 = ssub.s32 16, 16
          %338 = vsyncadd [#allocation13], %s337
          %s340 = sshll.u32 [#allocation14], 4
          %s341 = int_to_ptr.vmem [resolvable:$true] %s340
          %343 = dma.hbm_to_vmem [thread:$0]  %s6, 16, %s341, [#allocation13]
        $region28: #{attention_forward.3} parent=11 // pred_fallthru
          _
      $region12: #{attention_forward.3} parent=5 // pred_fallthru
        _
      %p344 = scmp.lt.s32.totalorder %s29, 4
      // Predicated region
      $region29: #{attention_forward.3} parent=5 // pred_check
        %p345 = pneg %p344
      $region30: #{attention_forward.3} parent=5 // pred_check_branch
        %347 = sbr.rel (%p345) target = $region32
      $region31: #{attention_forward.3} parent=5 // pred_region
        // Predicated region
        $region33: #{attention_forward.3} parent=31 // pred_check
          %p348 = pneg %p63
        $region34: #{attention_forward.3} parent=31 // pred_check_branch
          %350 = sbr.rel (%p348) target = $region36
        $region35: #{attention_forward.3} parent=31 // pred_region
          %s351 = sand.u32 %s53, 1
          %s352 = scalar_lea.sflag [#allocation4], %s351
          %s353 = sand.u32 %s53, 1
          %s354 = smul.addr %s353, 128
          %s355 = scalar_lea.vmem [#allocation3], %s354
          %s356 = smul.u32 8, %s37
          %s358 = ssub.s32 2048, 2048
          %359 = vsyncadd %s352, %s358
          %s360 = smul.addr %s356, 2
          %s361 = smul.addr %s36, 32
          %s362 = sadd.s32 %s360, %s361
          %s363 = smul.addr %s362, 128
          %s364 = scalar_lea.hbm %s0, %s363
          %s365 = sshll.u32 %s355, 4
          %s366 = int_to_ptr.vmem [resolvable:$true] %s365
          %371 = dma.hbm_to_vmem [thread:$0]  %s364, 2048, %s366, %s352, 128, 128, 8
        $region36: #{attention_forward.3} parent=31 // pred_fallthru
          _
        // Predicated region
        $region37: #{attention_forward.3} parent=31 // pred_check
          %p372 = pneg %p99
        $region38: #{attention_forward.3} parent=31 // pred_check_branch
          %374 = sbr.rel (%p372) target = $region40
        $region39: #{attention_forward.3} parent=31 // pred_region
          %s375 = sand.u32 %s29, 1
          %s376 = scalar_lea.sflag [#allocation7], %s375
          %s377 = sand.u32 %s89, 1
          %s378 = smul.addr %s377, 16
          %s379 = scalar_lea.vmem [#allocation6], %s378
          %s380 = smul.u32 %s37, 8
          %s381 = ssub.s32 %s380, 1
          %p382 = scmp.gt.s32.totalorder %s381, 0
          %s383 = scalar_select %p382, %s381, 0
          %s385 = ssub.s32 256, 256
          %386 = vsyncadd %s376, %s385
          %s387 = smul.addr %s383, 2
          %s388 = smul.addr %s36, 32
          %s389 = sadd.s32 %s387, %s388
          %s390 = smul.addr %s389, 128
          %s391 = scalar_lea.hbm %s1, %s390
          %s392 = sshll.u32 %s379, 4
          %s393 = int_to_ptr.vmem [resolvable:$true] %s392
          %398 = dma.hbm_to_vmem [thread:$0]  %s391, 256, %s393, %s376, 128, 128, 8
        $region40: #{attention_forward.3} parent=31 // pred_fallthru
          _
        // Predicated region
        $region41: #{attention_forward.3} parent=31 // pred_check
          %p399 = pneg %p135
        $region42: #{attention_forward.3} parent=31 // pred_check_branch
          %401 = sbr.rel (%p399) target = $region44
        $region43: #{attention_forward.3} parent=31 // pred_region
          %s402 = sand.u32 %s29, 1
          %s403 = scalar_lea.sflag [#allocation7], %s402
          %s404 = sand.u32 %s125, 1
          %s405 = smul.addr %s404, 16
          %s406 = scalar_lea.vmem [#allocation8], %s405
          %s407 = sadd.s32 %s37, 1
          %s408 = smul.u32 %s407, 8
          %p409 = scmp.lt.s32.totalorder %s408, 15
          %s410 = scalar_select %p409, %s408, 15
          %s412 = ssub.s32 256, 256
          %413 = vsyncadd %s403, %s412
          %s414 = smul.addr %s410, 2
          %s415 = smul.addr %s36, 32
          %s416 = sadd.s32 %s414, %s415
          %s417 = smul.addr %s416, 128
          %s418 = scalar_lea.hbm %s2, %s417
          %s419 = sshll.u32 %s406, 4
          %s420 = int_to_ptr.vmem [resolvable:$true] %s419
          %425 = dma.hbm_to_vmem [thread:$0]  %s418, 256, %s420, %s403, 128, 128, 8
        $region44: #{attention_forward.3} parent=31 // pred_fallthru
          _
      $region32: #{attention_forward.3} parent=5 // pred_fallthru
        _
      %p426 = scmp.le.s32.totalorder 1, %s29
      %p427 = scmp.lt.s32.totalorder %s29, 5
      %p428 = pnand %p426, %p427
      %p429 = pneg %p428
      // Predicated region
      $region45: #{attention_forward.3} parent=5 // pred_check
        _
      $region46: #{attention_forward.3} parent=5 // pred_check_branch
        %431 = sbr.rel (%p428) target = $region48
      $region47: #{attention_forward.3} parent=5 // pred_region
        %s432 = ssub.s32 %s29, 1
        %s433 = sand.u32 %s56, 1
        %s434 = scalar_lea.sflag [#allocation4], %s433
        %s435 = sand.u32 %s56, 1
        %s436 = smul.addr %s435, 128
        %s437 = scalar_lea.vmem [#allocation3], %s436
        // Predicated region
        $region49: #{attention_forward.3} parent=47 // pred_check
          %p438 = pneg %p69
        $region50: #{attention_forward.3} parent=47 // pred_check_branch
          %440 = sbr.rel (%p438) target = $region52
        $region51: #{attention_forward.3} parent=47 // pred_region
          %441 = dma.done %s434, 2048
        $region52: #{attention_forward.3} parent=47 // pred_fallthru
          _
        %s442 = sand.u32 %s34, 1
        %s443 = scalar_lea.sflag [#allocation7], %s442
        %s444 = sand.u32 %s92, 1
        %s445 = smul.addr %s444, 16
        %s446 = scalar_lea.vmem [#allocation6], %s445
        // Predicated region
        $region53: #{attention_forward.3} parent=47 // pred_check
          %p447 = pneg %p105
        $region54: #{attention_forward.3} parent=47 // pred_check_branch
          %449 = sbr.rel (%p447) target = $region56
        $region55: #{attention_forward.3} parent=47 // pred_region
          %450 = dma.done %s443, 256
        $region56: #{attention_forward.3} parent=47 // pred_fallthru
          _
        %s451 = sand.u32 %s34, 1
        %s452 = scalar_lea.sflag [#allocation7], %s451
        %s453 = sand.u32 %s128, 1
        %s454 = smul.addr %s453, 16
        %s455 = scalar_lea.vmem [#allocation8], %s454
        // Predicated region
        $region57: #{attention_forward.3} parent=47 // pred_check
          %p456 = pneg %p141
        $region58: #{attention_forward.3} parent=47 // pred_check_branch
          %458 = sbr.rel (%p456) target = $region60
        $region59: #{attention_forward.3} parent=47 // pred_region
          %459 = dma.done %s452, 256
        $region60: #{attention_forward.3} parent=47 // pred_fallthru
          _
        // Predicated region
        $region61: #{attention_forward.3} parent=47 // pred_check
          %p460 = pneg %p162
        $region62: #{attention_forward.3} parent=47 // pred_check_branch
          %462 = sbr.rel (%p460) target = $region64
        $region63: #{attention_forward.3} parent=47 // pred_region
          %463 = dma.done [#allocation10], 256
        $region64: #{attention_forward.3} parent=47 // pred_fallthru
          _
        // Predicated region
        $region65: #{attention_forward.3} parent=47 // pred_check
          %p464 = pneg %p183
        $region66: #{attention_forward.3} parent=47 // pred_check_branch
          %466 = sbr.rel (%p464) target = $region68
        $region67: #{attention_forward.3} parent=47 // pred_region
          %467 = dma.done [#allocation10], 16
        $region68: #{attention_forward.3} parent=47 // pred_fallthru
          _
        // Predicated region
        $region69: #{attention_forward.3} parent=47 // pred_check
          %p468 = pneg %p204
        $region70: #{attention_forward.3} parent=47 // pred_check_branch
          %470 = sbr.rel (%p468) target = $region72
        $region71: #{attention_forward.3} parent=47 // pred_region
          %471 = dma.done [#allocation13], 192
        $region72: #{attention_forward.3} parent=47 // pred_fallthru
          _
        // Predicated region
        $region73: #{attention_forward.3} parent=47 // pred_check
          %p472 = pneg %p225
        $region74: #{attention_forward.3} parent=47 // pred_check_branch
          %474 = sbr.rel (%p472) target = $region76
        $region75: #{attention_forward.3} parent=47 // pred_region
          %475 = dma.done [#allocation13], 16
        $region76: #{attention_forward.3} parent=47 // pred_fallthru
          _
        %s476 = sand.u32 %s56, 1
        %s477 = scalar_lea.sflag [#allocation4], %s476
        %s478 = sand.u32 %s56, 1
        %s479 = smul.addr %s478, 128
        %s480 = scalar_lea.vmem [#allocation3], %s479
        %p481 = pneg %p69
        %p482 = pneg %p66
        %s483 = sand.u32 %s34, 1
        %s484 = scalar_lea.sflag [#allocation7], %s483
        %s485 = sand.u32 %s92, 1
        %s486 = smul.addr %s485, 16
        %s487 = scalar_lea.vmem [#allocation6], %s486
        %p488 = pneg %p105
        %p489 = pneg %p102
        %s490 = sand.u32 %s34, 1
        %s491 = scalar_lea.sflag [#allocation7], %s490
        %s492 = sand.u32 %s128, 1
        %s493 = smul.addr %s492, 16
        %s494 = scalar_lea.vmem [#allocation8], %s493
        %p495 = pneg %p141
        %p496 = pneg %p138
        %p497 = pneg %p162
        %p498 = pneg %p159
        %p499 = pneg %p183
        %p500 = pneg %p180
        %p501 = pneg %p204
        %p502 = pneg %p201
        %p503 = pneg %p225
        %p504 = pneg %p222
        %p505 = pneg %p253
        %p506 = pneg %p250
        %s507 = sand.u32 %s240, 1
        %s508 = scalar_lea.sflag [#allocation5], %s507
        %s509 = sand.u32 %s240, 1
        %s510 = smul.addr %s509, 128
        %s511 = scalar_lea.vmem [#allocation15], %s510
        %p512 = pneg %p281
        %p513 = pneg %p278
        %s514 = sand.u32 %s268, 1
        %s515 = scalar_lea.sflag [#allocation17], %s514
        %s516 = sand.u32 %s268, 1
        %s517 = smul.addr %s516, 128
        %s518 = scalar_lea.vmem [#allocation16], %s517
        %s519 = smul.u32 8, %s39
        %s520 = smul.u32 %s39, 8
        %s521 = ssub.s32 %s520, 1
        %p522 = scmp.gt.s32.totalorder %s521, 0
        %s523 = scalar_select %p522, %s521, 0
        %s524 = sadd.s32 %s39, 1
        %s525 = smul.u32 %s524, 8
        %p526 = scmp.lt.s32.totalorder %s525, 15
        %s527 = scalar_select %p526, %s525, 15
        %s528 = smul.u32 8, %s39
        %s529 = smul.u32 8, %s39
        %v530 = vld [vmem:[#allocation9] sm:$0xff]
        %v531 = vld [vmem:[#allocation9 + $0x8] sm:$0xff]
        %v532 = vld [vmem:[#allocation11] sm:$0x1]
        %v533 = vld [vmem:[%s437] sm:$0xff]
        %v534 = vld [vmem:[%s437 + $0x8] sm:$0xff]
        %v535 = vld [vmem:[%s437 + $0x10] sm:$0xff]
        %v536 = vld [vmem:[%s437 + $0x18] sm:$0xff]
        %v537 = vld [vmem:[%s437 + $0x20] sm:$0xff]
        %v538 = vld [vmem:[%s437 + $0x28] sm:$0xff]
        %v539 = vld [vmem:[%s437 + $0x30] sm:$0xff]
        %v540 = vld [vmem:[%s437 + $0x38] sm:$0xff]
        %v541 = vld [vmem:[%s437 + $0x40] sm:$0xff]
        %v542 = vld [vmem:[%s437 + $0x48] sm:$0xff]
        %v543 = vld [vmem:[%s437 + $0x50] sm:$0xff]
        %v544 = vld [vmem:[%s437 + $0x58] sm:$0xff]
        %v545 = vld [vmem:[%s437 + $0x60] sm:$0xff]
        %v546 = vld [vmem:[%s437 + $0x68] sm:$0xff]
        %v547 = vld [vmem:[%s437 + $0x70] sm:$0xff]
        %v548 = vld [vmem:[%s437 + $0x78] sm:$0xff]
        %v550 = vlaneseq
        %v551 = vshrl.u32 %v550, 7
        %v552 = vsub.s32 0, %v551
        %v553 = vrot.slane %v532, %v552
        %vm555 = vcmask 130048
        %v557 = vsel %vm555, %v533, 0
        %v560 = vsel %vm555, %v534, 0
        %v563 = vsel %vm555, %v535, 0
        %v566 = vsel %vm555, %v536, 0
        %v569 = vsel %vm555, %v537, 0
        %v572 = vsel %vm555, %v538, 0
        %v575 = vsel %vm555, %v539, 0
        %v578 = vsel %vm555, %v540, 0
        %v581 = vsel %vm555, %v541, 0
        %v584 = vsel %vm555, %v542, 0
        %v587 = vsel %vm555, %v543, 0
        %v590 = vsel %vm555, %v544, 0
        %v593 = vsel %vm555, %v545, 0
        %v596 = vsel %vm555, %v546, 0
        %v599 = vsel %vm555, %v547, 0
        %v602 = vsel %vm555, %v548, 0
        %604 = vmatprep.subr.mxu0 0.0
        %605 = vmatpush1.msra.mxu0 %v530
        %606 = vmatprep.subr.mxu0 0.0
        %607 = vmatpush1.msra.mxu0 %v531
        %608 = vmatprep.subr.mxu0 0.0
        %609 = vmatpush1.msra.mxu0 0.0
        %610 = vmatprep.subr.mxu0 0.0
        %611 = vmatpush1.msra.mxu0 0.0
        %612 = vmatprep.subr.mxu0 0.0
        %613 = vmatpush1.msra.mxu0 0.0
        %614 = vmatprep.subr.mxu0 0.0
        %615 = vmatpush1.msra.mxu0 0.0
        %616 = vmatprep.subr.mxu0 0.0
        %617 = vmatpush1.msra.mxu0 0.0
        %618 = vmatprep.subr.mxu0 0.0
        %619 = vmatpush1.msra.mxu0 0.0
        %620 = vmatprep.subr.mxu0 0.0
        %621 = vmatpush1.msra.mxu0 0.0
        %622 = vmatprep.subr.mxu0 0.0
        %623 = vmatpush1.msra.mxu0 0.0
        %624 = vmatprep.subr.mxu0 0.0
        %625 = vmatpush1.msra.mxu0 0.0
        %626 = vmatprep.subr.mxu0 0.0
        %627 = vmatpush1.msra.mxu0 0.0
        %628 = vmatprep.subr.mxu0 0.0
        %629 = vmatpush1.msra.mxu0 0.0
        %630 = vmatprep.subr.mxu0 0.0
        %631 = vmatpush1.msra.mxu0 0.0
        %632 = vmatprep.subr.mxu0 0.0
        %633 = vmatpush1.msra.mxu0 0.0
        %634 = vmatprep.subr.mxu0 0.0
        %635 = vmatpush1.msra.mxu0 0.0
        %636 = vmatprep.subr.mxu0 0.0
        %637 = vmatpush1.msra.mxu0 0.0
        %638 = vmatprep.subr.mxu0 0.0
        %639 = vmatpush1.msra.mxu0 0.0
        %640 = vmatprep.subr.mxu0 0.0
        %641 = vmatpush1.msra.mxu0 0.0
        %642 = vmatprep.subr.mxu0 0.0
        %643 = vmatpush1.msra.mxu0 0.0
        %644 = vmatprep.subr.mxu0 0.0
        %645 = vmatpush1.msra.mxu0 0.0
        %646 = vmatprep.subr.mxu0 0.0
        %647 = vmatpush1.msra.mxu0 0.0
        %648 = vmatprep.subr.mxu0 0.0
        %649 = vmatpush1.msra.mxu0 0.0
        %650 = vmatprep.subr.mxu0 0.0
        %651 = vmatpush1.msra.mxu0 0.0
        %652 = vmatprep.subr.mxu0 0.0
        %653 = vmatpush1.msra.mxu0 0.0
        %654 = vmatprep.subr.mxu0 0.0
        %655 = vmatpush1.msra.mxu0 0.0
        %656 = vmatprep.subr.mxu0 0.0
        %657 = vmatpush1.msra.mxu0 0.0
        %658 = vmatprep.subr.mxu0 0.0
        %659 = vmatpush1.msra.mxu0 0.0
        %660 = vmatprep.subr.mxu0 0.0
        %661 = vmatpush1.msra.mxu0 0.0
        %662 = vmatprep.subr.mxu0 0.0
        %663 = vmatpush1.msra.mxu0 0.0
        %664 = vmatprep.subr.mxu0 0.0
        %665 = vmatpush1.msra.mxu0 0.0
        %666 = vmatprep.subr.mxu0 0.0
        %667 = vmatpush1.msra.mxu0 0.0
        %668 = vmatprep.mubr.f32.mxu0 0.0
        %669 = vmatmul.mubr.f32.gmra.mrb[0].mxu0 %v557
        %v670 = vpop.f32.mrb[0].mxu0
        %v671 = vadd.f32 %v553, %v670
        %v672 = vpop.f32.mrb[0].mxu0
        %673 = vmatprep.mubr.f32.mxu0 0.0
        %674 = vmatmul.mubr.f32.gmra.mrb[0].mxu0 %v560
        %v675 = vpop.f32.mrb[0].mxu0
        %v676 = vadd.f32 %v553, %v675
        %v677 = vpop.f32.mrb[0].mxu0
        %678 = vmatprep.mubr.f32.mxu0 0.0
        %679 = vmatmul.mubr.f32.gmra.mrb[0].mxu0 %v563
        %v680 = vpop.f32.mrb[0].mxu0
        %v681 = vadd.f32 %v553, %v680
        %v682 = vpop.f32.mrb[0].mxu0
        %683 = vmatprep.mubr.f32.mxu0 0.0
        %684 = vmatmul.mubr.f32.gmra.mrb[0].mxu0 %v566
        %v685 = vpop.f32.mrb[0].mxu0
        %v686 = vadd.f32 %v553, %v685
        %v687 = vpop.f32.mrb[0].mxu0
        %688 = vmatprep.mubr.f32.mxu0 0.0
        %689 = vmatmul.mubr.f32.gmra.mrb[0].mxu0 %v569
        %v690 = vpop.f32.mrb[0].mxu0
        %v691 = vadd.f32 %v553, %v690
        %v692 = vpop.f32.mrb[0].mxu0
        %693 = vmatprep.mubr.f32.mxu0 0.0
        %694 = vmatmul.mubr.f32.gmra.mrb[0].mxu0 %v572
        %v695 = vpop.f32.mrb[0].mxu0
        %v696 = vadd.f32 %v553, %v695
        %v697 = vpop.f32.mrb[0].mxu0
        %698 = vmatprep.mubr.f32.mxu0 0.0
        %699 = vmatmul.mubr.f32.gmra.mrb[0].mxu0 %v575
        %v700 = vpop.f32.mrb[0].mxu0
        %v701 = vadd.f32 %v553, %v700
        %v702 = vpop.f32.mrb[0].mxu0
        %703 = vmatprep.mubr.f32.mxu0 0.0
        %704 = vmatmul.mubr.f32.gmra.mrb[0].mxu0 %v578
        %v705 = vpop.f32.mrb[0].mxu0
        %v706 = vadd.f32 %v553, %v705
        %v707 = vpop.f32.mrb[0].mxu0
        %708 = vmatprep.mubr.f32.mxu0 0.0
        %709 = vmatmul.mubr.f32.gmra.mrb[0].mxu0 %v581
        %v710 = vpop.f32.mrb[0].mxu0
        %v711 = vadd.f32 %v553, %v710
        %v712 = vpop.f32.mrb[0].mxu0
        %713 = vmatprep.mubr.f32.mxu0 0.0
        %714 = vmatmul.mubr.f32.gmra.mrb[0].mxu0 %v584
        %v715 = vpop.f32.mrb[0].mxu0
        %v716 = vadd.f32 %v553, %v715
        %v717 = vpop.f32.mrb[0].mxu0
        %718 = vmatprep.mubr.f32.mxu0 0.0
        %719 = vmatmul.mubr.f32.gmra.mrb[0].mxu0 %v587
        %v720 = vpop.f32.mrb[0].mxu0
        %v721 = vadd.f32 %v553, %v720
        %v722 = vpop.f32.mrb[0].mxu0
        %723 = vmatprep.mubr.f32.mxu0 0.0
        %724 = vmatmul.mubr.f32.gmra.mrb[0].mxu0 %v590
        %v725 = vpop.f32.mrb[0].mxu0
        %v726 = vadd.f32 %v553, %v725
        %v727 = vpop.f32.mrb[0].mxu0
        %728 = vmatprep.mubr.f32.mxu0 0.0
        %729 = vmatmul.mubr.f32.gmra.mrb[0].mxu0 %v593
        %v730 = vpop.f32.mrb[0].mxu0
        %v731 = vadd.f32 %v553, %v730
        %v732 = vpop.f32.mrb[0].mxu0
        %733 = vmatprep.mubr.f32.mxu0 0.0
        %734 = vmatmul.mubr.f32.gmra.mrb[0].mxu0 %v596
        %v735 = vpop.f32.mrb[0].mxu0
        %v736 = vadd.f32 %v553, %v735
        %v737 = vpop.f32.mrb[0].mxu0
        %738 = vmatprep.mubr.f32.mxu0 0.0
        %739 = vmatmul.mubr.f32.gmra.mrb[0].mxu0 %v599
        %v740 = vpop.f32.mrb[0].mxu0
        %v741 = vadd.f32 %v553, %v740
        %v742 = vpop.f32.mrb[0].mxu0
        %743 = vmatprep.mubr.f32.mxu0 0.0
        %744 = vmatmul.mubr.f32.gmra.mrb[0].mxu0 %v602
        %v745 = vpop.f32.mrb[0].mxu0
        %v746 = vadd.f32 %v553, %v745
        %v747 = vpop.f32.mrb[0].mxu0
        %748 = vdwg.mxu0
        %p749 = scmp.gt.s32.totalorder %s39, 0
        %s750 = scalar_select %p749, 1.0, 0.0
        %p751 = scmp.lt.s32.totalorder %s39, 1
        %s752 = scalar_select %p751, 1.0, 0.0
        %v753 = vld [vmem:[%s446] sm:$0xff]
        %v754 = vld [vmem:[%s446 + $0x8] sm:$0xff]
        %v756 = vsel %vm555, %v753, 0
        %v759 = vsel %vm555, %v754, 0
        %761 = vmatprep.subr.mxu0 0.0
        %762 = vmatpush1.msra.mxu0 %v530
        %763 = vmatprep.subr.mxu0 0.0
        %764 = vmatpush1.msra.mxu0 %v531
        %765 = vmatprep.subr.mxu0 0.0
        %766 = vmatpush1.msra.mxu0 0.0
        %767 = vmatprep.subr.mxu0 0.0
        %768 = vmatpush1.msra.mxu0 0.0
        %769 = vmatprep.subr.mxu0 0.0
        %770 = vmatpush1.msra.mxu0 0.0
        %771 = vmatprep.subr.mxu0 0.0
        %772 = vmatpush1.msra.mxu0 0.0
        %773 = vmatprep.subr.mxu0 0.0
        %774 = vmatpush1.msra.mxu0 0.0
        %775 = vmatprep.subr.mxu0 0.0
        %776 = vmatpush1.msra.mxu0 0.0
        %777 = vmatprep.subr.mxu0 0.0
        %778 = vmatpush1.msra.mxu0 0.0
        %779 = vmatprep.subr.mxu0 0.0
        %780 = vmatpush1.msra.mxu0 0.0
        %781 = vmatprep.subr.mxu0 0.0
        %782 = vmatpush1.msra.mxu0 0.0
        %783 = vmatprep.subr.mxu0 0.0
        %784 = vmatpush1.msra.mxu0 0.0
        %785 = vmatprep.subr.mxu0 0.0
        %786 = vmatpush1.msra.mxu0 0.0
        %787 = vmatprep.subr.mxu0 0.0
        %788 = vmatpush1.msra.mxu0 0.0
        %789 = vmatprep.subr.mxu0 0.0
        %790 = vmatpush1.msra.mxu0 0.0
        %791 = vmatprep.subr.mxu0 0.0
        %792 = vmatpush1.msra.mxu0 0.0
        %793 = vmatprep.subr.mxu0 0.0
        %794 = vmatpush1.msra.mxu0 0.0
        %795 = vmatprep.subr.mxu0 0.0
        %796 = vmatpush1.msra.mxu0 0.0
        %797 = vmatprep.subr.mxu0 0.0
        %798 = vmatpush1.msra.mxu0 0.0
        %799 = vmatprep.subr.mxu0 0.0
        %800 = vmatpush1.msra.mxu0 0.0
        %801 = vmatprep.subr.mxu0 0.0
        %802 = vmatpush1.msra.mxu0 0.0
        %803 = vmatprep.subr.mxu0 0.0
        %804 = vmatpush1.msra.mxu0 0.0
        %805 = vmatprep.subr.mxu0 0.0
        %806 = vmatpush1.msra.mxu0 0.0
        %807 = vmatprep.subr.mxu0 0.0
        %808 = vmatpush1.msra.mxu0 0.0
        %809 = vmatprep.subr.mxu0 0.0
        %810 = vmatpush1.msra.mxu0 0.0
        %811 = vmatprep.subr.mxu0 0.0
        %812 = vmatpush1.msra.mxu0 0.0
        %813 = vmatprep.subr.mxu0 0.0
        %814 = vmatpush1.msra.mxu0 0.0
        %815 = vmatprep.subr.mxu0 0.0
        %816 = vmatpush1.msra.mxu0 0.0
        %817 = vmatprep.subr.mxu0 0.0
        %818 = vmatpush1.msra.mxu0 0.0
        %819 = vmatprep.subr.mxu0 0.0
        %820 = vmatpush1.msra.mxu0 0.0
        %821 = vmatprep.subr.mxu0 0.0
        %822 = vmatpush1.msra.mxu0 0.0
        %823 = vmatprep.subr.mxu0 0.0
        %824 = vmatpush1.msra.mxu0 0.0
        %825 = vmatprep.mubr.f32.mxu0 0.0
        %826 = vmatmul.mubr.f32.gmra.mrb[0].mxu0 %v756
        %v827 = vpop.f32.mrb[0].mxu0
        %v828 = vadd.f32 %v553, %v827
        %v829 = vpop.f32.mrb[0].mxu0
        %830 = vmatprep.mubr.f32.mxu0 0.0
        %831 = vmatmul.mubr.f32.gmra.mrb[0].mxu0 %v759
        %v832 = vpop.f32.mrb[0].mxu0
        %v833 = vadd.f32 %v553, %v832
        %v834 = vpop.f32.mrb[0].mxu0
        %835 = vdwg.mxu0
        %v836 = vstv %s750
        %v837 = vmul.f32 %v828, %v836
        %v838 = vmul.f32 %v833, %v836
        %v839 = vld [vmem:[%s455] sm:$0xff]
        %v840 = vld [vmem:[%s455 + $0x8] sm:$0xff]
        %v842 = vsel %vm555, %v839, 0
        %v845 = vsel %vm555, %v840, 0
        %847 = vmatprep.subr.mxu0 0.0
        %848 = vmatpush1.msra.mxu0 %v530
        %849 = vmatprep.subr.mxu0 0.0
        %850 = vmatpush1.msra.mxu0 %v531
        %851 = vmatprep.subr.mxu0 0.0
        %852 = vmatpush1.msra.mxu0 0.0
        %853 = vmatprep.subr.mxu0 0.0
        %854 = vmatpush1.msra.mxu0 0.0
        %855 = vmatprep.subr.mxu0 0.0
        %856 = vmatpush1.msra.mxu0 0.0
        %857 = vmatprep.subr.mxu0 0.0
        %858 = vmatpush1.msra.mxu0 0.0
        %859 = vmatprep.subr.mxu0 0.0
        %860 = vmatpush1.msra.mxu0 0.0
        %861 = vmatprep.subr.mxu0 0.0
        %862 = vmatpush1.msra.mxu0 0.0
        %863 = vmatprep.subr.mxu0 0.0
        %864 = vmatpush1.msra.mxu0 0.0
        %865 = vmatprep.subr.mxu0 0.0
        %866 = vmatpush1.msra.mxu0 0.0
        %867 = vmatprep.subr.mxu0 0.0
        %868 = vmatpush1.msra.mxu0 0.0
        %869 = vmatprep.subr.mxu0 0.0
        %870 = vmatpush1.msra.mxu0 0.0
        %871 = vmatprep.subr.mxu0 0.0
        %872 = vmatpush1.msra.mxu0 0.0
        %873 = vmatprep.subr.mxu0 0.0
        %874 = vmatpush1.msra.mxu0 0.0
        %875 = vmatprep.subr.mxu0 0.0
        %876 = vmatpush1.msra.mxu0 0.0
        %877 = vmatprep.subr.mxu0 0.0
        %878 = vmatpush1.msra.mxu0 0.0
        %879 = vmatprep.subr.mxu0 0.0
        %880 = vmatpush1.msra.mxu0 0.0
        %881 = vmatprep.subr.mxu0 0.0
        %882 = vmatpush1.msra.mxu0 0.0
        %883 = vmatprep.subr.mxu0 0.0
        %884 = vmatpush1.msra.mxu0 0.0
        %885 = vmatprep.subr.mxu0 0.0
        %886 = vmatpush1.msra.mxu0 0.0
        %887 = vmatprep.subr.mxu0 0.0
        %888 = vmatpush1.msra.mxu0 0.0
        %889 = vmatprep.subr.mxu0 0.0
        %890 = vmatpush1.msra.mxu0 0.0
        %891 = vmatprep.subr.mxu0 0.0
        %892 = vmatpush1.msra.mxu0 0.0
        %893 = vmatprep.subr.mxu0 0.0
        %894 = vmatpush1.msra.mxu0 0.0
        %895 = vmatprep.subr.mxu0 0.0
        %896 = vmatpush1.msra.mxu0 0.0
        %897 = vmatprep.subr.mxu0 0.0
        %898 = vmatpush1.msra.mxu0 0.0
        %899 = vmatprep.subr.mxu0 0.0
        %900 = vmatpush1.msra.mxu0 0.0
        %901 = vmatprep.subr.mxu0 0.0
        %902 = vmatpush1.msra.mxu0 0.0
        %903 = vmatprep.subr.mxu0 0.0
        %904 = vmatpush1.msra.mxu0 0.0
        %905 = vmatprep.subr.mxu0 0.0
        %906 = vmatpush1.msra.mxu0 0.0
        %907 = vmatprep.subr.mxu0 0.0
        %908 = vmatpush1.msra.mxu0 0.0
        %909 = vmatprep.subr.mxu0 0.0
        %910 = vmatpush1.msra.mxu0 0.0
        %911 = vmatprep.mubr.f32.mxu0 0.0
        %912 = vmatmul.mubr.f32.gmra.mrb[0].mxu0 %v842
        %v913 = vpop.f32.mrb[0].mxu0
        %v914 = vadd.f32 %v553, %v913
        %v915 = vpop.f32.mrb[0].mxu0
        %916 = vmatprep.mubr.f32.mxu0 0.0
        %917 = vmatmul.mubr.f32.gmra.mrb[0].mxu0 %v845
        %v918 = vpop.f32.mrb[0].mxu0
        %v919 = vadd.f32 %v553, %v918
        %v920 = vpop.f32.mrb[0].mxu0
        %921 = vdwg.mxu0
        %v922 = vstv %s752
        %v923 = vmul.f32 %v914, %v922
        %v924 = vmul.f32 %v919, %v922
        %vm925 = vcmask 385024
        %926 = vst.msk [vmem:[#allocation2] sm:$0x1] %vm925, 0.0
        %927 = vst.msk [vmem:[#allocation2 + $0x18] sm:$0x1] %vm925, 0.0
        %928 = vst.msk [vmem:[#allocation2 + $0x30] sm:$0x1] %vm925, 0.0
        %929 = vst.msk [vmem:[#allocation2 + $0x48] sm:$0x1] %vm925, 0.0
        %930 = vst.msk [vmem:[#allocation2 + $0x60] sm:$0x1] %vm925, 0.0
        %931 = vst.msk [vmem:[#allocation2 + $0x78] sm:$0x1] %vm925, 0.0
        %932 = vst.msk [vmem:[#allocation2 + $0x90] sm:$0x1] %vm925, 0.0
        %933 = vst.msk [vmem:[#allocation2 + $0xa8] sm:$0x1] %vm925, 0.0
        %934 = vst.msk [vmem:[#allocation2 + $0xc0] sm:$0x1] %vm925, 0.0
        %935 = vst.msk [vmem:[#allocation2 + $0xd8] sm:$0x1] %vm925, 0.0
        %936 = vst.msk [vmem:[#allocation2 + $0x11] sm:$0x1] %vm925, 0.0
        %937 = vst.msk [vmem:[#allocation2 + $0x29] sm:$0x1] %vm925, 0.0
        %938 = vst.msk [vmem:[#allocation2 + $0x41] sm:$0x1] %vm925, 0.0
        %939 = vst.msk [vmem:[#allocation2 + $0x59] sm:$0x1] %vm925, 0.0
        %940 = vst.msk [vmem:[#allocation2 + $0x71] sm:$0x1] %vm925, 0.0
        %941 = vst.msk [vmem:[#allocation2 + $0x89] sm:$0x1] %vm925, 0.0
        %942 = vst.msk [vmem:[#allocation2 + $0xa1] sm:$0x1] %vm925, 0.0
        %943 = vst.msk [vmem:[#allocation2 + $0xb9] sm:$0x1] %vm925, 0.0
        %944 = vst.msk [vmem:[#allocation2 + $0xd1] sm:$0x1] %vm925, 0.0
        %945 = vst.msk [vmem:[#allocation2 + $0xe9] sm:$0x1] %vm925, 0.0
        %vm946 = vcmask 392192
        %947 = vst.msk [vmem:[#allocation2 + $0x1] sm:$0xff] %vm946, %v837
        %948 = vst.msk [vmem:[#allocation2 + $0x9] sm:$0xff] %vm946, %v838
        %s949 = scalar_lea.vmem [#allocation2], 216
        %950 = vst.msk [vmem:[%s949 + $0x1] sm:$0xff] %vm946, %v923
        %951 = vst.msk [vmem:[%s949 + $0x9] sm:$0xff] %vm946, %v924
        %s952 = scalar_lea.vmem [#allocation2], 24
        %953 = vst.msk [vmem:[%s952 + $0x1] sm:$0xff] %vm946, %v671
        %954 = vst.msk [vmem:[%s952 + $0x9] sm:$0xff] %vm946, %v676
        %955 = vst.msk [vmem:[%s952 + $0x19] sm:$0xff] %vm946, %v681
        %956 = vst.msk [vmem:[%s952 + $0x21] sm:$0xff] %vm946, %v686
        %957 = vst.msk [vmem:[%s952 + $0x31] sm:$0xff] %vm946, %v691
        %958 = vst.msk [vmem:[%s952 + $0x39] sm:$0xff] %vm946, %v696
        %959 = vst.msk [vmem:[%s952 + $0x49] sm:$0xff] %vm946, %v701
        %960 = vst.msk [vmem:[%s952 + $0x51] sm:$0xff] %vm946, %v706
        %961 = vst.msk [vmem:[%s952 + $0x61] sm:$0xff] %vm946, %v711
        %962 = vst.msk [vmem:[%s952 + $0x69] sm:$0xff] %vm946, %v716
        %963 = vst.msk [vmem:[%s952 + $0x79] sm:$0xff] %vm946, %v721
        %964 = vst.msk [vmem:[%s952 + $0x81] sm:$0xff] %vm946, %v726
        %965 = vst.msk [vmem:[%s952 + $0x91] sm:$0xff] %vm946, %v731
        %966 = vst.msk [vmem:[%s952 + $0x99] sm:$0xff] %vm946, %v736
        %967 = vst.msk [vmem:[%s952 + $0xa9] sm:$0xff] %vm946, %v741
        %968 = vst.msk [vmem:[%s952 + $0xb1] sm:$0xff] %vm946, %v746
        %v969 = vld [vmem:[#allocation12] sm:$0x7]
        %v970 = vld [vmem:[#allocation12 + $0x4] sm:$0x7]
        %v971 = vld [vmem:[#allocation12 + $0x8] sm:$0x7]
        %v972 = vld [vmem:[#allocation2] sm:$0xff]
        %v973 = vld [vmem:[#allocation2 + $0x8] sm:$0xff]
        %v974 = vld [vmem:[#allocation2 + $0x18] sm:$0xff]
        %v975 = vld [vmem:[#allocation2 + $0x20] sm:$0xff]
        %v976 = vld [vmem:[#allocation2 + $0x30] sm:$0xff]
        %v977 = vld [vmem:[#allocation2 + $0x38] sm:$0xff]
        %v978 = vld [vmem:[#allocation2 + $0x48] sm:$0xff]
        %v979 = vld [vmem:[#allocation2 + $0x50] sm:$0xff]
        %v980 = vld [vmem:[#allocation2 + $0x60] sm:$0xff]
        %v981 = vld [vmem:[#allocation2 + $0x68] sm:$0xff]
        %v982 = vld [vmem:[#allocation2 + $0x78] sm:$0xff]
        %v983 = vld [vmem:[#allocation2 + $0x80] sm:$0xff]
        %v984 = vld [vmem:[#allocation2 + $0x90] sm:$0xff]
        %v985 = vld [vmem:[#allocation2 + $0x98] sm:$0xff]
        %v986 = vld [vmem:[#allocation2 + $0xa8] sm:$0xff]
        %v987 = vld [vmem:[#allocation2 + $0xb0] sm:$0xff]
        %v988 = vlaneseq
        %v989 = vshrl.u32 %v988, 7
        %v990 = vsub.s32 0, %v989
        %v991 = vrot.slane %v969, %v990
        %v992 = vmul.f32 %v972, %v991
        %v993 = vmul.f32 %v973, %v991
        %v994 = vmul.f32 %v974, %v991
        %v995 = vmul.f32 %v975, %v991
        %v996 = vmul.f32 %v976, %v991
        %v997 = vmul.f32 %v977, %v991
        %v998 = vmul.f32 %v978, %v991
        %v999 = vmul.f32 %v979, %v991
        %v1000 = vmul.f32 %v980, %v991
        %v1001 = vmul.f32 %v981, %v991
        %v1002 = vmul.f32 %v982, %v991
        %v1003 = vmul.f32 %v983, %v991
        %v1004 = vmul.f32 %v984, %v991
        %v1005 = vmul.f32 %v985, %v991
        %v1006 = vmul.f32 %v986, %v991
        %v1007 = vmul.f32 %v987, %v991
        %v1008 = vadd.f32 %v992, 0.0
        %v1009 = vadd.f32 %v993, 0.0
        %v1010 = vadd.f32 %v994, 0.0
        %v1011 = vadd.f32 %v995, 0.0
        %v1012 = vadd.f32 %v996, 0.0
        %v1013 = vadd.f32 %v997, 0.0
        %v1014 = vadd.f32 %v998, 0.0
        %v1015 = vadd.f32 %v999, 0.0
        %v1016 = vadd.f32 %v1000, 0.0
        %v1017 = vadd.f32 %v1001, 0.0
        %v1018 = vadd.f32 %v1002, 0.0
        %v1019 = vadd.f32 %v1003, 0.0
        %v1020 = vadd.f32 %v1004, 0.0
        %v1021 = vadd.f32 %v1005, 0.0
        %v1022 = vadd.f32 %v1006, 0.0
        %v1023 = vadd.f32 %v1007, 0.0
        %v1024 = vld [vmem:[#allocation2 + $0x1] sm:$0xff]
        %v1025 = vld [vmem:[#allocation2 + $0x9] sm:$0xff]
        %v1026 = vld [vmem:[#allocation2 + $0x19] sm:$0xff]
        %v1027 = vld [vmem:[#allocation2 + $0x21] sm:$0xff]
        %v1028 = vld [vmem:[#allocation2 + $0x31] sm:$0xff]
        %v1029 = vld [vmem:[#allocation2 + $0x39] sm:$0xff]
        %v1030 = vld [vmem:[#allocation2 + $0x49] sm:$0xff]
        %v1031 = vld [vmem:[#allocation2 + $0x51] sm:$0xff]
        %v1032 = vld [vmem:[#allocation2 + $0x61] sm:$0xff]
        %v1033 = vld [vmem:[#allocation2 + $0x69] sm:$0xff]
        %v1034 = vld [vmem:[#allocation2 + $0x79] sm:$0xff]
        %v1035 = vld [vmem:[#allocation2 + $0x81] sm:$0xff]
        %v1036 = vld [vmem:[#allocation2 + $0x91] sm:$0xff]
        %v1037 = vld [vmem:[#allocation2 + $0x99] sm:$0xff]
        %v1038 = vld [vmem:[#allocation2 + $0xa9] sm:$0xff]
        %v1039 = vld [vmem:[#allocation2 + $0xb1] sm:$0xff]
        %v1040 = vlaneseq
        %v1041 = vshrl.u32 %v1040, 7
        %v1042 = vsub.s32 1, %v1041
        %v1043 = vrot.slane %v969, %v1042
        %v1044 = vmul.f32 %v1024, %v1043
        %v1045 = vmul.f32 %v1025, %v1043
        %v1046 = vmul.f32 %v1026, %v1043
        %v1047 = vmul.f32 %v1027, %v1043
        %v1048 = vmul.f32 %v1028, %v1043
        %v1049 = vmul.f32 %v1029, %v1043
        %v1050 = vmul.f32 %v1030, %v1043
        %v1051 = vmul.f32 %v1031, %v1043
        %v1052 = vmul.f32 %v1032, %v1043
        %v1053 = vmul.f32 %v1033, %v1043
        %v1054 = vmul.f32 %v1034, %v1043
        %v1055 = vmul.f32 %v1035, %v1043
        %v1056 = vmul.f32 %v1036, %v1043
        %v1057 = vmul.f32 %v1037, %v1043
        %v1058 = vmul.f32 %v1038, %v1043
        %v1059 = vmul.f32 %v1039, %v1043
        %v1060 = vadd.f32 %v1008, %v1044
        %v1061 = vadd.f32 %v1009, %v1045
        %v1062 = vadd.f32 %v1010, %v1046
        %v1063 = vadd.f32 %v1011, %v1047
        %v1064 = vadd.f32 %v1012, %v1048
        %v1065 = vadd.f32 %v1013, %v1049
        %v1066 = vadd.f32 %v1014, %v1050
        %v1067 = vadd.f32 %v1015, %v1051
        %v1068 = vadd.f32 %v1016, %v1052
        %v1069 = vadd.f32 %v1017, %v1053
        %v1070 = vadd.f32 %v1018, %v1054
        %v1071 = vadd.f32 %v1019, %v1055
        %v1072 = vadd.f32 %v1020, %v1056
        %v1073 = vadd.f32 %v1021, %v1057
        %v1074 = vadd.f32 %v1022, %v1058
        %v1075 = vadd.f32 %v1023, %v1059
        %v1076 = vld [vmem:[#allocation2 + $0x2] sm:$0xff]
        %v1077 = vld [vmem:[#allocation2 + $0xa] sm:$0xff]
        %v1078 = vld [vmem:[#allocation2 + $0x1a] sm:$0xff]
        %v1079 = vld [vmem:[#allocation2 + $0x22] sm:$0xff]
        %v1080 = vld [vmem:[#allocation2 + $0x32] sm:$0xff]
        %v1081 = vld [vmem:[#allocation2 + $0x3a] sm:$0xff]
        %v1082 = vld [vmem:[#allocation2 + $0x4a] sm:$0xff]
        %v1083 = vld [vmem:[#allocation2 + $0x52] sm:$0xff]
        %v1084 = vld [vmem:[#allocation2 + $0x62] sm:$0xff]
        %v1085 = vld [vmem:[#allocation2 + $0x6a] sm:$0xff]
        %v1086 = vld [vmem:[#allocation2 + $0x7a] sm:$0xff]
        %v1087 = vld [vmem:[#allocation2 + $0x82] sm:$0xff]
        %v1088 = vld [vmem:[#allocation2 + $0x92] sm:$0xff]
        %v1089 = vld [vmem:[#allocation2 + $0x9a] sm:$0xff]
        %v1090 = vld [vmem:[#allocation2 + $0xaa] sm:$0xff]
        %v1091 = vld [vmem:[#allocation2 + $0xb2] sm:$0xff]
        %v1092 = vlaneseq
        %v1093 = vshrl.u32 %v1092, 7
        %v1094 = vsub.s32 2, %v1093
        %v1095 = vrot.slane %v969, %v1094
        %v1096 = vmul.f32 %v1076, %v1095
        %v1097 = vmul.f32 %v1077, %v1095
        %v1098 = vmul.f32 %v1078, %v1095
        %v1099 = vmul.f32 %v1079, %v1095
        %v1100 = vmul.f32 %v1080, %v1095
        %v1101 = vmul.f32 %v1081, %v1095
        %v1102 = vmul.f32 %v1082, %v1095
        %v1103 = vmul.f32 %v1083, %v1095
        %v1104 = vmul.f32 %v1084, %v1095
        %v1105 = vmul.f32 %v1085, %v1095
        %v1106 = vmul.f32 %v1086, %v1095
        %v1107 = vmul.f32 %v1087, %v1095
        %v1108 = vmul.f32 %v1088, %v1095
        %v1109 = vmul.f32 %v1089, %v1095
        %v1110 = vmul.f32 %v1090, %v1095
        %v1111 = vmul.f32 %v1091, %v1095
        %v1112 = vadd.f32 %v1060, %v1096
        %v1113 = vadd.f32 %v1061, %v1097
        %v1114 = vadd.f32 %v1062, %v1098
        %v1115 = vadd.f32 %v1063, %v1099
        %v1116 = vadd.f32 %v1064, %v1100
        %v1117 = vadd.f32 %v1065, %v1101
        %v1118 = vadd.f32 %v1066, %v1102
        %v1119 = vadd.f32 %v1067, %v1103
        %v1120 = vadd.f32 %v1068, %v1104
        %v1121 = vadd.f32 %v1069, %v1105
        %v1122 = vadd.f32 %v1070, %v1106
        %v1123 = vadd.f32 %v1071, %v1107
        %v1124 = vadd.f32 %v1072, %v1108
        %v1125 = vadd.f32 %v1073, %v1109
        %v1126 = vadd.f32 %v1074, %v1110
        %v1127 = vadd.f32 %v1075, %v1111
        %v1128 = vld [vmem:[%s952] sm:$0xff]
        %v1129 = vld [vmem:[%s952 + $0x8] sm:$0xff]
        %v1130 = vld [vmem:[%s952 + $0x18] sm:$0xff]
        %v1131 = vld [vmem:[%s952 + $0x20] sm:$0xff]
        %v1132 = vld [vmem:[%s952 + $0x30] sm:$0xff]
        %v1133 = vld [vmem:[%s952 + $0x38] sm:$0xff]
        %v1134 = vld [vmem:[%s952 + $0x48] sm:$0xff]
        %v1135 = vld [vmem:[%s952 + $0x50] sm:$0xff]
        %v1136 = vld [vmem:[%s952 + $0x60] sm:$0xff]
        %v1137 = vld [vmem:[%s952 + $0x68] sm:$0xff]
        %v1138 = vld [vmem:[%s952 + $0x78] sm:$0xff]
        %v1139 = vld [vmem:[%s952 + $0x80] sm:$0xff]
        %v1140 = vld [vmem:[%s952 + $0x90] sm:$0xff]
        %v1141 = vld [vmem:[%s952 + $0x98] sm:$0xff]
        %v1142 = vld [vmem:[%s952 + $0xa8] sm:$0xff]
        %v1143 = vld [vmem:[%s952 + $0xb0] sm:$0xff]
        %v1144 = vlaneseq
        %v1145 = vshrl.u32 %v1144, 7
        %v1146 = vsub.s32 0, %v1145
        %v1147 = vrot.slane %v970, %v1146
        %v1148 = vmul.f32 %v1128, %v1147
        %v1149 = vmul.f32 %v1129, %v1147
        %v1150 = vmul.f32 %v1130, %v1147
        %v1151 = vmul.f32 %v1131, %v1147
        %v1152 = vmul.f32 %v1132, %v1147
        %v1153 = vmul.f32 %v1133, %v1147
        %v1154 = vmul.f32 %v1134, %v1147
        %v1155 = vmul.f32 %v1135, %v1147
        %v1156 = vmul.f32 %v1136, %v1147
        %v1157 = vmul.f32 %v1137, %v1147
        %v1158 = vmul.f32 %v1138, %v1147
        %v1159 = vmul.f32 %v1139, %v1147
        %v1160 = vmul.f32 %v1140, %v1147
        %v1161 = vmul.f32 %v1141, %v1147
        %v1162 = vmul.f32 %v1142, %v1147
        %v1163 = vmul.f32 %v1143, %v1147
        %v1164 = vadd.f32 %v1112, %v1148
        %v1165 = vadd.f32 %v1113, %v1149
        %v1166 = vadd.f32 %v1114, %v1150
        %v1167 = vadd.f32 %v1115, %v1151
        %v1168 = vadd.f32 %v1116, %v1152
        %v1169 = vadd.f32 %v1117, %v1153
        %v1170 = vadd.f32 %v1118, %v1154
        %v1171 = vadd.f32 %v1119, %v1155
        %v1172 = vadd.f32 %v1120, %v1156
        %v1173 = vadd.f32 %v1121, %v1157
        %v1174 = vadd.f32 %v1122, %v1158
        %v1175 = vadd.f32 %v1123, %v1159
        %v1176 = vadd.f32 %v1124, %v1160
        %v1177 = vadd.f32 %v1125, %v1161
        %v1178 = vadd.f32 %v1126, %v1162
        %v1179 = vadd.f32 %v1127, %v1163
        %v1180 = vld [vmem:[%s952 + $0x1] sm:$0xff]
        %v1181 = vld [vmem:[%s952 + $0x9] sm:$0xff]
        %v1182 = vld [vmem:[%s952 + $0x19] sm:$0xff]
        %v1183 = vld [vmem:[%s952 + $0x21] sm:$0xff]
        %v1184 = vld [vmem:[%s952 + $0x31] sm:$0xff]
        %v1185 = vld [vmem:[%s952 + $0x39] sm:$0xff]
        %v1186 = vld [vmem:[%s952 + $0x49] sm:$0xff]
        %v1187 = vld [vmem:[%s952 + $0x51] sm:$0xff]
        %v1188 = vld [vmem:[%s952 + $0x61] sm:$0xff]
        %v1189 = vld [vmem:[%s952 + $0x69] sm:$0xff]
        %v1190 = vld [vmem:[%s952 + $0x79] sm:$0xff]
        %v1191 = vld [vmem:[%s952 + $0x81] sm:$0xff]
        %v1192 = vld [vmem:[%s952 + $0x91] sm:$0xff]
        %v1193 = vld [vmem:[%s952 + $0x99] sm:$0xff]
        %v1194 = vld [vmem:[%s952 + $0xa9] sm:$0xff]
        %v1195 = vld [vmem:[%s952 + $0xb1] sm:$0xff]
        %v1196 = vlaneseq
        %v1197 = vshrl.u32 %v1196, 7
        %v1198 = vsub.s32 1, %v1197
        %v1199 = vrot.slane %v970, %v1198
        %v1200 = vmul.f32 %v1180, %v1199
        %v1201 = vmul.f32 %v1181, %v1199
        %v1202 = vmul.f32 %v1182, %v1199
        %v1203 = vmul.f32 %v1183, %v1199
        %v1204 = vmul.f32 %v1184, %v1199
        %v1205 = vmul.f32 %v1185, %v1199
        %v1206 = vmul.f32 %v1186, %v1199
        %v1207 = vmul.f32 %v1187, %v1199
        %v1208 = vmul.f32 %v1188, %v1199
        %v1209 = vmul.f32 %v1189, %v1199
        %v1210 = vmul.f32 %v1190, %v1199
        %v1211 = vmul.f32 %v1191, %v1199
        %v1212 = vmul.f32 %v1192, %v1199
        %v1213 = vmul.f32 %v1193, %v1199
        %v1214 = vmul.f32 %v1194, %v1199
        %v1215 = vmul.f32 %v1195, %v1199
        %v1216 = vadd.f32 %v1164, %v1200
        %v1217 = vadd.f32 %v1165, %v1201
        %v1218 = vadd.f32 %v1166, %v1202
        %v1219 = vadd.f32 %v1167, %v1203
        %v1220 = vadd.f32 %v1168, %v1204
        %v1221 = vadd.f32 %v1169, %v1205
        %v1222 = vadd.f32 %v1170, %v1206
        %v1223 = vadd.f32 %v1171, %v1207
        %v1224 = vadd.f32 %v1172, %v1208
        %v1225 = vadd.f32 %v1173, %v1209
        %v1226 = vadd.f32 %v1174, %v1210
        %v1227 = vadd.f32 %v1175, %v1211
        %v1228 = vadd.f32 %v1176, %v1212
        %v1229 = vadd.f32 %v1177, %v1213
        %v1230 = vadd.f32 %v1178, %v1214
        %v1231 = vadd.f32 %v1179, %v1215
        %v1232 = vld [vmem:[%s952 + $0x2] sm:$0xff]
        %v1233 = vld [vmem:[%s952 + $0xa] sm:$0xff]
        %v1234 = vld [vmem:[%s952 + $0x1a] sm:$0xff]
        %v1235 = vld [vmem:[%s952 + $0x22] sm:$0xff]
        %v1236 = vld [vmem:[%s952 + $0x32] sm:$0xff]
        %v1237 = vld [vmem:[%s952 + $0x3a] sm:$0xff]
        %v1238 = vld [vmem:[%s952 + $0x4a] sm:$0xff]
        %v1239 = vld [vmem:[%s952 + $0x52] sm:$0xff]
        %v1240 = vld [vmem:[%s952 + $0x62] sm:$0xff]
        %v1241 = vld [vmem:[%s952 + $0x6a] sm:$0xff]
        %v1242 = vld [vmem:[%s952 + $0x7a] sm:$0xff]
        %v1243 = vld [vmem:[%s952 + $0x82] sm:$0xff]
        %v1244 = vld [vmem:[%s952 + $0x92] sm:$0xff]
        %v1245 = vld [vmem:[%s952 + $0x9a] sm:$0xff]
        %v1246 = vld [vmem:[%s952 + $0xaa] sm:$0xff]
        %v1247 = vld [vmem:[%s952 + $0xb2] sm:$0xff]
        %v1248 = vlaneseq
        %v1249 = vshrl.u32 %v1248, 7
        %v1250 = vsub.s32 2, %v1249
        %v1251 = vrot.slane %v970, %v1250
        %v1252 = vmul.f32 %v1232, %v1251
        %v1253 = vmul.f32 %v1233, %v1251
        %v1254 = vmul.f32 %v1234, %v1251
        %v1255 = vmul.f32 %v1235, %v1251
        %v1256 = vmul.f32 %v1236, %v1251
        %v1257 = vmul.f32 %v1237, %v1251
        %v1258 = vmul.f32 %v1238, %v1251
        %v1259 = vmul.f32 %v1239, %v1251
        %v1260 = vmul.f32 %v1240, %v1251
        %v1261 = vmul.f32 %v1241, %v1251
        %v1262 = vmul.f32 %v1242, %v1251
        %v1263 = vmul.f32 %v1243, %v1251
        %v1264 = vmul.f32 %v1244, %v1251
        %v1265 = vmul.f32 %v1245, %v1251
        %v1266 = vmul.f32 %v1246, %v1251
        %v1267 = vmul.f32 %v1247, %v1251
        %v1268 = vadd.f32 %v1216, %v1252
        %v1269 = vadd.f32 %v1217, %v1253
        %v1270 = vadd.f32 %v1218, %v1254
        %v1271 = vadd.f32 %v1219, %v1255
        %v1272 = vadd.f32 %v1220, %v1256
        %v1273 = vadd.f32 %v1221, %v1257
        %v1274 = vadd.f32 %v1222, %v1258
        %v1275 = vadd.f32 %v1223, %v1259
        %v1276 = vadd.f32 %v1224, %v1260
        %v1277 = vadd.f32 %v1225, %v1261
        %v1278 = vadd.f32 %v1226, %v1262
        %v1279 = vadd.f32 %v1227, %v1263
        %v1280 = vadd.f32 %v1228, %v1264
        %v1281 = vadd.f32 %v1229, %v1265
        %v1282 = vadd.f32 %v1230, %v1266
        %v1283 = vadd.f32 %v1231, %v1267
        %s1284 = scalar_lea.vmem [#allocation2], 48
        %v1285 = vld [vmem:[%s1284] sm:$0xff]
        %v1286 = vld [vmem:[%s1284 + $0x8] sm:$0xff]
        %v1287 = vld [vmem:[%s1284 + $0x18] sm:$0xff]
        %v1288 = vld [vmem:[%s1284 + $0x20] sm:$0xff]
        %v1289 = vld [vmem:[%s1284 + $0x30] sm:$0xff]
        %v1290 = vld [vmem:[%s1284 + $0x38] sm:$0xff]
        %v1291 = vld [vmem:[%s1284 + $0x48] sm:$0xff]
        %v1292 = vld [vmem:[%s1284 + $0x50] sm:$0xff]
        %v1293 = vld [vmem:[%s1284 + $0x60] sm:$0xff]
        %v1294 = vld [vmem:[%s1284 + $0x68] sm:$0xff]
        %v1295 = vld [vmem:[%s1284 + $0x78] sm:$0xff]
        %v1296 = vld [vmem:[%s1284 + $0x80] sm:$0xff]
        %v1297 = vld [vmem:[%s1284 + $0x90] sm:$0xff]
        %v1298 = vld [vmem:[%s1284 + $0x98] sm:$0xff]
        %v1299 = vld [vmem:[%s1284 + $0xa8] sm:$0xff]
        %v1300 = vld [vmem:[%s1284 + $0xb0] sm:$0xff]
        %v1301 = vlaneseq
        %v1302 = vshrl.u32 %v1301, 7
        %v1303 = vsub.s32 0, %v1302
        %v1304 = vrot.slane %v971, %v1303
        %v1305 = vmul.f32 %v1285, %v1304
        %v1306 = vmul.f32 %v1286, %v1304
        %v1307 = vmul.f32 %v1287, %v1304
        %v1308 = vmul.f32 %v1288, %v1304
        %v1309 = vmul.f32 %v1289, %v1304
        %v1310 = vmul.f32 %v1290, %v1304
        %v1311 = vmul.f32 %v1291, %v1304
        %v1312 = vmul.f32 %v1292, %v1304
        %v1313 = vmul.f32 %v1293, %v1304
        %v1314 = vmul.f32 %v1294, %v1304
        %v1315 = vmul.f32 %v1295, %v1304
        %v1316 = vmul.f32 %v1296, %v1304
        %v1317 = vmul.f32 %v1297, %v1304
        %v1318 = vmul.f32 %v1298, %v1304
        %v1319 = vmul.f32 %v1299, %v1304
        %v1320 = vmul.f32 %v1300, %v1304
        %v1321 = vadd.f32 %v1268, %v1305
        %v1322 = vadd.f32 %v1269, %v1306
        %v1323 = vadd.f32 %v1270, %v1307
        %v1324 = vadd.f32 %v1271, %v1308
        %v1325 = vadd.f32 %v1272, %v1309
        %v1326 = vadd.f32 %v1273, %v1310
        %v1327 = vadd.f32 %v1274, %v1311
        %v1328 = vadd.f32 %v1275, %v1312
        %v1329 = vadd.f32 %v1276, %v1313
        %v1330 = vadd.f32 %v1277, %v1314
        %v1331 = vadd.f32 %v1278, %v1315
        %v1332 = vadd.f32 %v1279, %v1316
        %v1333 = vadd.f32 %v1280, %v1317
        %v1334 = vadd.f32 %v1281, %v1318
        %v1335 = vadd.f32 %v1282, %v1319
        %v1336 = vadd.f32 %v1283, %v1320
        %v1337 = vld [vmem:[%s1284 + $0x1] sm:$0xff]
        %v1338 = vld [vmem:[%s1284 + $0x9] sm:$0xff]
        %v1339 = vld [vmem:[%s1284 + $0x19] sm:$0xff]
        %v1340 = vld [vmem:[%s1284 + $0x21] sm:$0xff]
        %v1341 = vld [vmem:[%s1284 + $0x31] sm:$0xff]
        %v1342 = vld [vmem:[%s1284 + $0x39] sm:$0xff]
        %v1343 = vld [vmem:[%s1284 + $0x49] sm:$0xff]
        %v1344 = vld [vmem:[%s1284 + $0x51] sm:$0xff]
        %v1345 = vld [vmem:[%s1284 + $0x61] sm:$0xff]
        %v1346 = vld [vmem:[%s1284 + $0x69] sm:$0xff]
        %v1347 = vld [vmem:[%s1284 + $0x79] sm:$0xff]
        %v1348 = vld [vmem:[%s1284 + $0x81] sm:$0xff]
        %v1349 = vld [vmem:[%s1284 + $0x91] sm:$0xff]
        %v1350 = vld [vmem:[%s1284 + $0x99] sm:$0xff]
        %v1351 = vld [vmem:[%s1284 + $0xa9] sm:$0xff]
        %v1352 = vld [vmem:[%s1284 + $0xb1] sm:$0xff]
        %v1353 = vlaneseq
        %v1354 = vshrl.u32 %v1353, 7
        %v1355 = vsub.s32 1, %v1354
        %v1356 = vrot.slane %v971, %v1355
        %v1357 = vmul.f32 %v1337, %v1356
        %v1358 = vmul.f32 %v1338, %v1356
        %v1359 = vmul.f32 %v1339, %v1356
        %v1360 = vmul.f32 %v1340, %v1356
        %v1361 = vmul.f32 %v1341, %v1356
        %v1362 = vmul.f32 %v1342, %v1356
        %v1363 = vmul.f32 %v1343, %v1356
        %v1364 = vmul.f32 %v1344, %v1356
        %v1365 = vmul.f32 %v1345, %v1356
        %v1366 = vmul.f32 %v1346, %v1356
        %v1367 = vmul.f32 %v1347, %v1356
        %v1368 = vmul.f32 %v1348, %v1356
        %v1369 = vmul.f32 %v1349, %v1356
        %v1370 = vmul.f32 %v1350, %v1356
        %v1371 = vmul.f32 %v1351, %v1356
        %v1372 = vmul.f32 %v1352, %v1356
        %v1373 = vadd.f32 %v1321, %v1357
        %v1374 = vadd.f32 %v1322, %v1358
        %v1375 = vadd.f32 %v1323, %v1359
        %v1376 = vadd.f32 %v1324, %v1360
        %v1377 = vadd.f32 %v1325, %v1361
        %v1378 = vadd.f32 %v1326, %v1362
        %v1379 = vadd.f32 %v1327, %v1363
        %v1380 = vadd.f32 %v1328, %v1364
        %v1381 = vadd.f32 %v1329, %v1365
        %v1382 = vadd.f32 %v1330, %v1366
        %v1383 = vadd.f32 %v1331, %v1367
        %v1384 = vadd.f32 %v1332, %v1368
        %v1385 = vadd.f32 %v1333, %v1369
        %v1386 = vadd.f32 %v1334, %v1370
        %v1387 = vadd.f32 %v1335, %v1371
        %v1388 = vadd.f32 %v1336, %v1372
        %v1389 = vld [vmem:[%s1284 + $0x2] sm:$0xff]
        %v1390 = vld [vmem:[%s1284 + $0xa] sm:$0xff]
        %v1391 = vld [vmem:[%s1284 + $0x1a] sm:$0xff]
        %v1392 = vld [vmem:[%s1284 + $0x22] sm:$0xff]
        %v1393 = vld [vmem:[%s1284 + $0x32] sm:$0xff]
        %v1394 = vld [vmem:[%s1284 + $0x3a] sm:$0xff]
        %v1395 = vld [vmem:[%s1284 + $0x4a] sm:$0xff]
        %v1396 = vld [vmem:[%s1284 + $0x52] sm:$0xff]
        %v1397 = vld [vmem:[%s1284 + $0x62] sm:$0xff]
        %v1398 = vld [vmem:[%s1284 + $0x6a] sm:$0xff]
        %v1399 = vld [vmem:[%s1284 + $0x7a] sm:$0xff]
        %v1400 = vld [vmem:[%s1284 + $0x82] sm:$0xff]
        %v1401 = vld [vmem:[%s1284 + $0x92] sm:$0xff]
        %v1402 = vld [vmem:[%s1284 + $0x9a] sm:$0xff]
        %v1403 = vld [vmem:[%s1284 + $0xaa] sm:$0xff]
        %v1404 = vld [vmem:[%s1284 + $0xb2] sm:$0xff]
        %v1405 = vlaneseq
        %v1406 = vshrl.u32 %v1405, 7
        %v1407 = vsub.s32 2, %v1406
        %v1408 = vrot.slane %v971, %v1407
        %v1409 = vmul.f32 %v1389, %v1408
        %v1410 = vmul.f32 %v1390, %v1408
        %v1411 = vmul.f32 %v1391, %v1408
        %v1412 = vmul.f32 %v1392, %v1408
        %v1413 = vmul.f32 %v1393, %v1408
        %v1414 = vmul.f32 %v1394, %v1408
        %v1415 = vmul.f32 %v1395, %v1408
        %v1416 = vmul.f32 %v1396, %v1408
        %v1417 = vmul.f32 %v1397, %v1408
        %v1418 = vmul.f32 %v1398, %v1408
        %v1419 = vmul.f32 %v1399, %v1408
        %v1420 = vmul.f32 %v1400, %v1408
        %v1421 = vmul.f32 %v1401, %v1408
        %v1422 = vmul.f32 %v1402, %v1408
        %v1423 = vmul.f32 %v1403, %v1408
        %v1424 = vmul.f32 %v1404, %v1408
        %v1425 = vadd.f32 %v1373, %v1409
        %v1426 = vadd.f32 %v1374, %v1410
        %v1427 = vadd.f32 %v1375, %v1411
        %v1428 = vadd.f32 %v1376, %v1412
        %v1429 = vadd.f32 %v1377, %v1413
        %v1430 = vadd.f32 %v1378, %v1414
        %v1431 = vadd.f32 %v1379, %v1415
        %v1432 = vadd.f32 %v1380, %v1416
        %v1433 = vadd.f32 %v1381, %v1417
        %v1434 = vadd.f32 %v1382, %v1418
        %v1435 = vadd.f32 %v1383, %v1419
        %v1436 = vadd.f32 %v1384, %v1420
        %v1437 = vadd.f32 %v1385, %v1421
        %v1438 = vadd.f32 %v1386, %v1422
        %v1439 = vadd.f32 %v1387, %v1423
        %v1440 = vadd.f32 %v1388, %v1424
        %v1441 = vld [vmem:[#allocation14] sm:$0x1]
        %v1443 = vlaneseq
        %v1444 = vshrl.u32 %v1443, 7
        %v1445 = vsub.s32 0, %v1444
        %v1446 = vrot.slane %v1441, %v1445
        %v1448 = vadd.f32 %v1425, %v1446
        %v1449 = vadd.f32 %v1426, %v1446
        %v1450 = vadd.f32 %v1427, %v1446
        %v1451 = vadd.f32 %v1428, %v1446
        %v1452 = vadd.f32 %v1429, %v1446
        %v1453 = vadd.f32 %v1430, %v1446
        %v1454 = vadd.f32 %v1431, %v1446
        %v1455 = vadd.f32 %v1432, %v1446
        %v1456 = vadd.f32 %v1433, %v1446
        %v1457 = vadd.f32 %v1434, %v1446
        %v1458 = vadd.f32 %v1435, %v1446
        %v1459 = vadd.f32 %v1436, %v1446
        %v1460 = vadd.f32 %v1437, %v1446
        %v1461 = vadd.f32 %v1438, %v1446
        %v1462 = vadd.f32 %v1439, %v1446
        %v1463 = vadd.f32 %v1440, %v1446
        %vm1464 = vcmask 261120
        %1465 = vst.msk [vmem:[%s511] sm:$0xff] %vm1464, %v1448
        %1466 = vst.msk [vmem:[%s511 + $0x8] sm:$0xff] %vm1464, %v1449
        %1467 = vst.msk [vmem:[%s511 + $0x10] sm:$0xff] %vm1464, %v1450
        %1468 = vst.msk [vmem:[%s511 + $0x18] sm:$0xff] %vm1464, %v1451
        %1469 = vst.msk [vmem:[%s511 + $0x20] sm:$0xff] %vm1464, %v1452
        %1470 = vst.msk [vmem:[%s511 + $0x28] sm:$0xff] %vm1464, %v1453
        %1471 = vst.msk [vmem:[%s511 + $0x30] sm:$0xff] %vm1464, %v1454
        %1472 = vst.msk [vmem:[%s511 + $0x38] sm:$0xff] %vm1464, %v1455
        %1473 = vst.msk [vmem:[%s511 + $0x40] sm:$0xff] %vm1464, %v1456
        %1474 = vst.msk [vmem:[%s511 + $0x48] sm:$0xff] %vm1464, %v1457
        %1475 = vst.msk [vmem:[%s511 + $0x50] sm:$0xff] %vm1464, %v1458
        %1476 = vst.msk [vmem:[%s511 + $0x58] sm:$0xff] %vm1464, %v1459
        %1477 = vst.msk [vmem:[%s511 + $0x60] sm:$0xff] %vm1464, %v1460
        %1478 = vst.msk [vmem:[%s511 + $0x68] sm:$0xff] %vm1464, %v1461
        %1479 = vst.msk [vmem:[%s511 + $0x70] sm:$0xff] %vm1464, %v1462
        %1480 = vst.msk [vmem:[%s511 + $0x78] sm:$0xff] %vm1464, %v1463
        %1497 = vrot.lane.b32.xlu0 %v1448, 96
        %v1498 = vpop.permute.xlu0 %1497
        %1499 = vrot.lane.b32.xlu0 %v1449, 96
        %v1500 = vpop.permute.xlu0 %1499
        %1501 = vrot.lane.b32.xlu0 %v1450, 96
        %v1502 = vpop.permute.xlu0 %1501
        %1503 = vrot.lane.b32.xlu0 %v1451, 96
        %v1504 = vpop.permute.xlu0 %1503
        %1505 = vrot.lane.b32.xlu0 %v1452, 96
        %v1506 = vpop.permute.xlu0 %1505
        %1507 = vrot.lane.b32.xlu0 %v1453, 96
        %v1508 = vpop.permute.xlu0 %1507
        %1509 = vrot.lane.b32.xlu0 %v1454, 96
        %v1510 = vpop.permute.xlu0 %1509
        %1511 = vrot.lane.b32.xlu0 %v1455, 96
        %v1512 = vpop.permute.xlu0 %1511
        %1513 = vrot.lane.b32.xlu0 %v1456, 96
        %v1514 = vpop.permute.xlu0 %1513
        %1515 = vrot.lane.b32.xlu0 %v1457, 96
        %v1516 = vpop.permute.xlu0 %1515
        %1517 = vrot.lane.b32.xlu0 %v1458, 96
        %v1518 = vpop.permute.xlu0 %1517
        %1519 = vrot.lane.b32.xlu0 %v1459, 96
        %v1520 = vpop.permute.xlu0 %1519
        %1521 = vrot.lane.b32.xlu0 %v1460, 96
        %v1522 = vpop.permute.xlu0 %1521
        %1523 = vrot.lane.b32.xlu0 %v1461, 96
        %v1524 = vpop.permute.xlu0 %1523
        %1525 = vrot.lane.b32.xlu0 %v1462, 96
        %v1526 = vpop.permute.xlu0 %1525
        %1527 = vrot.lane.b32.xlu0 %v1463, 96
        %v1528 = vpop.permute.xlu0 %1527
        %1545 = vst.msk [vmem:[%s518] sm:$0xff] %vm555, %v1498
        %1546 = vst.msk [vmem:[%s518 + $0x8] sm:$0xff] %vm555, %v1500
        %1547 = vst.msk [vmem:[%s518 + $0x10] sm:$0xff] %vm555, %v1502
        %1548 = vst.msk [vmem:[%s518 + $0x18] sm:$0xff] %vm555, %v1504
        %1549 = vst.msk [vmem:[%s518 + $0x20] sm:$0xff] %vm555, %v1506
        %1550 = vst.msk [vmem:[%s518 + $0x28] sm:$0xff] %vm555, %v1508
        %1551 = vst.msk [vmem:[%s518 + $0x30] sm:$0xff] %vm555, %v1510
        %1552 = vst.msk [vmem:[%s518 + $0x38] sm:$0xff] %vm555, %v1512
        %1553 = vst.msk [vmem:[%s518 + $0x40] sm:$0xff] %vm555, %v1514
        %1554 = vst.msk [vmem:[%s518 + $0x48] sm:$0xff] %vm555, %v1516
        %1555 = vst.msk [vmem:[%s518 + $0x50] sm:$0xff] %vm555, %v1518
        %1556 = vst.msk [vmem:[%s518 + $0x58] sm:$0xff] %vm555, %v1520
        %1557 = vst.msk [vmem:[%s518 + $0x60] sm:$0xff] %vm555, %v1522
        %1558 = vst.msk [vmem:[%s518 + $0x68] sm:$0xff] %vm555, %v1524
        %1559 = vst.msk [vmem:[%s518 + $0x70] sm:$0xff] %vm555, %v1526
        %1560 = vst.msk [vmem:[%s518 + $0x78] sm:$0xff] %vm555, %v1528
        %s1561 = sand.u32 %s240, 1
        %s1562 = scalar_lea.sflag [#allocation5], %s1561
        %s1563 = sand.u32 %s240, 1
        %s1564 = smul.addr %s1563, 128
        %s1565 = scalar_lea.vmem [#allocation15], %s1564
        %s1566 = sand.u32 %s268, 1
        %s1567 = scalar_lea.sflag [#allocation17], %s1566
        %s1568 = sand.u32 %s268, 1
        %s1569 = smul.addr %s1568, 128
        %s1570 = scalar_lea.vmem [#allocation16], %s1569
        // Predicated region
        $region77: #{attention_forward.3} parent=47 // pred_check
          %p1571 = pneg %p250
        $region78: #{attention_forward.3} parent=47 // pred_check_branch
          %1573 = sbr.rel (%p1571) target = $region80
        $region79: #{attention_forward.3} parent=47 // pred_region
          %s1574 = smul.u32 8, %s39
          %s1576 = ssub.s32 2048, 2048
          %1577 = vsyncadd %s1562, %s1576
          %s1578 = smul.addr %s1574, 2
          %s1579 = smul.addr %s38, 32
          %s1580 = sadd.s32 %s1578, %s1579
          %s1581 = smul.addr %s1580, 128
          %s1582 = scalar_lea.hbm %s7, %s1581
          %s1583 = sshll.u32 %s1565, 4
          %s1584 = int_to_ptr.vmem [resolvable:$true] %s1583
          %1589 = dma.vmem_to_hbm [thread:$0]  %s1584, 2048, %s1582, %s1562, 128, 128, 8
        $region80: #{attention_forward.3} parent=47 // pred_fallthru
          _
        // Predicated region
        $region81: #{attention_forward.3} parent=47 // pred_check
          %p1590 = pneg %p278
        $region82: #{attention_forward.3} parent=47 // pred_check_branch
          %1592 = sbr.rel (%p1590) target = $region84
        $region83: #{attention_forward.3} parent=47 // pred_region
          %s1593 = smul.u32 8, %s39
          %s1595 = ssub.s32 2048, 2048
          %1596 = vsyncadd %s1567, %s1595
          %s1597 = smul.addr %s1593, 2
          %s1598 = smul.addr %s38, 32
          %s1599 = sadd.s32 %s1597, %s1598
          %s1600 = smul.addr %s1599, 128
          %s1601 = scalar_lea.hbm %s8, %s1600
          %s1602 = sshll.u32 %s1570, 4
          %s1603 = int_to_ptr.vmem [resolvable:$true] %s1602
          %1608 = dma.vmem_to_hbm [thread:$0]  %s1603, 2048, %s1601, %s1567, 128, 128, 8
        $region84: #{attention_forward.3} parent=47 // pred_fallthru
          _
      $region48: #{attention_forward.3} parent=5 // pred_fallthru
        _
      %p1609 = scmp.le.s32.totalorder 2, %s29
      // Predicated region
      $region85: #{attention_forward.3} parent=5 // pred_check
        %p1610 = pneg %p1609
      $region86: #{attention_forward.3} parent=5 // pred_check_branch
        %1612 = sbr.rel (%p1610) target = $region88
      $region87: #{attention_forward.3} parent=5 // pred_region
        %s1613 = ssub.s32 %s29, 2
        // Predicated region
        $region89: #{attention_forward.3} parent=87 // pred_check
          %p1614 = pneg %p256
        $region90: #{attention_forward.3} parent=87 // pred_check_branch
          %1616 = sbr.rel (%p1614) target = $region92
        $region91: #{attention_forward.3} parent=87 // pred_region
          %s1617 = sand.u32 %s241, 1
          %s1618 = scalar_lea.sflag [#allocation5], %s1617
          %s1619 = sand.u32 %s241, 1
          %s1620 = smul.addr %s1619, 128
          %s1621 = scalar_lea.vmem [#allocation15], %s1620
          %1622 = dma.done %s1618, 2048
        $region92: #{attention_forward.3} parent=87 // pred_fallthru
          _
        // Predicated region
        $region93: #{attention_forward.3} parent=87 // pred_check
          %p1623 = pneg %p284
        $region94: #{attention_forward.3} parent=87 // pred_check_branch
          %1625 = sbr.rel (%p1623) target = $region96
        $region95: #{attention_forward.3} parent=87 // pred_region
          %s1626 = sand.u32 %s269, 1
          %s1627 = scalar_lea.sflag [#allocation17], %s1626
          %s1628 = sand.u32 %s269, 1
          %s1629 = smul.addr %s1628, 128
          %s1630 = scalar_lea.vmem [#allocation16], %s1629
          %1631 = dma.done %s1627, 2048
        $region96: #{attention_forward.3} parent=87 // pred_fallthru
          _
      $region88: #{attention_forward.3} parent=5 // pred_fallthru
        _
    $region6: #{attention_forward.3} parent=1 // loop_footer
      %s33 = sadd.s32 1, %s29
    $region7: #{attention_forward.3} parent=1 // loop_footer_branch
      %28 = sbr.rel target = $region3
    $region8: #{attention_forward.3} parent=1 // loop_exit
      _
    %1632 = vsyncpa [#allocation4], 1
    %s1633 = scalar_lea.sflag [#allocation4], 1
    %1634 = vsyncpa %s1633, 1
    %1635 = vsyncpa [#allocation7], 1
    %s1636 = scalar_lea.sflag [#allocation7], 1
    %1637 = vsyncpa %s1636, 1
    %1638 = vsyncpa [#allocation10], 1
    %1639 = vsyncpa [#allocation13], 1
    %1640 = vsyncpa [#allocation5], 1
    %s1641 = scalar_lea.sflag [#allocation5], 1
    %1642 = vsyncpa %s1641, 1
    %1643 = vsyncpa [#allocation17], 1
    %s1644 = scalar_lea.sflag [#allocation17], 1
    %1645 = vsyncpa %s1644, 1

// kernel: attention_forward.4
$region0: #{attention_forward.4}
  #allocation0 [shape = 'u32[]', space=smem, size = 0x4, offset = 0x4, fixed_abs, tag = 'smem constant byte address 0x4 - core index']
  #allocation1 [shape = 'u32[144,128]{1,0:T(1,128)}', space=vmem, size = 0x12000, scoped, tag = 'internal scratch']
  #allocation2 [shape = 'f32[16,16]{1,0:T(8,128)}', space=vmem, size = 0x2000, scoped, tag = 'scratch operand']
  #allocation3 [shape = 'f32[1,32]{1,0:T(1,128)}', space=vmem, size = 0x200, scoped, tag = 'scratch operand']
  %s0 = inlined_call_operand.hbm [shape: f32[2,256,32], index: 0, kind: input, shape index: {}]
  %s1 = inlined_call_operand.hbm [shape: f32[4,1], index: 1, kind: input, shape index: {}]
  %s2 = inlined_call_operand.hbm [shape: f32[16,16], index: 2, kind: input, shape index: {}]
  %s3 = inlined_call_operand.hbm [shape: f32[16,16], index: 3, kind: input, shape index: {}]
  %s4 = inlined_call_operand.hbm [shape: f32[4,16], index: 4, kind: input, shape index: {}]
  %s5 = inlined_call_operand.hbm [shape: f32[16,16], index: 5, kind: input, shape index: {}]
  %s6 = inlined_call_operand.hbm [shape: f32[4,4], index: 6, kind: input, shape index: {}]
  %s7 = inlined_call_operand.hbm [shape: f32[4,1], index: 7, kind: input, shape index: {}]
  %s8 = inlined_call_operand.hbm [shape: f32[4,4], index: 8, kind: input, shape index: {}]
  %s9 = inlined_call_operand.hbm [shape: f32[4,1], index: 9, kind: input, shape index: {}]
  %s10 = inlined_call_operand.hbm [shape: f32[4,64], index: 10, kind: input, shape index: {}]
  %s11 = inlined_call_operand.hbm [shape: f32[16,16], index: 11, kind: input, shape index: {}]
  %s12 = inlined_call_operand.hbm [shape: f32[2,16,16], index: 12, kind: output, shape index: {}]
  %s13 = sld [smem:[#allocation0]]
  $region137: #{attention_forward.4} parent=0
    _
  %s15 = ssub.s32 1, %s13
  %s16 = scalar_select 0, %s15, %s13
  $region1: #{attention_forward.4} parent=0
    #allocation4 [shape = 'u8[131072]{0}', space=vmem, size = 0x20000, scoped, tag = 'input window, operand 0']
    #allocation5 [shape = 's32[2]{0}', space=sflag, size = 0x8, scoped, tag = 'scoped memory for attention_forward.4']
    #allocation6 [shape = 's32[2]{0}', space=sflag, size = 0x8, scoped, tag = 'scoped memory for attention_forward.4']
    #allocation7 [shape = 'u8[2048]{0}', space=vmem, size = 0x800, scoped, tag = 'input window, operand 1, single buffered']
    #allocation8 [shape = 's32[1]{0}', space=sflag, size = 0x4, scoped, tag = 'scoped memory for attention_forward.4']
    #allocation9 [shape = 'u8[8192]{0}', space=vmem, size = 0x2000, scoped, tag = 'input window, operand 2, single buffered']
    #allocation10 [shape = 'u8[8192]{0}', space=vmem, size = 0x2000, scoped, tag = 'input window, operand 3, single buffered']
    #allocation11 [shape = 's32[1]{0}', space=sflag, size = 0x4, scoped, tag = 'scoped memory for attention_forward.4']
    #allocation12 [shape = 'u8[2048]{0}', space=vmem, size = 0x800, scoped, tag = 'input window, operand 4, single buffered']
    #allocation13 [shape = 'u8[8192]{0}', space=vmem, size = 0x2000, scoped, tag = 'input window, operand 5, single buffered']
    #allocation14 [shape = 's32[1]{0}', space=sflag, size = 0x4, scoped, tag = 'scoped memory for attention_forward.4']
    #allocation15 [shape = 'u8[2048]{0}', space=vmem, size = 0x800, scoped, tag = 'input window, operand 6, single buffered']
    #allocation16 [shape = 'u8[2048]{0}', space=vmem, size = 0x800, scoped, tag = 'input window, operand 7, single buffered']
    #allocation17 [shape = 's32[1]{0}', space=sflag, size = 0x4, scoped, tag = 'scoped memory for attention_forward.4']
    #allocation18 [shape = 'u8[2048]{0}', space=vmem, size = 0x800, scoped, tag = 'input window, operand 8, single buffered']
    #allocation19 [shape = 'u8[2048]{0}', space=vmem, size = 0x800, scoped, tag = 'input window, operand 9, single buffered']
    #allocation20 [shape = 's32[1]{0}', space=sflag, size = 0x4, scoped, tag = 'scoped memory for attention_forward.4']
    #allocation21 [shape = 'u8[2048]{0}', space=vmem, size = 0x800, scoped, tag = 'input window, operand 10, single buffered']
    #allocation22 [shape = 'u8[8192]{0}', space=vmem, size = 0x2000, scoped, tag = 'input window, operand 11, single buffered']
    #allocation23 [shape = 's32[1]{0}', space=sflag, size = 0x4, scoped, tag = 'scoped memory for attention_forward.4']
    #allocation24 [shape = 'u8[16384]{0}', space=vmem, size = 0x4000, scoped, tag = 'output window, operand 0']
    %17 = vsyncpa [#allocation5], 0
    %s18 = scalar_lea.sflag [#allocation5], 1
    %19 = vsyncpa %s18, 0
    %20 = vsyncpa [#allocation8], 0
    %21 = vsyncpa [#allocation11], 0
    %22 = vsyncpa [#allocation14], 0
    %23 = vsyncpa [#allocation17], 0
    %24 = vsyncpa [#allocation20], 0
    %25 = vsyncpa [#allocation23], 0
    %26 = vsyncpa [#allocation6], 0
    %s27 = scalar_lea.sflag [#allocation6], 1
    %28 = vsyncpa %s27, 0
    loop: start=0, step=1, limit=6
    $region2: #{attention_forward.4} parent=1 // loop_pre_header
      _
    $region3: #{attention_forward.4} parent=1 // loop_header
      %s30 = sphi 0, %s34
      %p31 = scmp.ge.s32.totalorder %s30, 6
      %s37 = sphi 0, %s49
      %s38 = sphi 0, %s45
      %s39 = sphi 0, %s37
      %s40 = sphi 0, %s38
      %s41 = sphi 0, %s39
      %s42 = sphi 0, %s40
      %s54 = sphi 0, %s56
      %s57 = sphi 0, %s54
      %s58 = sphi 0, %s57
      %s74 = sphi 0, %s58
      %s78 = sphi 0, %s78
      %s80 = sphi 0, %s78
      %s81 = sphi 0, %s80
      %s95 = sphi 0, %s81
      %s99 = sphi 0, %s99
      %s101 = sphi 0, %s99
      %s102 = sphi 0, %s101
      %s116 = sphi 0, %s102
      %s120 = sphi 0, %s120
      %s122 = sphi 0, %s120
      %s123 = sphi 0, %s122
      %s137 = sphi 0, %s123
      %s141 = sphi 0, %s141
      %s143 = sphi 0, %s141
      %s144 = sphi 0, %s143
      %s158 = sphi 0, %s144
      %s162 = sphi 0, %s162
      %s164 = sphi 0, %s162
      %s165 = sphi 0, %s164
      %s179 = sphi 0, %s165
      %s183 = sphi 0, %s183
      %s185 = sphi 0, %s183
      %s186 = sphi 0, %s185
      %s200 = sphi 0, %s186
      %s204 = sphi 0, %s204
      %s206 = sphi 0, %s204
      %s207 = sphi 0, %s206
      %s221 = sphi 0, %s207
      %s225 = sphi 0, %s225
      %s227 = sphi 0, %s225
      %s228 = sphi 0, %s227
      %s242 = sphi 0, %s228
      %s246 = sphi 0, %s246
      %s248 = sphi 0, %s246
      %s249 = sphi 0, %s248
      %s263 = sphi 0, %s249
      %s267 = sphi 0, %s267
      %s269 = sphi 0, %s267
      %s270 = sphi 0, %s269
      %s284 = sphi 0, %s270
      %s288 = sphi 0, %s288
      %s290 = sphi 0, %s288
      %s291 = sphi 0, %s290
      %s305 = sphi 0, %s291
      %s311 = sphi 0, %s313
      %s314 = sphi 0, %s311
      %s315 = sphi 0, %s314
      %s331 = sphi 0, %s315
    $region4: #{attention_forward.4} parent=1 // loop_header_branch
      %33 = sbr.rel (%p31) target = $region8
    $region5: #{attention_forward.4} parent=1 // loop_body
      %s35 = ssub.s32 %s30, 1
      %s36 = ssub.s32 %s30, 2
      %s43 = sadd.s32 1, %s38
      %p44 = scmp.ge.s32.totalorder %s43, 2
      %s45 = scalar_select %p44, 0, %s43
      %s46 = sadd.s32 1, %s37
      %s47 = scalar_select %p44, %s46, %s37
      %p48 = scmp.ge.s32.totalorder %s47, 2
      %s49 = scalar_select %p48, 0, %s47
      %s50 = ssub.s32 %s37, %s49
      %s51 = ssub.s32 %s38, %s45
      %s52 = sor.u32 %s50, %s51
      %p53 = scmp.eq.s32.totalorder %s52, 0
      %s55 = sadd.s32 %s54, 1
      %s56 = scalar_select %p53, %s54, %s55
      %p59 = pneg %p53
      %p60 = scmp.eq.s32.totalorder %s30, 3
      %p61 = por %p59, %p60
      %p62 = scmp.ne.s32.totalorder %s54, %s57
      %p63 = scmp.eq.s32.totalorder %s30, 0
      %p64 = por %p62, %p63
      %p65 = scmp.ne.s32.totalorder %s54, %s57
      %p66 = scmp.eq.s32.totalorder %s35, 3
      %p67 = por %p65, %p66
      %p68 = scmp.ne.s32.totalorder %s57, %s58
      %p69 = scmp.eq.s32.totalorder %s35, 0
      %p70 = por %p68, %p69
      %p71 = scmp.ne.s32.totalorder %s57, %s58
      %p72 = scmp.eq.s32.totalorder %s36, 3
      %p73 = por %p71, %p72
      %p75 = scmp.ne.s32.totalorder %s58, %s74
      %p76 = scmp.eq.s32.totalorder %s36, 0
      %p77 = por %p75, %p76
      %s79 = sadd.s32 %s78, 1
      %p82 = scmp.eq.s32.totalorder %s30, 3
      %p83 = scmp.ne.s32.totalorder %s78, %s80
      %p84 = scmp.eq.s32.totalorder %s30, 0
      %p85 = por %p83, %p84
      %p86 = scmp.ne.s32.totalorder %s78, %s80
      %p87 = scmp.eq.s32.totalorder %s35, 3
      %p88 = por %p86, %p87
      %p89 = scmp.ne.s32.totalorder %s80, %s81
      %p90 = scmp.eq.s32.totalorder %s35, 0
      %p91 = por %p89, %p90
      %p92 = scmp.ne.s32.totalorder %s80, %s81
      %p93 = scmp.eq.s32.totalorder %s36, 3
      %p94 = por %p92, %p93
      %p96 = scmp.ne.s32.totalorder %s81, %s95
      %p97 = scmp.eq.s32.totalorder %s36, 0
      %p98 = por %p96, %p97
      %s100 = sadd.s32 %s99, 1
      %p103 = scmp.eq.s32.totalorder %s30, 3
      %p104 = scmp.ne.s32.totalorder %s99, %s101
      %p105 = scmp.eq.s32.totalorder %s30, 0
      %p106 = por %p104, %p105
      %p107 = scmp.ne.s32.totalorder %s99, %s101
      %p108 = scmp.eq.s32.totalorder %s35, 3
      %p109 = por %p107, %p108
      %p110 = scmp.ne.s32.totalorder %s101, %s102
      %p111 = scmp.eq.s32.totalorder %s35, 0
      %p112 = por %p110, %p111
      %p113 = scmp.ne.s32.totalorder %s101, %s102
      %p114 = scmp.eq.s32.totalorder %s36, 3
      %p115 = por %p113, %p114
      %p117 = scmp.ne.s32.totalorder %s102, %s116
      %p118 = scmp.eq.s32.totalorder %s36, 0
      %p119 = por %p117, %p118
      %s121 = sadd.s32 %s120, 1
      %p124 = scmp.eq.s32.totalorder %s30, 3
      %p125 = scmp.ne.s32.totalorder %s120, %s122
      %p126 = scmp.eq.s32.totalorder %s30, 0
      %p127 = por %p125, %p126
      %p128 = scmp.ne.s32.totalorder %s120, %s122
      %p129 = scmp.eq.s32.totalorder %s35, 3
      %p130 = por %p128, %p129
      %p131 = scmp.ne.s32.totalorder %s122, %s123
      %p132 = scmp.eq.s32.totalorder %s35, 0
      %p133 = por %p131, %p132
      %p134 = scmp.ne.s32.totalorder %s122, %s123
      %p135 = scmp.eq.s32.totalorder %s36, 3
      %p136 = por %p134, %p135
      %p138 = scmp.ne.s32.totalorder %s123, %s137
      %p139 = scmp.eq.s32.totalorder %s36, 0
      %p140 = por %p138, %p139
      %s142 = sadd.s32 %s141, 1
      %p145 = scmp.eq.s32.totalorder %s30, 3
      %p146 = scmp.ne.s32.totalorder %s141, %s143
      %p147 = scmp.eq.s32.totalorder %s30, 0
      %p148 = por %p146, %p147
      %p149 = scmp.ne.s32.totalorder %s141, %s143
      %p150 = scmp.eq.s32.totalorder %s35, 3
      %p151 = por %p149, %p150
      %p152 = scmp.ne.s32.totalorder %s143, %s144
      %p153 = scmp.eq.s32.totalorder %s35, 0
      %p154 = por %p152, %p153
      %p155 = scmp.ne.s32.totalorder %s143, %s144
      %p156 = scmp.eq.s32.totalorder %s36, 3
      %p157 = por %p155, %p156
      %p159 = scmp.ne.s32.totalorder %s144, %s158
      %p160 = scmp.eq.s32.totalorder %s36, 0
      %p161 = por %p159, %p160
      %s163 = sadd.s32 %s162, 1
      %p166 = scmp.eq.s32.totalorder %s30, 3
      %p167 = scmp.ne.s32.totalorder %s162, %s164
      %p168 = scmp.eq.s32.totalorder %s30, 0
      %p169 = por %p167, %p168
      %p170 = scmp.ne.s32.totalorder %s162, %s164
      %p171 = scmp.eq.s32.totalorder %s35, 3
      %p172 = por %p170, %p171
      %p173 = scmp.ne.s32.totalorder %s164, %s165
      %p174 = scmp.eq.s32.totalorder %s35, 0
      %p175 = por %p173, %p174
      %p176 = scmp.ne.s32.totalorder %s164, %s165
      %p177 = scmp.eq.s32.totalorder %s36, 3
      %p178 = por %p176, %p177
      %p180 = scmp.ne.s32.totalorder %s165, %s179
      %p181 = scmp.eq.s32.totalorder %s36, 0
      %p182 = por %p180, %p181
      %s184 = sadd.s32 %s183, 1
      %p187 = scmp.eq.s32.totalorder %s30, 3
      %p188 = scmp.ne.s32.totalorder %s183, %s185
      %p189 = scmp.eq.s32.totalorder %s30, 0
      %p190 = por %p188, %p189
      %p191 = scmp.ne.s32.totalorder %s183, %s185
      %p192 = scmp.eq.s32.totalorder %s35, 3
      %p193 = por %p191, %p192
      %p194 = scmp.ne.s32.totalorder %s185, %s186
      %p195 = scmp.eq.s32.totalorder %s35, 0
      %p196 = por %p194, %p195
      %p197 = scmp.ne.s32.totalorder %s185, %s186
      %p198 = scmp.eq.s32.totalorder %s36, 3
      %p199 = por %p197, %p198
      %p201 = scmp.ne.s32.totalorder %s186, %s200
      %p202 = scmp.eq.s32.totalorder %s36, 0
      %p203 = por %p201, %p202
      %s205 = sadd.s32 %s204, 1
      %p208 = scmp.eq.s32.totalorder %s30, 3
      %p209 = scmp.ne.s32.totalorder %s204, %s206
      %p210 = scmp.eq.s32.totalorder %s30, 0
      %p211 = por %p209, %p210
      %p212 = scmp.ne.s32.totalorder %s204, %s206
      %p213 = scmp.eq.s32.totalorder %s35, 3
      %p214 = por %p212, %p213
      %p215 = scmp.ne.s32.totalorder %s206, %s207
      %p216 = scmp.eq.s32.totalorder %s35, 0
      %p217 = por %p215, %p216
      %p218 = scmp.ne.s32.totalorder %s206, %s207
      %p219 = scmp.eq.s32.totalorder %s36, 3
      %p220 = por %p218, %p219
      %p222 = scmp.ne.s32.totalorder %s207, %s221
      %p223 = scmp.eq.s32.totalorder %s36, 0
      %p224 = por %p222, %p223
      %s226 = sadd.s32 %s225, 1
      %p229 = scmp.eq.s32.totalorder %s30, 3
      %p230 = scmp.ne.s32.totalorder %s225, %s227
      %p231 = scmp.eq.s32.totalorder %s30, 0
      %p232 = por %p230, %p231
      %p233 = scmp.ne.s32.totalorder %s225, %s227
      %p234 = scmp.eq.s32.totalorder %s35, 3
      %p235 = por %p233, %p234
      %p236 = scmp.ne.s32.totalorder %s227, %s228
      %p237 = scmp.eq.s32.totalorder %s35, 0
      %p238 = por %p236, %p237
      %p239 = scmp.ne.s32.totalorder %s227, %s228
      %p240 = scmp.eq.s32.totalorder %s36, 3
      %p241 = por %p239, %p240
      %p243 = scmp.ne.s32.totalorder %s228, %s242
      %p244 = scmp.eq.s32.totalorder %s36, 0
      %p245 = por %p243, %p244
      %s247 = sadd.s32 %s246, 1
      %p250 = scmp.eq.s32.totalorder %s30, 3
      %p251 = scmp.ne.s32.totalorder %s246, %s248
      %p252 = scmp.eq.s32.totalorder %s30, 0
      %p253 = por %p251, %p252
      %p254 = scmp.ne.s32.totalorder %s246, %s248
      %p255 = scmp.eq.s32.totalorder %s35, 3
      %p256 = por %p254, %p255
      %p257 = scmp.ne.s32.totalorder %s248, %s249
      %p258 = scmp.eq.s32.totalorder %s35, 0
      %p259 = por %p257, %p258
      %p260 = scmp.ne.s32.totalorder %s248, %s249
      %p261 = scmp.eq.s32.totalorder %s36, 3
      %p262 = por %p260, %p261
      %p264 = scmp.ne.s32.totalorder %s249, %s263
      %p265 = scmp.eq.s32.totalorder %s36, 0
      %p266 = por %p264, %p265
      %s268 = sadd.s32 %s267, 1
      %p271 = scmp.eq.s32.totalorder %s30, 3
      %p272 = scmp.ne.s32.totalorder %s267, %s269
      %p273 = scmp.eq.s32.totalorder %s30, 0
      %p274 = por %p272, %p273
      %p275 = scmp.ne.s32.totalorder %s267, %s269
      %p276 = scmp.eq.s32.totalorder %s35, 3
      %p277 = por %p275, %p276
      %p278 = scmp.ne.s32.totalorder %s269, %s270
      %p279 = scmp.eq.s32.totalorder %s35, 0
      %p280 = por %p278, %p279
      %p281 = scmp.ne.s32.totalorder %s269, %s270
      %p282 = scmp.eq.s32.totalorder %s36, 3
      %p283 = por %p281, %p282
      %p285 = scmp.ne.s32.totalorder %s270, %s284
      %p286 = scmp.eq.s32.totalorder %s36, 0
      %p287 = por %p285, %p286
      %s289 = sadd.s32 %s288, 1
      %p292 = scmp.eq.s32.totalorder %s30, 3
      %p293 = scmp.ne.s32.totalorder %s288, %s290
      %p294 = scmp.eq.s32.totalorder %s30, 0
      %p295 = por %p293, %p294
      %p296 = scmp.ne.s32.totalorder %s288, %s290
      %p297 = scmp.eq.s32.totalorder %s35, 3
      %p298 = por %p296, %p297
      %p299 = scmp.ne.s32.totalorder %s290, %s291
      %p300 = scmp.eq.s32.totalorder %s35, 0
      %p301 = por %p299, %p300
      %p302 = scmp.ne.s32.totalorder %s290, %s291
      %p303 = scmp.eq.s32.totalorder %s36, 3
      %p304 = por %p302, %p303
      %p306 = scmp.ne.s32.totalorder %s291, %s305
      %p307 = scmp.eq.s32.totalorder %s36, 0
      %p308 = por %p306, %p307
      %s309 = ssub.s32 %s37, %s49
      %p310 = scmp.eq.s32.totalorder %s309, 0
      %s312 = sadd.s32 %s311, 1
      %s313 = scalar_select %p310, %s311, %s312
      %p316 = pneg %p310
      %p317 = scmp.eq.s32.totalorder %s30, 3
      %p318 = por %p316, %p317
      %p319 = scmp.ne.s32.totalorder %s311, %s314
      %p320 = scmp.eq.s32.totalorder %s30, 0
      %p321 = por %p319, %p320
      %p322 = scmp.ne.s32.totalorder %s311, %s314
      %p323 = scmp.eq.s32.totalorder %s35, 3
      %p324 = por %p322, %p323
      %p325 = scmp.ne.s32.totalorder %s314, %s315
      %p326 = scmp.eq.s32.totalorder %s35, 0
      %p327 = por %p325, %p326
      %p328 = scmp.ne.s32.totalorder %s314, %s315
      %p329 = scmp.eq.s32.totalorder %s36, 3
      %p330 = por %p328, %p329
      %p332 = scmp.ne.s32.totalorder %s315, %s331
      %p333 = scmp.eq.s32.totalorder %s36, 0
      %p334 = por %p332, %p333
      %p335 = scmp.le.s32.totalorder 1, %s30
      %p336 = scmp.lt.s32.totalorder %s30, 5
      %p337 = pnand %p335, %p336
      %p338 = pneg %p337
      // Predicated region
      $region9: #{attention_forward.4} parent=5 // pred_check
        _
      $region10: #{attention_forward.4} parent=5 // pred_check_branch
        %340 = sbr.rel (%p337) target = $region12
      $region11: #{attention_forward.4} parent=5 // pred_region
        %s341 = ssub.s32 %s30, 1
        // Predicated region
        $region13: #{attention_forward.4} parent=11 // pred_check
          %p342 = pneg %p91
        $region14: #{attention_forward.4} parent=11 // pred_check_branch
          %344 = sbr.rel (%p342) target = $region16
        $region15: #{attention_forward.4} parent=11 // pred_region
          %s346 = ssub.s32 64, 64
          %347 = vsyncadd [#allocation8], %s346
          %s349 = sshll.u32 [#allocation7], 4
          %s350 = int_to_ptr.vmem [resolvable:$true] %s349
          %352 = dma.hbm_to_vmem [thread:$0]  %s1, 64, %s350, [#allocation8]
        $region16: #{attention_forward.4} parent=11 // pred_fallthru
          _
        // Predicated region
        $region17: #{attention_forward.4} parent=11 // pred_check
          %p353 = pneg %p112
        $region18: #{attention_forward.4} parent=11 // pred_check_branch
          %355 = sbr.rel (%p353) target = $region20
        $region19: #{attention_forward.4} parent=11 // pred_region
          %s357 = ssub.s32 256, 256
          %358 = vsyncadd [#allocation8], %s357
          %s359 = sshll.u32 [#allocation9], 4
          %s360 = int_to_ptr.vmem [resolvable:$true] %s359
          %365 = dma.hbm_to_vmem [thread:$0]  %s2, 256, %s360, [#allocation8], 128, 128, 8
        $region20: #{attention_forward.4} parent=11 // pred_fallthru
          _
        // Predicated region
        $region21: #{attention_forward.4} parent=11 // pred_check
          %p366 = pneg %p133
        $region22: #{attention_forward.4} parent=11 // pred_check_branch
          %368 = sbr.rel (%p366) target = $region24
        $region23: #{attention_forward.4} parent=11 // pred_region
          %s370 = ssub.s32 256, 256
          %371 = vsyncadd [#allocation11], %s370
          %s372 = sshll.u32 [#allocation10], 4
          %s373 = int_to_ptr.vmem [resolvable:$true] %s372
          %378 = dma.hbm_to_vmem [thread:$0]  %s3, 256, %s373, [#allocation11], 128, 128, 8
        $region24: #{attention_forward.4} parent=11 // pred_fallthru
          _
        // Predicated region
        $region25: #{attention_forward.4} parent=11 // pred_check
          %p379 = pneg %p154
        $region26: #{attention_forward.4} parent=11 // pred_check_branch
          %381 = sbr.rel (%p379) target = $region28
        $region27: #{attention_forward.4} parent=11 // pred_region
          %s383 = ssub.s32 64, 64
          %384 = vsyncadd [#allocation11], %s383
          %s386 = sshll.u32 [#allocation12], 4
          %s387 = int_to_ptr.vmem [resolvable:$true] %s386
          %389 = dma.hbm_to_vmem [thread:$0]  %s4, 64, %s387, [#allocation11]
        $region28: #{attention_forward.4} parent=11 // pred_fallthru
          _
        // Predicated region
        $region29: #{attention_forward.4} parent=11 // pred_check
          %p390 = pneg %p175
        $region30: #{attention_forward.4} parent=11 // pred_check_branch
          %392 = sbr.rel (%p390) target = $region32
        $region31: #{attention_forward.4} parent=11 // pred_region
          %s394 = ssub.s32 256, 256
          %395 = vsyncadd [#allocation14], %s394
          %s396 = sshll.u32 [#allocation13], 4
          %s397 = int_to_ptr.vmem [resolvable:$true] %s396
          %402 = dma.hbm_to_vmem [thread:$0]  %s5, 256, %s397, [#allocation14], 128, 128, 8
        $region32: #{attention_forward.4} parent=11 // pred_fallthru
          _
        // Predicated region
        $region33: #{attention_forward.4} parent=11 // pred_check
          %p403 = pneg %p196
        $region34: #{attention_forward.4} parent=11 // pred_check_branch
          %405 = sbr.rel (%p403) target = $region36
        $region35: #{attention_forward.4} parent=11 // pred_region
          %s407 = ssub.s32 64, 64
          %408 = vsyncadd [#allocation14], %s407
          %s410 = sshll.u32 [#allocation15], 4
          %s411 = int_to_ptr.vmem [resolvable:$true] %s410
          %413 = dma.hbm_to_vmem [thread:$0]  %s6, 64, %s411, [#allocation14]
        $region36: #{attention_forward.4} parent=11 // pred_fallthru
          _
        // Predicated region
        $region37: #{attention_forward.4} parent=11 // pred_check
          %p414 = pneg %p217
        $region38: #{attention_forward.4} parent=11 // pred_check_branch
          %416 = sbr.rel (%p414) target = $region40
        $region39: #{attention_forward.4} parent=11 // pred_region
          %s418 = ssub.s32 64, 64
          %419 = vsyncadd [#allocation17], %s418
          %s421 = sshll.u32 [#allocation16], 4
          %s422 = int_to_ptr.vmem [resolvable:$true] %s421
          %424 = dma.hbm_to_vmem [thread:$0]  %s7, 64, %s422, [#allocation17]
        $region40: #{attention_forward.4} parent=11 // pred_fallthru
          _
        // Predicated region
        $region41: #{attention_forward.4} parent=11 // pred_check
          %p425 = pneg %p238
        $region42: #{attention_forward.4} parent=11 // pred_check_branch
          %427 = sbr.rel (%p425) target = $region44
        $region43: #{attention_forward.4} parent=11 // pred_region
          %s429 = ssub.s32 64, 64
          %430 = vsyncadd [#allocation17], %s429
          %s432 = sshll.u32 [#allocation18], 4
          %s433 = int_to_ptr.vmem [resolvable:$true] %s432
          %435 = dma.hbm_to_vmem [thread:$0]  %s8, 64, %s433, [#allocation17]
        $region44: #{attention_forward.4} parent=11 // pred_fallthru
          _
        // Predicated region
        $region45: #{attention_forward.4} parent=11 // pred_check
          %p436 = pneg %p259
        $region46: #{attention_forward.4} parent=11 // pred_check_branch
          %438 = sbr.rel (%p436) target = $region48
        $region47: #{attention_forward.4} parent=11 // pred_region
          %s440 = ssub.s32 64, 64
          %441 = vsyncadd [#allocation20], %s440
          %s443 = sshll.u32 [#allocation19], 4
          %s444 = int_to_ptr.vmem [resolvable:$true] %s443
          %446 = dma.hbm_to_vmem [thread:$0]  %s9, 64, %s444, [#allocation20]
        $region48: #{attention_forward.4} parent=11 // pred_fallthru
          _
        // Predicated region
        $region49: #{attention_forward.4} parent=11 // pred_check
          %p447 = pneg %p280
        $region50: #{attention_forward.4} parent=11 // pred_check_branch
          %449 = sbr.rel (%p447) target = $region52
        $region51: #{attention_forward.4} parent=11 // pred_region
          %s451 = ssub.s32 64, 64
          %452 = vsyncadd [#allocation20], %s451
          %s454 = sshll.u32 [#allocation21], 4
          %s455 = int_to_ptr.vmem [resolvable:$true] %s454
          %457 = dma.hbm_to_vmem [thread:$0]  %s10, 64, %s455, [#allocation20]
        $region52: #{attention_forward.4} parent=11 // pred_fallthru
          _
        // Predicated region
        $region53: #{attention_forward.4} parent=11 // pred_check
          %p458 = pneg %p301
        $region54: #{attention_forward.4} parent=11 // pred_check_branch
          %460 = sbr.rel (%p458) target = $region56
        $region55: #{attention_forward.4} parent=11 // pred_region
          %s462 = ssub.s32 256, 256
          %463 = vsyncadd [#allocation23], %s462
          %s464 = sshll.u32 [#allocation22], 4
          %s465 = int_to_ptr.vmem [resolvable:$true] %s464
          %470 = dma.hbm_to_vmem [thread:$0]  %s11, 256, %s465, [#allocation23], 128, 128, 8
        $region56: #{attention_forward.4} parent=11 // pred_fallthru
          _
      $region12: #{attention_forward.4} parent=5 // pred_fallthru
        _
      %p471 = scmp.lt.s32.totalorder %s30, 4
      // Predicated region
      $region57: #{attention_forward.4} parent=5 // pred_check
        %p472 = pneg %p471
      $region58: #{attention_forward.4} parent=5 // pred_check_branch
        %474 = sbr.rel (%p472) target = $region60
      $region59: #{attention_forward.4} parent=5 // pred_region
        // Predicated region
        $region61: #{attention_forward.4} parent=59 // pred_check
          %p475 = pneg %p64
        $region62: #{attention_forward.4} parent=59 // pred_check_branch
          %477 = sbr.rel (%p475) target = $region64
        $region63: #{attention_forward.4} parent=59 // pred_region
          %s478 = sand.u32 %s54, 1
          %s479 = scalar_lea.sflag [#allocation5], %s478
          %s480 = sand.u32 %s54, 1
          %s481 = smul.addr %s480, 128
          %s482 = scalar_lea.vmem [#allocation4], %s481
          %s483 = smul.u32 16, %s38
          %s485 = ssub.s32 2048, 2048
          %486 = vsyncadd %s479, %s485
          %s487 = smul.addr %s37, 32
          %s488 = sadd.s32 %s483, %s487
          %s489 = smul.addr %s488, 128
          %s490 = scalar_lea.hbm %s0, %s489
          %s491 = sshll.u32 %s482, 4
          %s492 = int_to_ptr.vmem [resolvable:$true] %s491
          %497 = dma.hbm_to_vmem [thread:$0]  %s490, 2048, %s492, %s479, 128, 128, 8
        $region64: #{attention_forward.4} parent=59 // pred_fallthru
          _
      $region60: #{attention_forward.4} parent=5 // pred_fallthru
        _
      %p498 = scmp.le.s32.totalorder 1, %s30
      %p499 = scmp.lt.s32.totalorder %s30, 5
      %p500 = pnand %p498, %p499
      %p501 = pneg %p500
      // Predicated region
      $region65: #{attention_forward.4} parent=5 // pred_check
        _
      $region66: #{attention_forward.4} parent=5 // pred_check_branch
        %503 = sbr.rel (%p500) target = $region68
      $region67: #{attention_forward.4} parent=5 // pred_region
        %s504 = ssub.s32 %s30, 1
        %s505 = sand.u32 %s57, 1
        %s506 = scalar_lea.sflag [#allocation5], %s505
        %s507 = sand.u32 %s57, 1
        %s508 = smul.addr %s507, 128
        %s509 = scalar_lea.vmem [#allocation4], %s508
        // Predicated region
        $region69: #{attention_forward.4} parent=67 // pred_check
          %p510 = pneg %p70
        $region70: #{attention_forward.4} parent=67 // pred_check_branch
          %512 = sbr.rel (%p510) target = $region72
        $region71: #{attention_forward.4} parent=67 // pred_region
          %513 = dma.done %s506, 2048
        $region72: #{attention_forward.4} parent=67 // pred_fallthru
          _
        // Predicated region
        $region73: #{attention_forward.4} parent=67 // pred_check
          %p514 = pneg %p91
        $region74: #{attention_forward.4} parent=67 // pred_check_branch
          %516 = sbr.rel (%p514) target = $region76
        $region75: #{attention_forward.4} parent=67 // pred_region
          %517 = dma.done [#allocation8], 64
        $region76: #{attention_forward.4} parent=67 // pred_fallthru
          _
        // Predicated region
        $region77: #{attention_forward.4} parent=67 // pred_check
          %p518 = pneg %p112
        $region78: #{attention_forward.4} parent=67 // pred_check_branch
          %520 = sbr.rel (%p518) target = $region80
        $region79: #{attention_forward.4} parent=67 // pred_region
          %521 = dma.done [#allocation8], 256
        $region80: #{attention_forward.4} parent=67 // pred_fallthru
          _
        // Predicated region
        $region81: #{attention_forward.4} parent=67 // pred_check
          %p522 = pneg %p133
        $region82: #{attention_forward.4} parent=67 // pred_check_branch
          %524 = sbr.rel (%p522) target = $region84
        $region83: #{attention_forward.4} parent=67 // pred_region
          %525 = dma.done [#allocation11], 256
        $region84: #{attention_forward.4} parent=67 // pred_fallthru
          _
        // Predicated region
        $region85: #{attention_forward.4} parent=67 // pred_check
          %p526 = pneg %p154
        $region86: #{attention_forward.4} parent=67 // pred_check_branch
          %528 = sbr.rel (%p526) target = $region88
        $region87: #{attention_forward.4} parent=67 // pred_region
          %529 = dma.done [#allocation11], 64
        $region88: #{attention_forward.4} parent=67 // pred_fallthru
          _
        // Predicated region
        $region89: #{attention_forward.4} parent=67 // pred_check
          %p530 = pneg %p175
        $region90: #{attention_forward.4} parent=67 // pred_check_branch
          %532 = sbr.rel (%p530) target = $region92
        $region91: #{attention_forward.4} parent=67 // pred_region
          %533 = dma.done [#allocation14], 256
        $region92: #{attention_forward.4} parent=67 // pred_fallthru
          _
        // Predicated region
        $region93: #{attention_forward.4} parent=67 // pred_check
          %p534 = pneg %p196
        $region94: #{attention_forward.4} parent=67 // pred_check_branch
          %536 = sbr.rel (%p534) target = $region96
        $region95: #{attention_forward.4} parent=67 // pred_region
          %537 = dma.done [#allocation14], 64
        $region96: #{attention_forward.4} parent=67 // pred_fallthru
          _
        // Predicated region
        $region97: #{attention_forward.4} parent=67 // pred_check
          %p538 = pneg %p217
        $region98: #{attention_forward.4} parent=67 // pred_check_branch
          %540 = sbr.rel (%p538) target = $region100
        $region99: #{attention_forward.4} parent=67 // pred_region
          %541 = dma.done [#allocation17], 64
        $region100: #{attention_forward.4} parent=67 // pred_fallthru
          _
        // Predicated region
        $region101: #{attention_forward.4} parent=67 // pred_check
          %p542 = pneg %p238
        $region102: #{attention_forward.4} parent=67 // pred_check_branch
          %544 = sbr.rel (%p542) target = $region104
        $region103: #{attention_forward.4} parent=67 // pred_region
          %545 = dma.done [#allocation17], 64
        $region104: #{attention_forward.4} parent=67 // pred_fallthru
          _
        // Predicated region
        $region105: #{attention_forward.4} parent=67 // pred_check
          %p546 = pneg %p259
        $region106: #{attention_forward.4} parent=67 // pred_check_branch
          %548 = sbr.rel (%p546) target = $region108
        $region107: #{attention_forward.4} parent=67 // pred_region
          %549 = dma.done [#allocation20], 64
        $region108: #{attention_forward.4} parent=67 // pred_fallthru
          _
        // Predicated region
        $region109: #{attention_forward.4} parent=67 // pred_check
          %p550 = pneg %p280
        $region110: #{attention_forward.4} parent=67 // pred_check_branch
          %552 = sbr.rel (%p550) target = $region112
        $region111: #{attention_forward.4} parent=67 // pred_region
          %553 = dma.done [#allocation20], 64
        $region112: #{attention_forward.4} parent=67 // pred_fallthru
          _
        // Predicated region
        $region113: #{attention_forward.4} parent=67 // pred_check
          %p554 = pneg %p301
        $region114: #{attention_forward.4} parent=67 // pred_check_branch
          %556 = sbr.rel (%p554) target = $region116
        $region115: #{attention_forward.4} parent=67 // pred_region
          %557 = dma.done [#allocation23], 256
        $region116: #{attention_forward.4} parent=67 // pred_fallthru
          _
        %s558 = sand.u32 %s57, 1
        %s559 = scalar_lea.sflag [#allocation5], %s558
        %s560 = sand.u32 %s57, 1
        %s561 = smul.addr %s560, 128
        %s562 = scalar_lea.vmem [#allocation4], %s561
        %p563 = pneg %p70
        %p564 = pneg %p67
        %p565 = pneg %p91
        %p566 = pneg %p88
        %p567 = pneg %p112
        %p568 = pneg %p109
        %p569 = pneg %p133
        %p570 = pneg %p130
        %p571 = pneg %p154
        %p572 = pneg %p151
        %p573 = pneg %p175
        %p574 = pneg %p172
        %p575 = pneg %p196
        %p576 = pneg %p193
        %p577 = pneg %p217
        %p578 = pneg %p214
        %p579 = pneg %p238
        %p580 = pneg %p235
        %p581 = pneg %p259
        %p582 = pneg %p256
        %p583 = pneg %p280
        %p584 = pneg %p277
        %p585 = pneg %p301
        %p586 = pneg %p298
        %p587 = pneg %p327
        %p588 = pneg %p324
        %s589 = sand.u32 %s314, 1
        %s590 = scalar_lea.sflag [#allocation6], %s589
        %s591 = sand.u32 %s314, 1
        %s592 = smul.addr %s591, 16
        %s593 = scalar_lea.vmem [#allocation24], %s592
        %s594 = smul.u32 16, %s40
        %p595 = scmp.eq.s32.totalorder %s40, 0
        // Predicated region
        $region117: #{attention_forward.4} parent=67 // pred_check
          %p596 = pneg %p595
        $region118: #{attention_forward.4} parent=67 // pred_check_branch
          %598 = sbr.rel (%p596) target = $region120
        $region119: #{attention_forward.4} parent=67 // pred_region
          %vm599 = vcmask 130048
          %600 = vst.msk [vmem:[#allocation2] sm:$0xff] %vm599, 0.0
          %601 = vst.msk [vmem:[#allocation2 + $0x8] sm:$0xff] %vm599, 0.0
          %vm602 = vcmask 253952
          %603 = vst.msk [vmem:[#allocation3] sm:$0x1] %vm602, 0.0
        $region120: #{attention_forward.4} parent=67 // pred_fallthru
          _
        %v604 = vld [vmem:[%s509] sm:$0xff]
        %v605 = vld [vmem:[%s509 + $0x8] sm:$0xff]
        %v606 = vld [vmem:[%s509 + $0x10] sm:$0xff]
        %v607 = vld [vmem:[%s509 + $0x18] sm:$0xff]
        %v608 = vld [vmem:[%s509 + $0x20] sm:$0xff]
        %v609 = vld [vmem:[%s509 + $0x28] sm:$0xff]
        %v610 = vld [vmem:[%s509 + $0x30] sm:$0xff]
        %v611 = vld [vmem:[%s509 + $0x38] sm:$0xff]
        %v612 = vld [vmem:[%s509 + $0x40] sm:$0xff]
        %v613 = vld [vmem:[%s509 + $0x48] sm:$0xff]
        %v614 = vld [vmem:[%s509 + $0x50] sm:$0xff]
        %v615 = vld [vmem:[%s509 + $0x58] sm:$0xff]
        %v616 = vld [vmem:[%s509 + $0x60] sm:$0xff]
        %v617 = vld [vmem:[%s509 + $0x68] sm:$0xff]
        %v618 = vld [vmem:[%s509 + $0x70] sm:$0xff]
        %v619 = vld [vmem:[%s509 + $0x78] sm:$0xff]
        %v620 = vld [vmem:[#allocation2] sm:$0xff]
        %v621 = vld [vmem:[#allocation2 + $0x8] sm:$0xff]
        %622 = vxpose.xlu0.b32.start [1/16] %v604, 128
        %623 = vxpose.xlu0.b32.cont [2/16] %v605, 128
        %624 = vxpose.xlu0.b32.cont [3/16] %v606, 128
        %625 = vxpose.xlu0.b32.cont [4/16] %v607, 128
        %626 = vxpose.xlu0.b32.cont [5/16] %v608, 128
        %627 = vxpose.xlu0.b32.cont [6/16] %v609, 128
        %628 = vxpose.xlu0.b32.cont [7/16] %v610, 128
        %629 = vxpose.xlu0.b32.cont [8/16] %v611, 128
        %630 = vxpose.xlu0.b32.cont [9/16] %v612, 128
        %631 = vxpose.xlu0.b32.cont [10/16] %v613, 128
        %632 = vxpose.xlu0.b32.cont [11/16] %v614, 128
        %633 = vxpose.xlu0.b32.cont [12/16] %v615, 128
        %634 = vxpose.xlu0.b32.cont [13/16] %v616, 128
        %635 = vxpose.xlu0.b32.cont [14/16] %v617, 128
        %636 = vxpose.xlu0.b32.cont [15/16] %v618, 128
        %637 = vxpose.xlu0.b32.end [16/16] %v619, 128
        %v638 = vpop.trf.xlu0
        %v639 = vpop.trf.xlu0
        %v640 = vpop.trf.xlu0
        %v641 = vpop.trf.xlu0
        %v642 = vpop.trf.xlu0
        %v643 = vpop.trf.xlu0
        %v644 = vpop.trf.xlu0
        %v645 = vpop.trf.xlu0
        %v646 = vpop.trf.xlu0
        %v647 = vpop.trf.xlu0
        %v648 = vpop.trf.xlu0
        %v649 = vpop.trf.xlu0
        %v650 = vpop.trf.xlu0
        %v651 = vpop.trf.xlu0
        %v652 = vpop.trf.xlu0
        %v653 = vpop.trf.xlu0
        %670 = vrot.lane.b32.xlu0 %v604, 112
        %v671 = vpop.permute.xlu0 %670
        %672 = vrot.lane.b32.xlu0 %v605, 112
        %v673 = vpop.permute.xlu0 %672
        %674 = vrot.lane.b32.xlu0 %v606, 112
        %v675 = vpop.permute.xlu0 %674
        %676 = vrot.lane.b32.xlu0 %v607, 112
        %v677 = vpop.permute.xlu0 %676
        %678 = vrot.lane.b32.xlu0 %v608, 112
        %v679 = vpop.permute.xlu0 %678
        %680 = vrot.lane.b32.xlu0 %v609, 112
        %v681 = vpop.permute.xlu0 %680
        %682 = vrot.lane.b32.xlu0 %v610, 112
        %v683 = vpop.permute.xlu0 %682
        %684 = vrot.lane.b32.xlu0 %v611, 112
        %v685 = vpop.permute.xlu0 %684
        %686 = vrot.lane.b32.xlu0 %v612, 112
        %v687 = vpop.permute.xlu0 %686
        %688 = vrot.lane.b32.xlu0 %v613, 112
        %v689 = vpop.permute.xlu0 %688
        %690 = vrot.lane.b32.xlu0 %v614, 112
        %v691 = vpop.permute.xlu0 %690
        %692 = vrot.lane.b32.xlu0 %v615, 112
        %v693 = vpop.permute.xlu0 %692
        %694 = vrot.lane.b32.xlu0 %v616, 112
        %v695 = vpop.permute.xlu0 %694
        %696 = vrot.lane.b32.xlu0 %v617, 112
        %v697 = vpop.permute.xlu0 %696
        %698 = vrot.lane.b32.xlu0 %v618, 112
        %v699 = vpop.permute.xlu0 %698
        %700 = vrot.lane.b32.xlu0 %v619, 112
        %v701 = vpop.permute.xlu0 %700
        %718 = vmatprep.subr.mxu0 0.0
        %719 = vmatpush1.msra.mxu0 %v671
        %720 = vmatprep.subr.mxu0 0.0
        %721 = vmatpush1.msra.mxu0 %v673
        %722 = vmatprep.subr.mxu0 0.0
        %723 = vmatpush1.msra.mxu0 %v675
        %724 = vmatprep.subr.mxu0 0.0
        %725 = vmatpush1.msra.mxu0 %v677
        %726 = vmatprep.subr.mxu0 0.0
        %727 = vmatpush1.msra.mxu0 %v679
        %728 = vmatprep.subr.mxu0 0.0
        %729 = vmatpush1.msra.mxu0 %v681
        %730 = vmatprep.subr.mxu0 0.0
        %731 = vmatpush1.msra.mxu0 %v683
        %732 = vmatprep.subr.mxu0 0.0
        %733 = vmatpush1.msra.mxu0 %v685
        %734 = vmatprep.subr.mxu0 0.0
        %735 = vmatpush1.msra.mxu0 %v687
        %736 = vmatprep.subr.mxu0 0.0
        %737 = vmatpush1.msra.mxu0 %v689
        %738 = vmatprep.subr.mxu0 0.0
        %739 = vmatpush1.msra.mxu0 %v691
        %740 = vmatprep.subr.mxu0 0.0
        %741 = vmatpush1.msra.mxu0 %v693
        %742 = vmatprep.subr.mxu0 0.0
        %743 = vmatpush1.msra.mxu0 %v695
        %744 = vmatprep.subr.mxu0 0.0
        %745 = vmatpush1.msra.mxu0 %v697
        %746 = vmatprep.subr.mxu0 0.0
        %747 = vmatpush1.msra.mxu0 %v699
        %748 = vmatprep.subr.mxu0 0.0
        %749 = vmatpush1.msra.mxu0 %v701
        %750 = vmatprep.subr.mxu0 0.0
        %751 = vmatpush1.msra.mxu0 0.0
        %752 = vmatprep.subr.mxu0 0.0
        %753 = vmatpush1.msra.mxu0 0.0
        %754 = vmatprep.subr.mxu0 0.0
        %755 = vmatpush1.msra.mxu0 0.0
        %756 = vmatprep.subr.mxu0 0.0
        %757 = vmatpush1.msra.mxu0 0.0
        %758 = vmatprep.subr.mxu0 0.0
        %759 = vmatpush1.msra.mxu0 0.0
        %760 = vmatprep.subr.mxu0 0.0
        %761 = vmatpush1.msra.mxu0 0.0
        %762 = vmatprep.subr.mxu0 0.0
        %763 = vmatpush1.msra.mxu0 0.0
        %764 = vmatprep.subr.mxu0 0.0
        %765 = vmatpush1.msra.mxu0 0.0
        %766 = vmatprep.subr.mxu0 0.0
        %767 = vmatpush1.msra.mxu0 0.0
        %768 = vmatprep.subr.mxu0 0.0
        %769 = vmatpush1.msra.mxu0 0.0
        %770 = vmatprep.subr.mxu0 0.0
        %771 = vmatpush1.msra.mxu0 0.0
        %772 = vmatprep.subr.mxu0 0.0
        %773 = vmatpush1.msra.mxu0 0.0
        %774 = vmatprep.subr.mxu0 0.0
        %775 = vmatpush1.msra.mxu0 0.0
        %776 = vmatprep.subr.mxu0 0.0
        %777 = vmatpush1.msra.mxu0 0.0
        %778 = vmatprep.subr.mxu0 0.0
        %779 = vmatpush1.msra.mxu0 0.0
        %780 = vmatprep.subr.mxu0 0.0
        %781 = vmatpush1.msra.mxu0 0.0
        %782 = vmatprep.mubr.f32.mxu0 0.0
        %783 = vmatmul.mubr.f32.gmra.mrb[0].mxu0 %v638
        %v784 = vpop.f32.mrb[0].mxu0
        %v785 = vadd.f32 0.0, %v784
        %v786 = vpop.f32.mrb[0].mxu0
        %787 = vmatprep.mubr.f32.mxu0 0.0
        %788 = vmatmul.mubr.f32.gmra.mrb[0].mxu0 %v639
        %v789 = vpop.f32.mrb[0].mxu0
        %v790 = vadd.f32 0.0, %v789
        %v791 = vpop.f32.mrb[0].mxu0
        %792 = vdwg.mxu0
        %v793 = vadd.f32 %v620, %v785
        %v794 = vadd.f32 %v621, %v790
        %vm795 = vcmask 130048
        %796 = vst.msk [vmem:[#allocation2] sm:$0xff] %vm795, %v793
        %797 = vst.msk [vmem:[#allocation2 + $0x8] sm:$0xff] %vm795, %v794
        %v798 = vld [vmem:[#allocation3] sm:$0x1]
        %v799 = vmul.f32 %v604, %v604
        %v800 = vmul.f32 %v605, %v605
        %v801 = vmul.f32 %v606, %v606
        %v802 = vmul.f32 %v607, %v607
        %v803 = vmul.f32 %v608, %v608
        %v804 = vmul.f32 %v609, %v609
        %v805 = vmul.f32 %v610, %v610
        %v806 = vmul.f32 %v611, %v611
        %v807 = vmul.f32 %v612, %v612
        %v808 = vmul.f32 %v613, %v613
        %v809 = vmul.f32 %v614, %v614
        %v810 = vmul.f32 %v615, %v615
        %v811 = vmul.f32 %v616, %v616
        %v812 = vmul.f32 %v617, %v617
        %v813 = vmul.f32 %v618, %v618
        %v814 = vmul.f32 %v619, %v619
        %vm815 = vcmask 261120
        %v816 = vsel %vm815, %v799, 0.0
        %v817 = vsel %vm815, %v800, 0.0
        %v818 = vadd.f32 %v816, %v817
        %v819 = vsel %vm815, %v801, 0.0
        %v820 = vadd.f32 %v818, %v819
        %v821 = vsel %vm815, %v802, 0.0
        %v822 = vadd.f32 %v820, %v821
        %v823 = vsel %vm815, %v803, 0.0
        %v824 = vadd.f32 %v822, %v823
        %v825 = vsel %vm815, %v804, 0.0
        %v826 = vadd.f32 %v824, %v825
        %v827 = vsel %vm815, %v805, 0.0
        %v828 = vadd.f32 %v826, %v827
        %v829 = vsel %vm815, %v806, 0.0
        %v830 = vadd.f32 %v828, %v829
        %v831 = vsel %vm815, %v807, 0.0
        %v832 = vadd.f32 %v830, %v831
        %v833 = vsel %vm815, %v808, 0.0
        %v834 = vadd.f32 %v832, %v833
        %v835 = vsel %vm815, %v809, 0.0
        %v836 = vadd.f32 %v834, %v835
        %v837 = vsel %vm815, %v810, 0.0
        %v838 = vadd.f32 %v836, %v837
        %v839 = vsel %vm815, %v811, 0.0
        %v840 = vadd.f32 %v838, %v839
        %v841 = vsel %vm815, %v812, 0.0
        %v842 = vadd.f32 %v840, %v841
        %v843 = vsel %vm815, %v813, 0.0
        %v844 = vadd.f32 %v842, %v843
        %v845 = vsel %vm815, %v814, 0.0
        %v846 = vadd.f32 %v844, %v845
        %v847 = vrot.slane %v846, 4
        %v848 = vadd.f32 %v846, %v847
        %v849 = vrot.slane %v848, 2
        %v850 = vadd.f32 %v848, %v849
        %v851 = vrot.slane %v850, 1
        %v852 = vadd.f32 %v850, %v851
        %v853 = vadd.f32 %v798, %v852
        %vm854 = vcmask 253952
        %855 = vst.msk [vmem:[#allocation3] sm:$0x1] %vm854, %v853
        %p856 = scmp.eq.s32.totalorder %s40, 1
        // Predicated region
        $region121: #{attention_forward.4} parent=67 // pred_check
          %p857 = pneg %p856
        $region122: #{attention_forward.4} parent=67 // pred_check_branch
          %859 = sbr.rel (%p857) target = $region124
        $region123: #{attention_forward.4} parent=67 // pred_region
          %v860 = vld [vmem:[#allocation3] sm:$0x1]
          %v861 = vmax.f32 %v860, 1e-24
          %v862 = vrsqrt.pop %v861
          %v863 = vld [vmem:[#allocation2] sm:$0xff]
          %v864 = vld [vmem:[#allocation2 + $0x8] sm:$0xff]
          %v865 = vld [vmem:[#allocation9] sm:$0xff]
          %v866 = vld [vmem:[#allocation9 + $0x8] sm:$0xff]
          %v867 = vld [vmem:[#allocation10] sm:$0xff]
          %v868 = vld [vmem:[#allocation10 + $0x8] sm:$0xff]
          %v869 = vld [vmem:[#allocation12] sm:$0xf]
          %v870 = vld [vmem:[#allocation13] sm:$0xff]
          %v871 = vld [vmem:[#allocation13 + $0x8] sm:$0xff]
          %v872 = vmul.f32 %v863, %v865
          %v873 = vmul.f32 %v864, %v866
          %v875 = vsel %vm795, %v872, 0
          %v878 = vsel %vm795, %v873, 0
          %880 = vmatprep.subr.mxu0 0.0
          %881 = vmatpush1.msra.mxu0 %v867
          %882 = vmatprep.subr.mxu0 0.0
          %883 = vmatpush1.msra.mxu0 %v868
          %884 = vmatprep.subr.mxu0 0.0
          %885 = vmatpush1.msra.mxu0 0.0
          %886 = vmatprep.subr.mxu0 0.0
          %887 = vmatpush1.msra.mxu0 0.0
          %888 = vmatprep.subr.mxu0 0.0
          %889 = vmatpush1.msra.mxu0 0.0
          %890 = vmatprep.subr.mxu0 0.0
          %891 = vmatpush1.msra.mxu0 0.0
          %892 = vmatprep.subr.mxu0 0.0
          %893 = vmatpush1.msra.mxu0 0.0
          %894 = vmatprep.subr.mxu0 0.0
          %895 = vmatpush1.msra.mxu0 0.0
          %896 = vmatprep.subr.mxu0 0.0
          %897 = vmatpush1.msra.mxu0 0.0
          %898 = vmatprep.subr.mxu0 0.0
          %899 = vmatpush1.msra.mxu0 0.0
          %900 = vmatprep.subr.mxu0 0.0
          %901 = vmatpush1.msra.mxu0 0.0
          %902 = vmatprep.subr.mxu0 0.0
          %903 = vmatpush1.msra.mxu0 0.0
          %904 = vmatprep.subr.mxu0 0.0
          %905 = vmatpush1.msra.mxu0 0.0
          %906 = vmatprep.subr.mxu0 0.0
          %907 = vmatpush1.msra.mxu0 0.0
          %908 = vmatprep.subr.mxu0 0.0
          %909 = vmatpush1.msra.mxu0 0.0
          %910 = vmatprep.subr.mxu0 0.0
          %911 = vmatpush1.msra.mxu0 0.0
          %912 = vmatprep.subr.mxu0 0.0
          %913 = vmatpush1.msra.mxu0 0.0
          %914 = vmatprep.subr.mxu0 0.0
          %915 = vmatpush1.msra.mxu0 0.0
          %916 = vmatprep.subr.mxu0 0.0
          %917 = vmatpush1.msra.mxu0 0.0
          %918 = vmatprep.subr.mxu0 0.0
          %919 = vmatpush1.msra.mxu0 0.0
          %920 = vmatprep.subr.mxu0 0.0
          %921 = vmatpush1.msra.mxu0 0.0
          %922 = vmatprep.subr.mxu0 0.0
          %923 = vmatpush1.msra.mxu0 0.0
          %924 = vmatprep.subr.mxu0 0.0
          %925 = vmatpush1.msra.mxu0 0.0
          %926 = vmatprep.subr.mxu0 0.0
          %927 = vmatpush1.msra.mxu0 0.0
          %928 = vmatprep.subr.mxu0 0.0
          %929 = vmatpush1.msra.mxu0 0.0
          %930 = vmatprep.subr.mxu0 0.0
          %931 = vmatpush1.msra.mxu0 0.0
          %932 = vmatprep.subr.mxu0 0.0
          %933 = vmatpush1.msra.mxu0 0.0
          %934 = vmatprep.subr.mxu0 0.0
          %935 = vmatpush1.msra.mxu0 0.0
          %936 = vmatprep.subr.mxu0 0.0
          %937 = vmatpush1.msra.mxu0 0.0
          %938 = vmatprep.subr.mxu0 0.0
          %939 = vmatpush1.msra.mxu0 0.0
          %940 = vmatprep.subr.mxu0 0.0
          %941 = vmatpush1.msra.mxu0 0.0
          %942 = vmatprep.subr.mxu0 0.0
          %943 = vmatpush1.msra.mxu0 0.0
          %944 = vmatprep.mubr.f32.mxu0 0.0
          %945 = vmatmul.mubr.f32.gmra.mrb[0].mxu0 %v875
          %v946 = vpop.f32.mrb[0].mxu0
          %v947 = vadd.f32 0.0, %v946
          %v948 = vpop.f32.mrb[0].mxu0
          %949 = vmatprep.mubr.f32.mxu0 0.0
          %950 = vmatmul.mubr.f32.gmra.mrb[0].mxu0 %v878
          %v951 = vpop.f32.mrb[0].mxu0
          %v952 = vadd.f32 0.0, %v951
          %v953 = vpop.f32.mrb[0].mxu0
          %954 = vdwg.mxu0
          %v955 = vmul.f32 %v947, %v870
          %v956 = vmul.f32 %v952, %v871
          %v958 = vsel %vm795, %v869, 0
          %960 = vmatprep.subr.mxu0 0.0
          %961 = vmatpush1.msra.mxu0 %v955
          %962 = vmatprep.subr.mxu0 0.0
          %963 = vmatpush1.msra.mxu0 %v956
          %964 = vmatprep.subr.mxu0 0.0
          %965 = vmatpush1.msra.mxu0 0.0
          %966 = vmatprep.subr.mxu0 0.0
          %967 = vmatpush1.msra.mxu0 0.0
          %968 = vmatprep.subr.mxu0 0.0
          %969 = vmatpush1.msra.mxu0 0.0
          %970 = vmatprep.subr.mxu0 0.0
          %971 = vmatpush1.msra.mxu0 0.0
          %972 = vmatprep.subr.mxu0 0.0
          %973 = vmatpush1.msra.mxu0 0.0
          %974 = vmatprep.subr.mxu0 0.0
          %975 = vmatpush1.msra.mxu0 0.0
          %976 = vmatprep.subr.mxu0 0.0
          %977 = vmatpush1.msra.mxu0 0.0
          %978 = vmatprep.subr.mxu0 0.0
          %979 = vmatpush1.msra.mxu0 0.0
          %980 = vmatprep.subr.mxu0 0.0
          %981 = vmatpush1.msra.mxu0 0.0
          %982 = vmatprep.subr.mxu0 0.0
          %983 = vmatpush1.msra.mxu0 0.0
          %984 = vmatprep.subr.mxu0 0.0
          %985 = vmatpush1.msra.mxu0 0.0
          %986 = vmatprep.subr.mxu0 0.0
          %987 = vmatpush1.msra.mxu0 0.0
          %988 = vmatprep.subr.mxu0 0.0
          %989 = vmatpush1.msra.mxu0 0.0
          %990 = vmatprep.subr.mxu0 0.0
          %991 = vmatpush1.msra.mxu0 0.0
          %992 = vmatprep.subr.mxu0 0.0
          %993 = vmatpush1.msra.mxu0 0.0
          %994 = vmatprep.subr.mxu0 0.0
          %995 = vmatpush1.msra.mxu0 0.0
          %996 = vmatprep.subr.mxu0 0.0
          %997 = vmatpush1.msra.mxu0 0.0
          %998 = vmatprep.subr.mxu0 0.0
          %999 = vmatpush1.msra.mxu0 0.0
          %1000 = vmatprep.subr.mxu0 0.0
          %1001 = vmatpush1.msra.mxu0 0.0
          %1002 = vmatprep.subr.mxu0 0.0
          %1003 = vmatpush1.msra.mxu0 0.0
          %1004 = vmatprep.subr.mxu0 0.0
          %1005 = vmatpush1.msra.mxu0 0.0
          %1006 = vmatprep.subr.mxu0 0.0
          %1007 = vmatpush1.msra.mxu0 0.0
          %1008 = vmatprep.subr.mxu0 0.0
          %1009 = vmatpush1.msra.mxu0 0.0
          %1010 = vmatprep.subr.mxu0 0.0
          %1011 = vmatpush1.msra.mxu0 0.0
          %1012 = vmatprep.subr.mxu0 0.0
          %1013 = vmatpush1.msra.mxu0 0.0
          %1014 = vmatprep.subr.mxu0 0.0
          %1015 = vmatpush1.msra.mxu0 0.0
          %1016 = vmatprep.subr.mxu0 0.0
          %1017 = vmatpush1.msra.mxu0 0.0
          %1018 = vmatprep.subr.mxu0 0.0
          %1019 = vmatpush1.msra.mxu0 0.0
          %1020 = vmatprep.subr.mxu0 0.0
          %1021 = vmatpush1.msra.mxu0 0.0
          %1022 = vmatprep.subr.mxu0 0.0
          %1023 = vmatpush1.msra.mxu0 0.0
          %1024 = vmatprep.mubr.f32.mxu0 0.0
          %1025 = vmatmul.mubr.f32.gmra.mrb[0].mxu0 %v958
          %v1026 = vpop.f32.mrb[0].mxu0
          %v1027 = vadd.f32 0.0, %v1026
          %v1028 = vpop.f32.mrb[0].mxu0
          %1029 = vdwg.mxu0
          %v1031 = vlaneseq
          %v1032 = vshrl.u32 %v1031, 7
          %v1033 = vsub.s32 0, %v1032
          %v1034 = vrot.slane %v862, %v1033
          %v1036 = vmul.f32 %v869, %v1034
          %v1038 = vsel %vm795, %v1036, 0
          %1040 = vmatprep.subr.mxu0 0.0
          %1041 = vmatpush1.msra.mxu0 %v870
          %1042 = vmatprep.subr.mxu0 0.0
          %1043 = vmatpush1.msra.mxu0 %v871
          %1044 = vmatprep.subr.mxu0 0.0
          %1045 = vmatpush1.msra.mxu0 0.0
          %1046 = vmatprep.subr.mxu0 0.0
          %1047 = vmatpush1.msra.mxu0 0.0
          %1048 = vmatprep.subr.mxu0 0.0
          %1049 = vmatpush1.msra.mxu0 0.0
          %1050 = vmatprep.subr.mxu0 0.0
          %1051 = vmatpush1.msra.mxu0 0.0
          %1052 = vmatprep.subr.mxu0 0.0
          %1053 = vmatpush1.msra.mxu0 0.0
          %1054 = vmatprep.subr.mxu0 0.0
          %1055 = vmatpush1.msra.mxu0 0.0
          %1056 = vmatprep.subr.mxu0 0.0
          %1057 = vmatpush1.msra.mxu0 0.0
          %1058 = vmatprep.subr.mxu0 0.0
          %1059 = vmatpush1.msra.mxu0 0.0
          %1060 = vmatprep.subr.mxu0 0.0
          %1061 = vmatpush1.msra.mxu0 0.0
          %1062 = vmatprep.subr.mxu0 0.0
          %1063 = vmatpush1.msra.mxu0 0.0
          %1064 = vmatprep.subr.mxu0 0.0
          %1065 = vmatpush1.msra.mxu0 0.0
          %1066 = vmatprep.subr.mxu0 0.0
          %1067 = vmatpush1.msra.mxu0 0.0
          %1068 = vmatprep.subr.mxu0 0.0
          %1069 = vmatpush1.msra.mxu0 0.0
          %1070 = vmatprep.subr.mxu0 0.0
          %1071 = vmatpush1.msra.mxu0 0.0
          %1072 = vmatprep.subr.mxu0 0.0
          %1073 = vmatpush1.msra.mxu0 0.0
          %1074 = vmatprep.subr.mxu0 0.0
          %1075 = vmatpush1.msra.mxu0 0.0
          %1076 = vmatprep.subr.mxu0 0.0
          %1077 = vmatpush1.msra.mxu0 0.0
          %1078 = vmatprep.subr.mxu0 0.0
          %1079 = vmatpush1.msra.mxu0 0.0
          %1080 = vmatprep.subr.mxu0 0.0
          %1081 = vmatpush1.msra.mxu0 0.0
          %1082 = vmatprep.subr.mxu0 0.0
          %1083 = vmatpush1.msra.mxu0 0.0
          %1084 = vmatprep.subr.mxu0 0.0
          %1085 = vmatpush1.msra.mxu0 0.0
          %1086 = vmatprep.subr.mxu0 0.0
          %1087 = vmatpush1.msra.mxu0 0.0
          %1088 = vmatprep.subr.mxu0 0.0
          %1089 = vmatpush1.msra.mxu0 0.0
          %1090 = vmatprep.subr.mxu0 0.0
          %1091 = vmatpush1.msra.mxu0 0.0
          %1092 = vmatprep.subr.mxu0 0.0
          %1093 = vmatpush1.msra.mxu0 0.0
          %1094 = vmatprep.subr.mxu0 0.0
          %1095 = vmatpush1.msra.mxu0 0.0
          %1096 = vmatprep.subr.mxu0 0.0
          %1097 = vmatpush1.msra.mxu0 0.0
          %1098 = vmatprep.subr.mxu0 0.0
          %1099 = vmatpush1.msra.mxu0 0.0
          %1100 = vmatprep.subr.mxu0 0.0
          %1101 = vmatpush1.msra.mxu0 0.0
          %1102 = vmatprep.subr.mxu0 0.0
          %1103 = vmatpush1.msra.mxu0 0.0
          %1104 = vmatprep.mubr.f32.mxu0 0.0
          %1105 = vmatmul.mubr.f32.gmra.mrb[0].mxu0 %v1038
          %v1106 = vpop.f32.mrb[0].mxu0
          %v1107 = vadd.f32 0.0, %v1106
          %v1108 = vpop.f32.mrb[0].mxu0
          %1109 = vdwg.mxu0
          %1110 = vrot.lane.b32.xlu0 %v1034, 112
          %v1111 = vpop.permute.xlu0 %1110
          %v1113 = vmul.f32 %v869, %v1111
          %v1115 = vsel %vm795, %v1113, 0
          %1117 = vmatprep.subr.mxu0 0.0
          %1118 = vmatpush1.msra.mxu0 %v867
          %1119 = vmatprep.subr.mxu0 0.0
          %1120 = vmatpush1.msra.mxu0 %v868
          %1121 = vmatprep.subr.mxu0 0.0
          %1122 = vmatpush1.msra.mxu0 0.0
          %1123 = vmatprep.subr.mxu0 0.0
          %1124 = vmatpush1.msra.mxu0 0.0
          %1125 = vmatprep.subr.mxu0 0.0
          %1126 = vmatpush1.msra.mxu0 0.0
          %1127 = vmatprep.subr.mxu0 0.0
          %1128 = vmatpush1.msra.mxu0 0.0
          %1129 = vmatprep.subr.mxu0 0.0
          %1130 = vmatpush1.msra.mxu0 0.0
          %1131 = vmatprep.subr.mxu0 0.0
          %1132 = vmatpush1.msra.mxu0 0.0
          %1133 = vmatprep.subr.mxu0 0.0
          %1134 = vmatpush1.msra.mxu0 0.0
          %1135 = vmatprep.subr.mxu0 0.0
          %1136 = vmatpush1.msra.mxu0 0.0
          %1137 = vmatprep.subr.mxu0 0.0
          %1138 = vmatpush1.msra.mxu0 0.0
          %1139 = vmatprep.subr.mxu0 0.0
          %1140 = vmatpush1.msra.mxu0 0.0
          %1141 = vmatprep.subr.mxu0 0.0
          %1142 = vmatpush1.msra.mxu0 0.0
          %1143 = vmatprep.subr.mxu0 0.0
          %1144 = vmatpush1.msra.mxu0 0.0
          %1145 = vmatprep.subr.mxu0 0.0
          %1146 = vmatpush1.msra.mxu0 0.0
          %1147 = vmatprep.subr.mxu0 0.0
          %1148 = vmatpush1.msra.mxu0 0.0
          %1149 = vmatprep.subr.mxu0 0.0
          %1150 = vmatpush1.msra.mxu0 0.0
          %1151 = vmatprep.subr.mxu0 0.0
          %1152 = vmatpush1.msra.mxu0 0.0
          %1153 = vmatprep.subr.mxu0 0.0
          %1154 = vmatpush1.msra.mxu0 0.0
          %1155 = vmatprep.subr.mxu0 0.0
          %1156 = vmatpush1.msra.mxu0 0.0
          %1157 = vmatprep.subr.mxu0 0.0
          %1158 = vmatpush1.msra.mxu0 0.0
          %1159 = vmatprep.subr.mxu0 0.0
          %1160 = vmatpush1.msra.mxu0 0.0
          %1161 = vmatprep.subr.mxu0 0.0
          %1162 = vmatpush1.msra.mxu0 0.0
          %1163 = vmatprep.subr.mxu0 0.0
          %1164 = vmatpush1.msra.mxu0 0.0
          %1165 = vmatprep.subr.mxu0 0.0
          %1166 = vmatpush1.msra.mxu0 0.0
          %1167 = vmatprep.subr.mxu0 0.0
          %1168 = vmatpush1.msra.mxu0 0.0
          %1169 = vmatprep.subr.mxu0 0.0
          %1170 = vmatpush1.msra.mxu0 0.0
          %1171 = vmatprep.subr.mxu0 0.0
          %1172 = vmatpush1.msra.mxu0 0.0
          %1173 = vmatprep.subr.mxu0 0.0
          %1174 = vmatpush1.msra.mxu0 0.0
          %1175 = vmatprep.subr.mxu0 0.0
          %1176 = vmatpush1.msra.mxu0 0.0
          %1177 = vmatprep.subr.mxu0 0.0
          %1178 = vmatpush1.msra.mxu0 0.0
          %1179 = vmatprep.subr.mxu0 0.0
          %1180 = vmatpush1.msra.mxu0 0.0
          %1181 = vmatprep.mubr.f32.mxu0 0.0
          %1182 = vmatmul.mubr.f32.gmra.mrb[0].mxu0 %v1115
          %v1183 = vpop.f32.mrb[0].mxu0
          %v1184 = vadd.f32 0.0, %v1183
          %v1185 = vpop.f32.mrb[0].mxu0
          %1186 = vdwg.mxu0
          %v1187 = vmul.f32 %v1027, %v1107
          %v1188 = vmul.f32 %v1187, %v1184
          %v1189 = vld [vmem:[#allocation7] sm:$0xf]
          %1191 = vset.pattern.permute.xlu0 0
          %1192 = vperm.xlu0 %1191, %v1189
          %v1193 = vpop.permute.xlu0 %1192
          %v1195 = vmul.f32 %v1188, %v1193
          %v1196 = vld [vmem:[#allocation15] sm:$0xf]
          %v1197 = vld [vmem:[#allocation16] sm:$0xf]
          %1199 = vset.pattern.permute.xlu0 0
          %1200 = vperm.xlu0 %1199, %v1197
          %v1201 = vpop.permute.xlu0 %1200
          %1203 = vxpose.xlu0.b32.start [1/16] %v1196, 128
          %1204 = vxpose.xlu0.b32.cont [2/16] 0.0, 128
          %1205 = vxpose.xlu0.b32.cont [3/16] 0.0, 128
          %1206 = vxpose.xlu0.b32.cont [4/16] 0.0, 128
          %1207 = vxpose.xlu0.b32.cont [5/16] 0.0, 128
          %1208 = vxpose.xlu0.b32.cont [6/16] 0.0, 128
          %1209 = vxpose.xlu0.b32.cont [7/16] 0.0, 128
          %1210 = vxpose.xlu0.b32.cont [8/16] 0.0, 128
          %1211 = vxpose.xlu0.b32.cont [9/16] 0.0, 128
          %1212 = vxpose.xlu0.b32.cont [10/16] 0.0, 128
          %1213 = vxpose.xlu0.b32.cont [11/16] 0.0, 128
          %1214 = vxpose.xlu0.b32.cont [12/16] 0.0, 128
          %1215 = vxpose.xlu0.b32.cont [13/16] 0.0, 128
          %1216 = vxpose.xlu0.b32.cont [14/16] 0.0, 128
          %1217 = vxpose.xlu0.b32.cont [15/16] 0.0, 128
          %1218 = vxpose.xlu0.b32.end [16/16] 0.0, 128
          %v1219 = vpop.trf.xlu0
          %v1220 = vpop.trf.xlu0
          %v1221 = vpop.trf.xlu0
          %v1222 = vpop.trf.xlu0
          %v1223 = vpop.trf.xlu0
          %v1224 = vpop.trf.xlu0
          %v1225 = vpop.trf.xlu0
          %v1226 = vpop.trf.xlu0
          %v1227 = vpop.trf.xlu0
          %v1228 = vpop.trf.xlu0
          %v1229 = vpop.trf.xlu0
          %v1230 = vpop.trf.xlu0
          %v1231 = vpop.trf.xlu0
          %v1232 = vpop.trf.xlu0
          %v1233 = vpop.trf.xlu0
          %v1234 = vpop.trf.xlu0
          %vm1235 = vcmask 31744
          %v1237 = vsel %vm1235, %v1219, 0
          %vm1239 = vcmask 1043456
          %v1241 = vsel %vm1239, %v1195, 0
          %1243 = vmatprep.subr.mxu0 0.0
          %1244 = vmatpush1.msra.mxu0 %v1241
          %1245 = vmatprep.subr.mxu0 0.0
          %1246 = vmatpush1.msra.mxu0 0.0
          %1247 = vmatprep.subr.mxu0 0.0
          %1248 = vmatpush1.msra.mxu0 0.0
          %1249 = vmatprep.subr.mxu0 0.0
          %1250 = vmatpush1.msra.mxu0 0.0
          %1251 = vmatprep.subr.mxu0 0.0
          %1252 = vmatpush1.msra.mxu0 0.0
          %1253 = vmatprep.subr.mxu0 0.0
          %1254 = vmatpush1.msra.mxu0 0.0
          %1255 = vmatprep.subr.mxu0 0.0
          %1256 = vmatpush1.msra.mxu0 0.0
          %1257 = vmatprep.subr.mxu0 0.0
          %1258 = vmatpush1.msra.mxu0 0.0
          %1259 = vmatprep.subr.mxu0 0.0
          %1260 = vmatpush1.msra.mxu0 0.0
          %1261 = vmatprep.subr.mxu0 0.0
          %1262 = vmatpush1.msra.mxu0 0.0
          %1263 = vmatprep.subr.mxu0 0.0
          %1264 = vmatpush1.msra.mxu0 0.0
          %1265 = vmatprep.subr.mxu0 0.0
          %1266 = vmatpush1.msra.mxu0 0.0
          %1267 = vmatprep.subr.mxu0 0.0
          %1268 = vmatpush1.msra.mxu0 0.0
          %1269 = vmatprep.subr.mxu0 0.0
          %1270 = vmatpush1.msra.mxu0 0.0
          %1271 = vmatprep.subr.mxu0 0.0
          %1272 = vmatpush1.msra.mxu0 0.0
          %1273 = vmatprep.subr.mxu0 0.0
          %1274 = vmatpush1.msra.mxu0 0.0
          %1275 = vmatprep.subr.mxu0 0.0
          %1276 = vmatpush1.msra.mxu0 0.0
          %1277 = vmatprep.subr.mxu0 0.0
          %1278 = vmatpush1.msra.mxu0 0.0
          %1279 = vmatprep.subr.mxu0 0.0
          %1280 = vmatpush1.msra.mxu0 0.0
          %1281 = vmatprep.subr.mxu0 0.0
          %1282 = vmatpush1.msra.mxu0 0.0
          %1283 = vmatprep.subr.mxu0 0.0
          %1284 = vmatpush1.msra.mxu0 0.0
          %1285 = vmatprep.subr.mxu0 0.0
          %1286 = vmatpush1.msra.mxu0 0.0
          %1287 = vmatprep.subr.mxu0 0.0
          %1288 = vmatpush1.msra.mxu0 0.0
          %1289 = vmatprep.subr.mxu0 0.0
          %1290 = vmatpush1.msra.mxu0 0.0
          %1291 = vmatprep.subr.mxu0 0.0
          %1292 = vmatpush1.msra.mxu0 0.0
          %1293 = vmatprep.subr.mxu0 0.0
          %1294 = vmatpush1.msra.mxu0 0.0
          %1295 = vmatprep.subr.mxu0 0.0
          %1296 = vmatpush1.msra.mxu0 0.0
          %1297 = vmatprep.subr.mxu0 0.0
          %1298 = vmatpush1.msra.mxu0 0.0
          %1299 = vmatprep.subr.mxu0 0.0
          %1300 = vmatpush1.msra.mxu0 0.0
          %1301 = vmatprep.subr.mxu0 0.0
          %1302 = vmatpush1.msra.mxu0 0.0
          %1303 = vmatprep.subr.mxu0 0.0
          %1304 = vmatpush1.msra.mxu0 0.0
          %1305 = vmatprep.subr.mxu0 0.0
          %1306 = vmatpush1.msra.mxu0 0.0
          %1307 = vmatprep.mubr.f32.mxu0 0.0
          %1308 = vmatmul.mubr.f32.gmra.mrb[0].mxu0 %v1237
          %v1309 = vpop.f32.mrb[0].mxu0
          %v1310 = vadd.f32 %v1201, %v1309
          %v1311 = vpop.f32.mrb[0].mxu0
          %1312 = vdwg.mxu0
          %v1313 = vld [vmem:[#allocation21] sm:$0xf]
          %1314 = vxpose.xlu0.b32.start [1/16] %v1310, 128
          %1315 = vxpose.xlu0.b32.cont [2/16] 0.0, 128
          %1316 = vxpose.xlu0.b32.cont [3/16] 0.0, 128
          %1317 = vxpose.xlu0.b32.cont [4/16] 0.0, 128
          %1318 = vxpose.xlu0.b32.cont [5/16] 0.0, 128
          %1319 = vxpose.xlu0.b32.cont [6/16] 0.0, 128
          %1320 = vxpose.xlu0.b32.cont [7/16] 0.0, 128
          %1321 = vxpose.xlu0.b32.cont [8/16] 0.0, 128
          %1322 = vxpose.xlu0.b32.cont [9/16] 0.0, 128
          %1323 = vxpose.xlu0.b32.cont [10/16] 0.0, 128
          %1324 = vxpose.xlu0.b32.cont [11/16] 0.0, 128
          %1325 = vxpose.xlu0.b32.cont [12/16] 0.0, 128
          %1326 = vxpose.xlu0.b32.cont [13/16] 0.0, 128
          %1327 = vxpose.xlu0.b32.cont [14/16] 0.0, 128
          %1328 = vxpose.xlu0.b32.cont [15/16] 0.0, 128
          %1329 = vxpose.xlu0.b32.end [16/16] 0.0, 128
          %v1330 = vpop.trf.xlu0
          %v1331 = vpop.trf.xlu0
          %v1332 = vpop.trf.xlu0
          %v1333 = vpop.trf.xlu0
          %v1334 = vpop.trf.xlu0
          %v1335 = vpop.trf.xlu0
          %v1336 = vpop.trf.xlu0
          %v1337 = vpop.trf.xlu0
          %v1338 = vpop.trf.xlu0
          %v1339 = vpop.trf.xlu0
          %v1340 = vpop.trf.xlu0
          %v1341 = vpop.trf.xlu0
          %v1342 = vpop.trf.xlu0
          %v1343 = vpop.trf.xlu0
          %v1344 = vpop.trf.xlu0
          %v1345 = vpop.trf.xlu0
          %v1347 = vsel %vm1235, %v1330, 0
          %v1350 = vsel %vm1235, %v1331, 0
          %v1353 = vsel %vm1239, %v1313, 0
          %1355 = vmatprep.subr.mxu0 0.0
          %1356 = vmatpush1.msra.mxu0 %v1353
          %1357 = vmatprep.subr.mxu0 0.0
          %1358 = vmatpush1.msra.mxu0 0.0
          %1359 = vmatprep.subr.mxu0 0.0
          %1360 = vmatpush1.msra.mxu0 0.0
          %1361 = vmatprep.subr.mxu0 0.0
          %1362 = vmatpush1.msra.mxu0 0.0
          %1363 = vmatprep.subr.mxu0 0.0
          %1364 = vmatpush1.msra.mxu0 0.0
          %1365 = vmatprep.subr.mxu0 0.0
          %1366 = vmatpush1.msra.mxu0 0.0
          %1367 = vmatprep.subr.mxu0 0.0
          %1368 = vmatpush1.msra.mxu0 0.0
          %1369 = vmatprep.subr.mxu0 0.0
          %1370 = vmatpush1.msra.mxu0 0.0
          %1371 = vmatprep.subr.mxu0 0.0
          %1372 = vmatpush1.msra.mxu0 0.0
          %1373 = vmatprep.subr.mxu0 0.0
          %1374 = vmatpush1.msra.mxu0 0.0
          %1375 = vmatprep.subr.mxu0 0.0
          %1376 = vmatpush1.msra.mxu0 0.0
          %1377 = vmatprep.subr.mxu0 0.0
          %1378 = vmatpush1.msra.mxu0 0.0
          %1379 = vmatprep.subr.mxu0 0.0
          %1380 = vmatpush1.msra.mxu0 0.0
          %1381 = vmatprep.subr.mxu0 0.0
          %1382 = vmatpush1.msra.mxu0 0.0
          %1383 = vmatprep.subr.mxu0 0.0
          %1384 = vmatpush1.msra.mxu0 0.0
          %1385 = vmatprep.subr.mxu0 0.0
          %1386 = vmatpush1.msra.mxu0 0.0
          %1387 = vmatprep.subr.mxu0 0.0
          %1388 = vmatpush1.msra.mxu0 0.0
          %1389 = vmatprep.subr.mxu0 0.0
          %1390 = vmatpush1.msra.mxu0 0.0
          %1391 = vmatprep.subr.mxu0 0.0
          %1392 = vmatpush1.msra.mxu0 0.0
          %1393 = vmatprep.subr.mxu0 0.0
          %1394 = vmatpush1.msra.mxu0 0.0
          %1395 = vmatprep.subr.mxu0 0.0
          %1396 = vmatpush1.msra.mxu0 0.0
          %1397 = vmatprep.subr.mxu0 0.0
          %1398 = vmatpush1.msra.mxu0 0.0
          %1399 = vmatprep.subr.mxu0 0.0
          %1400 = vmatpush1.msra.mxu0 0.0
          %1401 = vmatprep.subr.mxu0 0.0
          %1402 = vmatpush1.msra.mxu0 0.0
          %1403 = vmatprep.subr.mxu0 0.0
          %1404 = vmatpush1.msra.mxu0 0.0
          %1405 = vmatprep.subr.mxu0 0.0
          %1406 = vmatpush1.msra.mxu0 0.0
          %1407 = vmatprep.subr.mxu0 0.0
          %1408 = vmatpush1.msra.mxu0 0.0
          %1409 = vmatprep.subr.mxu0 0.0
          %1410 = vmatpush1.msra.mxu0 0.0
          %1411 = vmatprep.subr.mxu0 0.0
          %1412 = vmatpush1.msra.mxu0 0.0
          %1413 = vmatprep.subr.mxu0 0.0
          %1414 = vmatpush1.msra.mxu0 0.0
          %1415 = vmatprep.subr.mxu0 0.0
          %1416 = vmatpush1.msra.mxu0 0.0
          %1417 = vmatprep.subr.mxu0 0.0
          %1418 = vmatpush1.msra.mxu0 0.0
          %1419 = vmatprep.mubr.f32.mxu0 0.0
          %1420 = vmatmul.mubr.f32.gmra.mrb[0].mxu0 %v1347
          %v1421 = vpop.f32.mrb[0].mxu0
          %v1422 = vadd.f32 0.0, %v1421
          %v1423 = vpop.f32.mrb[0].mxu0
          %1424 = vmatprep.mubr.f32.mxu0 0.0
          %1425 = vmatmul.mubr.f32.gmra.mrb[0].mxu0 %v1350
          %v1426 = vpop.f32.mrb[0].mxu0
          %v1427 = vadd.f32 0.0, %v1426
          %v1428 = vpop.f32.mrb[0].mxu0
          %1429 = vdwg.mxu0
          %vm1430 = vcmask 523264
          %v1431 = vsel %vm1430, %v1422, -inf
          %1432 = vmax.xlane.f32.xlu0 %v1431
          %v1433 = vpop.xlane.xlu0 %1432
          %v1434 = vsel %vm1430, %v1427, -inf
          %1435 = vmax.xlane.f32.xlu0 %v1434
          %v1436 = vpop.xlane.xlu0 %1435
          %v1437 = vsub.f32 %v1422, %v1433
          %v1438 = vsub.f32 %v1427, %v1436
          %v1439 = vmul.f32 %v1437, 1.442695
          %v1440 = vpow.pop %v1439
          %v1441 = vmul.f32 %v1438, 1.442695
          %v1442 = vpow.pop %v1441
          %v1443 = vsel %vm1430, %v1440, 0.0
          %1444 = vadd.xlane.f32.xlu0 %v1443
          %v1445 = vpop.xlane.xlu0 %1444
          %v1446 = vsel %vm1430, %v1442, 0.0
          %1447 = vadd.xlane.f32.xlu0 %v1446
          %v1448 = vpop.xlane.xlu0 %1447
          %v1449 = vrcp.pop %v1445
          %v1450 = vmul.f32 %v1440, %v1449
          %v1451 = vrcp.pop %v1448
          %v1452 = vmul.f32 %v1442, %v1451
          %v1453 = vsel %vm1430, %v1450, 0.0
          %v1454 = vsel %vm1430, %v1452, 0.0
          %v1455 = vadd.f32 %v1453, %v1454
          %v1456 = vrot.slane %v1455, 4
          %v1457 = vadd.f32 %v1455, %v1456
          %v1458 = vrot.slane %v1457, 2
          %v1459 = vadd.f32 %v1457, %v1458
          %v1460 = vrot.slane %v1459, 1
          %v1461 = vadd.f32 %v1459, %v1460
          %v1462 = vadd.f32 %v1461, 1e-06
          %v1463 = vrcp.pop %v1462
          %v1464 = vmul.f32 %v1450, %v1463
          %v1465 = vmul.f32 %v1452, %v1463
          %v1467 = vsel %vm795, %v1310, 0
          %1469 = vmatprep.subr.mxu0 0.0
          %1470 = vmatpush1.msra.mxu0 %v1464
          %1471 = vmatprep.subr.mxu0 0.0
          %1472 = vmatpush1.msra.mxu0 %v1465
          %1473 = vmatprep.subr.mxu0 0.0
          %1474 = vmatpush1.msra.mxu0 0.0
          %1475 = vmatprep.subr.mxu0 0.0
          %1476 = vmatpush1.msra.mxu0 0.0
          %1477 = vmatprep.subr.mxu0 0.0
          %1478 = vmatpush1.msra.mxu0 0.0
          %1479 = vmatprep.subr.mxu0 0.0
          %1480 = vmatpush1.msra.mxu0 0.0
          %1481 = vmatprep.subr.mxu0 0.0
          %1482 = vmatpush1.msra.mxu0 0.0
          %1483 = vmatprep.subr.mxu0 0.0
          %1484 = vmatpush1.msra.mxu0 0.0
          %1485 = vmatprep.subr.mxu0 0.0
          %1486 = vmatpush1.msra.mxu0 0.0
          %1487 = vmatprep.subr.mxu0 0.0
          %1488 = vmatpush1.msra.mxu0 0.0
          %1489 = vmatprep.subr.mxu0 0.0
          %1490 = vmatpush1.msra.mxu0 0.0
          %1491 = vmatprep.subr.mxu0 0.0
          %1492 = vmatpush1.msra.mxu0 0.0
          %1493 = vmatprep.subr.mxu0 0.0
          %1494 = vmatpush1.msra.mxu0 0.0
          %1495 = vmatprep.subr.mxu0 0.0
          %1496 = vmatpush1.msra.mxu0 0.0
          %1497 = vmatprep.subr.mxu0 0.0
          %1498 = vmatpush1.msra.mxu0 0.0
          %1499 = vmatprep.subr.mxu0 0.0
          %1500 = vmatpush1.msra.mxu0 0.0
          %1501 = vmatprep.subr.mxu0 0.0
          %1502 = vmatpush1.msra.mxu0 0.0
          %1503 = vmatprep.subr.mxu0 0.0
          %1504 = vmatpush1.msra.mxu0 0.0
          %1505 = vmatprep.subr.mxu0 0.0
          %1506 = vmatpush1.msra.mxu0 0.0
          %1507 = vmatprep.subr.mxu0 0.0
          %1508 = vmatpush1.msra.mxu0 0.0
          %1509 = vmatprep.subr.mxu0 0.0
          %1510 = vmatpush1.msra.mxu0 0.0
          %1511 = vmatprep.subr.mxu0 0.0
          %1512 = vmatpush1.msra.mxu0 0.0
          %1513 = vmatprep.subr.mxu0 0.0
          %1514 = vmatpush1.msra.mxu0 0.0
          %1515 = vmatprep.subr.mxu0 0.0
          %1516 = vmatpush1.msra.mxu0 0.0
          %1517 = vmatprep.subr.mxu0 0.0
          %1518 = vmatpush1.msra.mxu0 0.0
          %1519 = vmatprep.subr.mxu0 0.0
          %1520 = vmatpush1.msra.mxu0 0.0
          %1521 = vmatprep.subr.mxu0 0.0
          %1522 = vmatpush1.msra.mxu0 0.0
          %1523 = vmatprep.subr.mxu0 0.0
          %1524 = vmatpush1.msra.mxu0 0.0
          %1525 = vmatprep.subr.mxu0 0.0
          %1526 = vmatpush1.msra.mxu0 0.0
          %1527 = vmatprep.subr.mxu0 0.0
          %1528 = vmatpush1.msra.mxu0 0.0
          %1529 = vmatprep.subr.mxu0 0.0
          %1530 = vmatpush1.msra.mxu0 0.0
          %1531 = vmatprep.subr.mxu0 0.0
          %1532 = vmatpush1.msra.mxu0 0.0
          %1533 = vmatprep.mubr.f32.mxu0 0.0
          %1534 = vmatmul.mubr.f32.gmra.mrb[0].mxu0 %v1467
          %v1535 = vpop.f32.mrb[0].mxu0
          %v1536 = vadd.f32 0.0, %v1535
          %v1537 = vpop.f32.mrb[0].mxu0
          %1538 = vdwg.mxu0
          %v1539 = vmul.f32 %v1536, %v1536
          %vm1540 = vcmask 519168
          %v1541 = vsel %vm1540, %v1539, 0.0
          %v1542 = vrot.slane %v1541, 4
          %v1543 = vadd.f32 %v1541, %v1542
          %v1544 = vrot.slane %v1543, 2
          %v1545 = vadd.f32 %v1543, %v1544
          %v1546 = vrot.slane %v1545, 1
          %v1547 = vadd.f32 %v1545, %v1546
          %v1548 = vrsqrt.pop %v1547
          %v1549 = vmul.f32 %v1547, %v1548
          %vm1550 = vcmp.eq.f32.partialorder %v1547, inf
          %v1551 = vsel %vm1550, %v1547, %v1549
          %vm1552 = vcmp.eq.f32.partialorder %v1547, 0.0
          %v1553 = vand.u32 %v1547, 2147483648
          %v1554 = vsel %vm1552, %v1553, %v1551
          %v1555 = vadd.f32 %v1554, 1e-06
          %v1556 = vrcp.pop %v1555
          %v1557 = vmul.f32 %v1536, %v1556
          %v1559 = vsel %vm1239, %v1557, 0
          %1561 = vmatprep.subr.mxu0 0.0
          %1562 = vmatpush1.msra.mxu0 %v1559
          %1563 = vmatprep.subr.mxu0 0.0
          %1564 = vmatpush1.msra.mxu0 0.0
          %1565 = vmatprep.subr.mxu0 0.0
          %1566 = vmatpush1.msra.mxu0 0.0
          %1567 = vmatprep.subr.mxu0 0.0
          %1568 = vmatpush1.msra.mxu0 0.0
          %1569 = vmatprep.subr.mxu0 0.0
          %1570 = vmatpush1.msra.mxu0 0.0
          %1571 = vmatprep.subr.mxu0 0.0
          %1572 = vmatpush1.msra.mxu0 0.0
          %1573 = vmatprep.subr.mxu0 0.0
          %1574 = vmatpush1.msra.mxu0 0.0
          %1575 = vmatprep.subr.mxu0 0.0
          %1576 = vmatpush1.msra.mxu0 0.0
          %1577 = vmatprep.subr.mxu0 0.0
          %1578 = vmatpush1.msra.mxu0 0.0
          %1579 = vmatprep.subr.mxu0 0.0
          %1580 = vmatpush1.msra.mxu0 0.0
          %1581 = vmatprep.subr.mxu0 0.0
          %1582 = vmatpush1.msra.mxu0 0.0
          %1583 = vmatprep.subr.mxu0 0.0
          %1584 = vmatpush1.msra.mxu0 0.0
          %1585 = vmatprep.subr.mxu0 0.0
          %1586 = vmatpush1.msra.mxu0 0.0
          %1587 = vmatprep.subr.mxu0 0.0
          %1588 = vmatpush1.msra.mxu0 0.0
          %1589 = vmatprep.subr.mxu0 0.0
          %1590 = vmatpush1.msra.mxu0 0.0
          %1591 = vmatprep.subr.mxu0 0.0
          %1592 = vmatpush1.msra.mxu0 0.0
          %1593 = vmatprep.subr.mxu0 0.0
          %1594 = vmatpush1.msra.mxu0 0.0
          %1595 = vmatprep.subr.mxu0 0.0
          %1596 = vmatpush1.msra.mxu0 0.0
          %1597 = vmatprep.subr.mxu0 0.0
          %1598 = vmatpush1.msra.mxu0 0.0
          %1599 = vmatprep.subr.mxu0 0.0
          %1600 = vmatpush1.msra.mxu0 0.0
          %1601 = vmatprep.subr.mxu0 0.0
          %1602 = vmatpush1.msra.mxu0 0.0
          %1603 = vmatprep.subr.mxu0 0.0
          %1604 = vmatpush1.msra.mxu0 0.0
          %1605 = vmatprep.subr.mxu0 0.0
          %1606 = vmatpush1.msra.mxu0 0.0
          %1607 = vmatprep.subr.mxu0 0.0
          %1608 = vmatpush1.msra.mxu0 0.0
          %1609 = vmatprep.subr.mxu0 0.0
          %1610 = vmatpush1.msra.mxu0 0.0
          %1611 = vmatprep.subr.mxu0 0.0
          %1612 = vmatpush1.msra.mxu0 0.0
          %1613 = vmatprep.subr.mxu0 0.0
          %1614 = vmatpush1.msra.mxu0 0.0
          %1615 = vmatprep.subr.mxu0 0.0
          %1616 = vmatpush1.msra.mxu0 0.0
          %1617 = vmatprep.subr.mxu0 0.0
          %1618 = vmatpush1.msra.mxu0 0.0
          %1619 = vmatprep.subr.mxu0 0.0
          %1620 = vmatpush1.msra.mxu0 0.0
          %1621 = vmatprep.subr.mxu0 0.0
          %1622 = vmatpush1.msra.mxu0 0.0
          %1623 = vmatprep.subr.mxu0 0.0
          %1624 = vmatpush1.msra.mxu0 0.0
          %1625 = vmatprep.mubr.f32.mxu0 0.0
          %1626 = vmatmul.mubr.f32.gmra.mrb[0].mxu0 %v1347
          %v1627 = vpop.f32.mrb[0].mxu0
          %v1628 = vadd.f32 0.0, %v1627
          %v1629 = vpop.f32.mrb[0].mxu0
          %1630 = vmatprep.mubr.f32.mxu0 0.0
          %1631 = vmatmul.mubr.f32.gmra.mrb[0].mxu0 %v1350
          %v1632 = vpop.f32.mrb[0].mxu0
          %v1633 = vadd.f32 0.0, %v1632
          %v1634 = vpop.f32.mrb[0].mxu0
          %1635 = vdwg.mxu0
          %v1636 = vsel %vm1430, %v1628, -inf
          %1637 = vmax.xlane.f32.xlu0 %v1636
          %v1638 = vpop.xlane.xlu0 %1637
          %v1639 = vsel %vm1430, %v1633, -inf
          %1640 = vmax.xlane.f32.xlu0 %v1639
          %v1641 = vpop.xlane.xlu0 %1640
          %v1642 = vsub.f32 %v1628, %v1638
          %v1643 = vsub.f32 %v1633, %v1641
          %v1644 = vmul.f32 %v1642, 1.442695
          %v1645 = vpow.pop %v1644
          %v1646 = vmul.f32 %v1643, 1.442695
          %v1647 = vpow.pop %v1646
          %v1648 = vsel %vm1430, %v1645, 0.0
          %1649 = vadd.xlane.f32.xlu0 %v1648
          %v1650 = vpop.xlane.xlu0 %1649
          %v1651 = vsel %vm1430, %v1647, 0.0
          %1652 = vadd.xlane.f32.xlu0 %v1651
          %v1653 = vpop.xlane.xlu0 %1652
          %v1654 = vrcp.pop %v1650
          %v1655 = vmul.f32 %v1645, %v1654
          %v1656 = vrcp.pop %v1653
          %v1657 = vmul.f32 %v1647, %v1656
          %v1658 = vsel %vm1430, %v1655, 0.0
          %v1659 = vsel %vm1430, %v1657, 0.0
          %v1660 = vadd.f32 %v1658, %v1659
          %v1661 = vrot.slane %v1660, 4
          %v1662 = vadd.f32 %v1660, %v1661
          %v1663 = vrot.slane %v1662, 2
          %v1664 = vadd.f32 %v1662, %v1663
          %v1665 = vrot.slane %v1664, 1
          %v1666 = vadd.f32 %v1664, %v1665
          %v1667 = vadd.f32 %v1666, 1e-06
          %v1668 = vrcp.pop %v1667
          %v1669 = vmul.f32 %v1655, %v1668
          %v1670 = vmul.f32 %v1657, %v1668
          %1671 = vmatprep.subr.mxu0 0.0
          %1672 = vmatpush1.msra.mxu0 %v1669
          %1673 = vmatprep.subr.mxu0 0.0
          %1674 = vmatpush1.msra.mxu0 %v1670
          %1675 = vmatprep.subr.mxu0 0.0
          %1676 = vmatpush1.msra.mxu0 0.0
          %1677 = vmatprep.subr.mxu0 0.0
          %1678 = vmatpush1.msra.mxu0 0.0
          %1679 = vmatprep.subr.mxu0 0.0
          %1680 = vmatpush1.msra.mxu0 0.0
          %1681 = vmatprep.subr.mxu0 0.0
          %1682 = vmatpush1.msra.mxu0 0.0
          %1683 = vmatprep.subr.mxu0 0.0
          %1684 = vmatpush1.msra.mxu0 0.0
          %1685 = vmatprep.subr.mxu0 0.0
          %1686 = vmatpush1.msra.mxu0 0.0
          %1687 = vmatprep.subr.mxu0 0.0
          %1688 = vmatpush1.msra.mxu0 0.0
          %1689 = vmatprep.subr.mxu0 0.0
          %1690 = vmatpush1.msra.mxu0 0.0
          %1691 = vmatprep.subr.mxu0 0.0
          %1692 = vmatpush1.msra.mxu0 0.0
          %1693 = vmatprep.subr.mxu0 0.0
          %1694 = vmatpush1.msra.mxu0 0.0
          %1695 = vmatprep.subr.mxu0 0.0
          %1696 = vmatpush1.msra.mxu0 0.0
          %1697 = vmatprep.subr.mxu0 0.0
          %1698 = vmatpush1.msra.mxu0 0.0
          %1699 = vmatprep.subr.mxu0 0.0
          %1700 = vmatpush1.msra.mxu0 0.0
          %1701 = vmatprep.subr.mxu0 0.0
          %1702 = vmatpush1.msra.mxu0 0.0
          %1703 = vmatprep.subr.mxu0 0.0
          %1704 = vmatpush1.msra.mxu0 0.0
          %1705 = vmatprep.subr.mxu0 0.0
          %1706 = vmatpush1.msra.mxu0 0.0
          %1707 = vmatprep.subr.mxu0 0.0
          %1708 = vmatpush1.msra.mxu0 0.0
          %1709 = vmatprep.subr.mxu0 0.0
          %1710 = vmatpush1.msra.mxu0 0.0
          %1711 = vmatprep.subr.mxu0 0.0
          %1712 = vmatpush1.msra.mxu0 0.0
          %1713 = vmatprep.subr.mxu0 0.0
          %1714 = vmatpush1.msra.mxu0 0.0
          %1715 = vmatprep.subr.mxu0 0.0
          %1716 = vmatpush1.msra.mxu0 0.0
          %1717 = vmatprep.subr.mxu0 0.0
          %1718 = vmatpush1.msra.mxu0 0.0
          %1719 = vmatprep.subr.mxu0 0.0
          %1720 = vmatpush1.msra.mxu0 0.0
          %1721 = vmatprep.subr.mxu0 0.0
          %1722 = vmatpush1.msra.mxu0 0.0
          %1723 = vmatprep.subr.mxu0 0.0
          %1724 = vmatpush1.msra.mxu0 0.0
          %1725 = vmatprep.subr.mxu0 0.0
          %1726 = vmatpush1.msra.mxu0 0.0
          %1727 = vmatprep.subr.mxu0 0.0
          %1728 = vmatpush1.msra.mxu0 0.0
          %1729 = vmatprep.subr.mxu0 0.0
          %1730 = vmatpush1.msra.mxu0 0.0
          %1731 = vmatprep.subr.mxu0 0.0
          %1732 = vmatpush1.msra.mxu0 0.0
          %1733 = vmatprep.subr.mxu0 0.0
          %1734 = vmatpush1.msra.mxu0 0.0
          %1735 = vmatprep.mubr.f32.mxu0 0.0
          %1736 = vmatmul.mubr.f32.gmra.mrb[0].mxu0 %v1467
          %v1737 = vpop.f32.mrb[0].mxu0
          %v1738 = vadd.f32 0.0, %v1737
          %v1739 = vpop.f32.mrb[0].mxu0
          %1740 = vdwg.mxu0
          %v1741 = vmul.f32 %v1738, %v1738
          %v1742 = vsel %vm1540, %v1741, 0.0
          %v1743 = vrot.slane %v1742, 4
          %v1744 = vadd.f32 %v1742, %v1743
          %v1745 = vrot.slane %v1744, 2
          %v1746 = vadd.f32 %v1744, %v1745
          %v1747 = vrot.slane %v1746, 1
          %v1748 = vadd.f32 %v1746, %v1747
          %v1749 = vrsqrt.pop %v1748
          %v1750 = vmul.f32 %v1748, %v1749
          %vm1751 = vcmp.eq.f32.partialorder %v1748, inf
          %v1752 = vsel %vm1751, %v1748, %v1750
          %vm1753 = vcmp.eq.f32.partialorder %v1748, 0.0
          %v1754 = vand.u32 %v1748, 2147483648
          %v1755 = vsel %vm1753, %v1754, %v1752
          %v1756 = vadd.f32 %v1755, 1e-06
          %v1757 = vrcp.pop %v1756
          %v1758 = vmul.f32 %v1738, %v1757
          %v1760 = vsel %vm1239, %v1758, 0
          %1762 = vmatprep.subr.mxu0 0.0
          %1763 = vmatpush1.msra.mxu0 %v1760
          %1764 = vmatprep.subr.mxu0 0.0
          %1765 = vmatpush1.msra.mxu0 0.0
          %1766 = vmatprep.subr.mxu0 0.0
          %1767 = vmatpush1.msra.mxu0 0.0
          %1768 = vmatprep.subr.mxu0 0.0
          %1769 = vmatpush1.msra.mxu0 0.0
          %1770 = vmatprep.subr.mxu0 0.0
          %1771 = vmatpush1.msra.mxu0 0.0
          %1772 = vmatprep.subr.mxu0 0.0
          %1773 = vmatpush1.msra.mxu0 0.0
          %1774 = vmatprep.subr.mxu0 0.0
          %1775 = vmatpush1.msra.mxu0 0.0
          %1776 = vmatprep.subr.mxu0 0.0
          %1777 = vmatpush1.msra.mxu0 0.0
          %1778 = vmatprep.subr.mxu0 0.0
          %1779 = vmatpush1.msra.mxu0 0.0
          %1780 = vmatprep.subr.mxu0 0.0
          %1781 = vmatpush1.msra.mxu0 0.0
          %1782 = vmatprep.subr.mxu0 0.0
          %1783 = vmatpush1.msra.mxu0 0.0
          %1784 = vmatprep.subr.mxu0 0.0
          %1785 = vmatpush1.msra.mxu0 0.0
          %1786 = vmatprep.subr.mxu0 0.0
          %1787 = vmatpush1.msra.mxu0 0.0
          %1788 = vmatprep.subr.mxu0 0.0
          %1789 = vmatpush1.msra.mxu0 0.0
          %1790 = vmatprep.subr.mxu0 0.0
          %1791 = vmatpush1.msra.mxu0 0.0
          %1792 = vmatprep.subr.mxu0 0.0
          %1793 = vmatpush1.msra.mxu0 0.0
          %1794 = vmatprep.subr.mxu0 0.0
          %1795 = vmatpush1.msra.mxu0 0.0
          %1796 = vmatprep.subr.mxu0 0.0
          %1797 = vmatpush1.msra.mxu0 0.0
          %1798 = vmatprep.subr.mxu0 0.0
          %1799 = vmatpush1.msra.mxu0 0.0
          %1800 = vmatprep.subr.mxu0 0.0
          %1801 = vmatpush1.msra.mxu0 0.0
          %1802 = vmatprep.subr.mxu0 0.0
          %1803 = vmatpush1.msra.mxu0 0.0
          %1804 = vmatprep.subr.mxu0 0.0
          %1805 = vmatpush1.msra.mxu0 0.0
          %1806 = vmatprep.subr.mxu0 0.0
          %1807 = vmatpush1.msra.mxu0 0.0
          %1808 = vmatprep.subr.mxu0 0.0
          %1809 = vmatpush1.msra.mxu0 0.0
          %1810 = vmatprep.subr.mxu0 0.0
          %1811 = vmatpush1.msra.mxu0 0.0
          %1812 = vmatprep.subr.mxu0 0.0
          %1813 = vmatpush1.msra.mxu0 0.0
          %1814 = vmatprep.subr.mxu0 0.0
          %1815 = vmatpush1.msra.mxu0 0.0
          %1816 = vmatprep.subr.mxu0 0.0
          %1817 = vmatpush1.msra.mxu0 0.0
          %1818 = vmatprep.subr.mxu0 0.0
          %1819 = vmatpush1.msra.mxu0 0.0
          %1820 = vmatprep.subr.mxu0 0.0
          %1821 = vmatpush1.msra.mxu0 0.0
          %1822 = vmatprep.subr.mxu0 0.0
          %1823 = vmatpush1.msra.mxu0 0.0
          %1824 = vmatprep.subr.mxu0 0.0
          %1825 = vmatpush1.msra.mxu0 0.0
          %1826 = vmatprep.mubr.f32.mxu0 0.0
          %1827 = vmatmul.mubr.f32.gmra.mrb[0].mxu0 %v1347
          %v1828 = vpop.f32.mrb[0].mxu0
          %v1829 = vadd.f32 0.0, %v1828
          %v1830 = vpop.f32.mrb[0].mxu0
          %1831 = vmatprep.mubr.f32.mxu0 0.0
          %1832 = vmatmul.mubr.f32.gmra.mrb[0].mxu0 %v1350
          %v1833 = vpop.f32.mrb[0].mxu0
          %v1834 = vadd.f32 0.0, %v1833
          %v1835 = vpop.f32.mrb[0].mxu0
          %1836 = vdwg.mxu0
          %v1837 = vsel %vm1430, %v1829, -inf
          %1838 = vmax.xlane.f32.xlu0 %v1837
          %v1839 = vpop.xlane.xlu0 %1838
          %v1840 = vsel %vm1430, %v1834, -inf
          %1841 = vmax.xlane.f32.xlu0 %v1840
          %v1842 = vpop.xlane.xlu0 %1841
          %v1843 = vsub.f32 %v1829, %v1839
          %v1844 = vsub.f32 %v1834, %v1842
          %v1845 = vmul.f32 %v1843, 1.442695
          %v1846 = vpow.pop %v1845
          %v1847 = vmul.f32 %v1844, 1.442695
          %v1848 = vpow.pop %v1847
          %v1849 = vsel %vm1430, %v1846, 0.0
          %1850 = vadd.xlane.f32.xlu0 %v1849
          %v1851 = vpop.xlane.xlu0 %1850
          %v1852 = vsel %vm1430, %v1848, 0.0
          %1853 = vadd.xlane.f32.xlu0 %v1852
          %v1854 = vpop.xlane.xlu0 %1853
          %v1855 = vrcp.pop %v1851
          %v1856 = vmul.f32 %v1846, %v1855
          %v1857 = vrcp.pop %v1854
          %v1858 = vmul.f32 %v1848, %v1857
          %v1859 = vsel %vm1430, %v1856, 0.0
          %v1860 = vsel %vm1430, %v1858, 0.0
          %v1861 = vadd.f32 %v1859, %v1860
          %v1862 = vrot.slane %v1861, 4
          %v1863 = vadd.f32 %v1861, %v1862
          %v1864 = vrot.slane %v1863, 2
          %v1865 = vadd.f32 %v1863, %v1864
          %v1866 = vrot.slane %v1865, 1
          %v1867 = vadd.f32 %v1865, %v1866
          %v1868 = vadd.f32 %v1867, 1e-06
          %v1869 = vrcp.pop %v1868
          %v1870 = vmul.f32 %v1856, %v1869
          %v1871 = vmul.f32 %v1858, %v1869
          %1872 = vmatprep.subr.mxu0 0.0
          %1873 = vmatpush1.msra.mxu0 %v1870
          %1874 = vmatprep.subr.mxu0 0.0
          %1875 = vmatpush1.msra.mxu0 %v1871
          %1876 = vmatprep.subr.mxu0 0.0
          %1877 = vmatpush1.msra.mxu0 0.0
          %1878 = vmatprep.subr.mxu0 0.0
          %1879 = vmatpush1.msra.mxu0 0.0
          %1880 = vmatprep.subr.mxu0 0.0
          %1881 = vmatpush1.msra.mxu0 0.0
          %1882 = vmatprep.subr.mxu0 0.0
          %1883 = vmatpush1.msra.mxu0 0.0
          %1884 = vmatprep.subr.mxu0 0.0
          %1885 = vmatpush1.msra.mxu0 0.0
          %1886 = vmatprep.subr.mxu0 0.0
          %1887 = vmatpush1.msra.mxu0 0.0
          %1888 = vmatprep.subr.mxu0 0.0
          %1889 = vmatpush1.msra.mxu0 0.0
          %1890 = vmatprep.subr.mxu0 0.0
          %1891 = vmatpush1.msra.mxu0 0.0
          %1892 = vmatprep.subr.mxu0 0.0
          %1893 = vmatpush1.msra.mxu0 0.0
          %1894 = vmatprep.subr.mxu0 0.0
          %1895 = vmatpush1.msra.mxu0 0.0
          %1896 = vmatprep.subr.mxu0 0.0
          %1897 = vmatpush1.msra.mxu0 0.0
          %1898 = vmatprep.subr.mxu0 0.0
          %1899 = vmatpush1.msra.mxu0 0.0
          %1900 = vmatprep.subr.mxu0 0.0
          %1901 = vmatpush1.msra.mxu0 0.0
          %1902 = vmatprep.subr.mxu0 0.0
          %1903 = vmatpush1.msra.mxu0 0.0
          %1904 = vmatprep.subr.mxu0 0.0
          %1905 = vmatpush1.msra.mxu0 0.0
          %1906 = vmatprep.subr.mxu0 0.0
          %1907 = vmatpush1.msra.mxu0 0.0
          %1908 = vmatprep.subr.mxu0 0.0
          %1909 = vmatpush1.msra.mxu0 0.0
          %1910 = vmatprep.subr.mxu0 0.0
          %1911 = vmatpush1.msra.mxu0 0.0
          %1912 = vmatprep.subr.mxu0 0.0
          %1913 = vmatpush1.msra.mxu0 0.0
          %1914 = vmatprep.subr.mxu0 0.0
          %1915 = vmatpush1.msra.mxu0 0.0
          %1916 = vmatprep.subr.mxu0 0.0
          %1917 = vmatpush1.msra.mxu0 0.0
          %1918 = vmatprep.subr.mxu0 0.0
          %1919 = vmatpush1.msra.mxu0 0.0
          %1920 = vmatprep.subr.mxu0 0.0
          %1921 = vmatpush1.msra.mxu0 0.0
          %1922 = vmatprep.subr.mxu0 0.0
          %1923 = vmatpush1.msra.mxu0 0.0
          %1924 = vmatprep.subr.mxu0 0.0
          %1925 = vmatpush1.msra.mxu0 0.0
          %1926 = vmatprep.subr.mxu0 0.0
          %1927 = vmatpush1.msra.mxu0 0.0
          %1928 = vmatprep.subr.mxu0 0.0
          %1929 = vmatpush1.msra.mxu0 0.0
          %1930 = vmatprep.subr.mxu0 0.0
          %1931 = vmatpush1.msra.mxu0 0.0
          %1932 = vmatprep.subr.mxu0 0.0
          %1933 = vmatpush1.msra.mxu0 0.0
          %1934 = vmatprep.subr.mxu0 0.0
          %1935 = vmatpush1.msra.mxu0 0.0
          %1936 = vmatprep.mubr.f32.mxu0 0.0
          %1937 = vmatmul.mubr.f32.gmra.mrb[0].mxu0 %v1467
          %v1938 = vpop.f32.mrb[0].mxu0
          %v1939 = vadd.f32 0.0, %v1938
          %v1940 = vpop.f32.mrb[0].mxu0
          %1941 = vdwg.mxu0
          %v1942 = vmul.f32 %v1939, %v1939
          %v1943 = vsel %vm1540, %v1942, 0.0
          %v1944 = vrot.slane %v1943, 4
          %v1945 = vadd.f32 %v1943, %v1944
          %v1946 = vrot.slane %v1945, 2
          %v1947 = vadd.f32 %v1945, %v1946
          %v1948 = vrot.slane %v1947, 1
          %v1949 = vadd.f32 %v1947, %v1948
          %v1950 = vrsqrt.pop %v1949
          %v1951 = vmul.f32 %v1949, %v1950
          %vm1952 = vcmp.eq.f32.partialorder %v1949, inf
          %v1953 = vsel %vm1952, %v1949, %v1951
          %vm1954 = vcmp.eq.f32.partialorder %v1949, 0.0
          %v1955 = vand.u32 %v1949, 2147483648
          %v1956 = vsel %vm1954, %v1955, %v1953
          %v1957 = vadd.f32 %v1956, 1e-06
          %v1958 = vrcp.pop %v1957
          %v1959 = vmul.f32 %v1939, %v1958
          %v1961 = vsel %vm1430, %v1959, 0
          %v1964 = vsel %vm1430, %v1856, 0
          %v1967 = vsel %vm1430, %v1858, 0
          %1969 = vmatprep.subr.mxu0 0.0
          %1970 = vmatpush1.xpose.msra.mxu0 %v1964
          %1971 = vmatprep.subr.mxu0 0.0
          %1972 = vmatpush1.xpose.msra.mxu0 %v1967
          %1973 = vmatprep.subr.mxu0 0.0
          %1974 = vmatpush1.xpose.msra.mxu0 0.0
          %1975 = vmatprep.subr.mxu0 0.0
          %1976 = vmatpush1.xpose.msra.mxu0 0.0
          %1977 = vmatprep.subr.mxu0 0.0
          %1978 = vmatpush1.xpose.msra.mxu0 0.0
          %1979 = vmatprep.subr.mxu0 0.0
          %1980 = vmatpush1.xpose.msra.mxu0 0.0
          %1981 = vmatprep.subr.mxu0 0.0
          %1982 = vmatpush1.xpose.msra.mxu0 0.0
          %1983 = vmatprep.subr.mxu0 0.0
          %1984 = vmatpush1.xpose.msra.mxu0 0.0
          %1985 = vmatprep.subr.mxu0 0.0
          %1986 = vmatpush1.xpose.msra.mxu0 0.0
          %1987 = vmatprep.subr.mxu0 0.0
          %1988 = vmatpush1.xpose.msra.mxu0 0.0
          %1989 = vmatprep.subr.mxu0 0.0
          %1990 = vmatpush1.xpose.msra.mxu0 0.0
          %1991 = vmatprep.subr.mxu0 0.0
          %1992 = vmatpush1.xpose.msra.mxu0 0.0
          %1993 = vmatprep.subr.mxu0 0.0
          %1994 = vmatpush1.xpose.msra.mxu0 0.0
          %1995 = vmatprep.subr.mxu0 0.0
          %1996 = vmatpush1.xpose.msra.mxu0 0.0
          %1997 = vmatprep.subr.mxu0 0.0
          %1998 = vmatpush1.xpose.msra.mxu0 0.0
          %1999 = vmatprep.subr.mxu0 0.0
          %2000 = vmatpush1.xpose.msra.mxu0 0.0
          %2001 = vmatprep.subr.mxu0 0.0
          %2002 = vmatpush1.xpose.msra.mxu0 0.0
          %2003 = vmatprep.subr.mxu0 0.0
          %2004 = vmatpush1.xpose.msra.mxu0 0.0
          %2005 = vmatprep.subr.mxu0 0.0
          %2006 = vmatpush1.xpose.msra.mxu0 0.0
          %2007 = vmatprep.subr.mxu0 0.0
          %2008 = vmatpush1.xpose.msra.mxu0 0.0
          %2009 = vmatprep.subr.mxu0 0.0
          %2010 = vmatpush1.xpose.msra.mxu0 0.0
          %2011 = vmatprep.subr.mxu0 0.0
          %2012 = vmatpush1.xpose.msra.mxu0 0.0
          %2013 = vmatprep.subr.mxu0 0.0
          %2014 = vmatpush1.xpose.msra.mxu0 0.0
          %2015 = vmatprep.subr.mxu0 0.0
          %2016 = vmatpush1.xpose.msra.mxu0 0.0
          %2017 = vmatprep.subr.mxu0 0.0
          %2018 = vmatpush1.xpose.msra.mxu0 0.0
          %2019 = vmatprep.subr.mxu0 0.0
          %2020 = vmatpush1.xpose.msra.mxu0 0.0
          %2021 = vmatprep.subr.mxu0 0.0
          %2022 = vmatpush1.xpose.msra.mxu0 0.0
          %2023 = vmatprep.subr.mxu0 0.0
          %2024 = vmatpush1.xpose.msra.mxu0 0.0
          %2025 = vmatprep.subr.mxu0 0.0
          %2026 = vmatpush1.xpose.msra.mxu0 0.0
          %2027 = vmatprep.subr.mxu0 0.0
          %2028 = vmatpush1.xpose.msra.mxu0 0.0
          %2029 = vmatprep.subr.mxu0 0.0
          %2030 = vmatpush1.xpose.msra.mxu0 0.0
          %2031 = vmatprep.subr.mxu0 0.0
          %2032 = vmatpush1.xpose.msra.mxu0 0.0
          %2033 = vmatprep.mubr.f32.mxu0 0.0
          %2034 = vmatmul.mubr.f32.gmra.mrb[0].mxu0 %v1961
          %v2035 = vpop.f32.mrb[0].mxu0
          %v2036 = vadd.f32 0.0, %v2035
          %v2037 = vpop.f32.mrb[0].mxu0
          %2038 = vdwg.mxu0
          %v2039 = vmax.f32 %v2036, 0.0
          %v2040 = vld [vmem:[#allocation18] sm:$0xf]
          %v2041 = vld [vmem:[#allocation19] sm:$0xf]
          %2043 = vset.pattern.permute.xlu0 0
          %2044 = vperm.xlu0 %2043, %v2041
          %v2045 = vpop.permute.xlu0 %2044
          %2047 = vxpose.xlu0.b32.start [1/16] %v2040, 128
          %2048 = vxpose.xlu0.b32.cont [2/16] 0.0, 128
          %2049 = vxpose.xlu0.b32.cont [3/16] 0.0, 128
          %2050 = vxpose.xlu0.b32.cont [4/16] 0.0, 128
          %2051 = vxpose.xlu0.b32.cont [5/16] 0.0, 128
          %2052 = vxpose.xlu0.b32.cont [6/16] 0.0, 128
          %2053 = vxpose.xlu0.b32.cont [7/16] 0.0, 128
          %2054 = vxpose.xlu0.b32.cont [8/16] 0.0, 128
          %2055 = vxpose.xlu0.b32.cont [9/16] 0.0, 128
          %2056 = vxpose.xlu0.b32.cont [10/16] 0.0, 128
          %2057 = vxpose.xlu0.b32.cont [11/16] 0.0, 128
          %2058 = vxpose.xlu0.b32.cont [12/16] 0.0, 128
          %2059 = vxpose.xlu0.b32.cont [13/16] 0.0, 128
          %2060 = vxpose.xlu0.b32.cont [14/16] 0.0, 128
          %2061 = vxpose.xlu0.b32.cont [15/16] 0.0, 128
          %2062 = vxpose.xlu0.b32.end [16/16] 0.0, 128
          %v2063 = vpop.trf.xlu0
          %v2064 = vpop.trf.xlu0
          %v2065 = vpop.trf.xlu0
          %v2066 = vpop.trf.xlu0
          %v2067 = vpop.trf.xlu0
          %v2068 = vpop.trf.xlu0
          %v2069 = vpop.trf.xlu0
          %v2070 = vpop.trf.xlu0
          %v2071 = vpop.trf.xlu0
          %v2072 = vpop.trf.xlu0
          %v2073 = vpop.trf.xlu0
          %v2074 = vpop.trf.xlu0
          %v2075 = vpop.trf.xlu0
          %v2076 = vpop.trf.xlu0
          %v2077 = vpop.trf.xlu0
          %v2078 = vpop.trf.xlu0
          %v2080 = vsel %vm1235, %v2063, 0
          %v2083 = vsel %vm1239, %v2039, 0
          %2085 = vmatprep.subr.mxu0 0.0
          %2086 = vmatpush1.msra.mxu0 %v2083
          %2087 = vmatprep.subr.mxu0 0.0
          %2088 = vmatpush1.msra.mxu0 0.0
          %2089 = vmatprep.subr.mxu0 0.0
          %2090 = vmatpush1.msra.mxu0 0.0
          %2091 = vmatprep.subr.mxu0 0.0
          %2092 = vmatpush1.msra.mxu0 0.0
          %2093 = vmatprep.subr.mxu0 0.0
          %2094 = vmatpush1.msra.mxu0 0.0
          %2095 = vmatprep.subr.mxu0 0.0
          %2096 = vmatpush1.msra.mxu0 0.0
          %2097 = vmatprep.subr.mxu0 0.0
          %2098 = vmatpush1.msra.mxu0 0.0
          %2099 = vmatprep.subr.mxu0 0.0
          %2100 = vmatpush1.msra.mxu0 0.0
          %2101 = vmatprep.subr.mxu0 0.0
          %2102 = vmatpush1.msra.mxu0 0.0
          %2103 = vmatprep.subr.mxu0 0.0
          %2104 = vmatpush1.msra.mxu0 0.0
          %2105 = vmatprep.subr.mxu0 0.0
          %2106 = vmatpush1.msra.mxu0 0.0
          %2107 = vmatprep.subr.mxu0 0.0
          %2108 = vmatpush1.msra.mxu0 0.0
          %2109 = vmatprep.subr.mxu0 0.0
          %2110 = vmatpush1.msra.mxu0 0.0
          %2111 = vmatprep.subr.mxu0 0.0
          %2112 = vmatpush1.msra.mxu0 0.0
          %2113 = vmatprep.subr.mxu0 0.0
          %2114 = vmatpush1.msra.mxu0 0.0
          %2115 = vmatprep.subr.mxu0 0.0
          %2116 = vmatpush1.msra.mxu0 0.0
          %2117 = vmatprep.subr.mxu0 0.0
          %2118 = vmatpush1.msra.mxu0 0.0
          %2119 = vmatprep.subr.mxu0 0.0
          %2120 = vmatpush1.msra.mxu0 0.0
          %2121 = vmatprep.subr.mxu0 0.0
          %2122 = vmatpush1.msra.mxu0 0.0
          %2123 = vmatprep.subr.mxu0 0.0
          %2124 = vmatpush1.msra.mxu0 0.0
          %2125 = vmatprep.subr.mxu0 0.0
          %2126 = vmatpush1.msra.mxu0 0.0
          %2127 = vmatprep.subr.mxu0 0.0
          %2128 = vmatpush1.msra.mxu0 0.0
          %2129 = vmatprep.subr.mxu0 0.0
          %2130 = vmatpush1.msra.mxu0 0.0
          %2131 = vmatprep.subr.mxu0 0.0
          %2132 = vmatpush1.msra.mxu0 0.0
          %2133 = vmatprep.subr.mxu0 0.0
          %2134 = vmatpush1.msra.mxu0 0.0
          %2135 = vmatprep.subr.mxu0 0.0
          %2136 = vmatpush1.msra.mxu0 0.0
          %2137 = vmatprep.subr.mxu0 0.0
          %2138 = vmatpush1.msra.mxu0 0.0
          %2139 = vmatprep.subr.mxu0 0.0
          %2140 = vmatpush1.msra.mxu0 0.0
          %2141 = vmatprep.subr.mxu0 0.0
          %2142 = vmatpush1.msra.mxu0 0.0
          %2143 = vmatprep.subr.mxu0 0.0
          %2144 = vmatpush1.msra.mxu0 0.0
          %2145 = vmatprep.subr.mxu0 0.0
          %2146 = vmatpush1.msra.mxu0 0.0
          %2147 = vmatprep.subr.mxu0 0.0
          %2148 = vmatpush1.msra.mxu0 0.0
          %2149 = vmatprep.mubr.f32.mxu0 0.0
          %2150 = vmatmul.mubr.f32.gmra.mrb[0].mxu0 %v2080
          %v2151 = vpop.f32.mrb[0].mxu0
          %v2152 = vadd.f32 %v2045, %v2151
          %v2153 = vpop.f32.mrb[0].mxu0
          %2154 = vdwg.mxu0
          %v2155 = vadd.f32 %v2152, %v1195
          %v2156 = vmax.f32 %v2155, 0.0
          %2157 = vxpose.xlu0.b32.start [1/16] %v869, 128
          %2158 = vxpose.xlu0.b32.cont [2/16] 0.0, 128
          %2159 = vxpose.xlu0.b32.cont [3/16] 0.0, 128
          %2160 = vxpose.xlu0.b32.cont [4/16] 0.0, 128
          %2161 = vxpose.xlu0.b32.cont [5/16] 0.0, 128
          %2162 = vxpose.xlu0.b32.cont [6/16] 0.0, 128
          %2163 = vxpose.xlu0.b32.cont [7/16] 0.0, 128
          %2164 = vxpose.xlu0.b32.cont [8/16] 0.0, 128
          %2165 = vxpose.xlu0.b32.cont [9/16] 0.0, 128
          %2166 = vxpose.xlu0.b32.cont [10/16] 0.0, 128
          %2167 = vxpose.xlu0.b32.cont [11/16] 0.0, 128
          %2168 = vxpose.xlu0.b32.cont [12/16] 0.0, 128
          %2169 = vxpose.xlu0.b32.cont [13/16] 0.0, 128
          %2170 = vxpose.xlu0.b32.cont [14/16] 0.0, 128
          %2171 = vxpose.xlu0.b32.cont [15/16] 0.0, 128
          %2172 = vxpose.xlu0.b32.end [16/16] 0.0, 128
          %v2173 = vpop.trf.xlu0
          %v2174 = vpop.trf.xlu0
          %v2175 = vpop.trf.xlu0
          %v2176 = vpop.trf.xlu0
          %v2177 = vpop.trf.xlu0
          %v2178 = vpop.trf.xlu0
          %v2179 = vpop.trf.xlu0
          %v2180 = vpop.trf.xlu0
          %v2181 = vpop.trf.xlu0
          %v2182 = vpop.trf.xlu0
          %v2183 = vpop.trf.xlu0
          %v2184 = vpop.trf.xlu0
          %v2185 = vpop.trf.xlu0
          %v2186 = vpop.trf.xlu0
          %v2187 = vpop.trf.xlu0
          %v2188 = vpop.trf.xlu0
          %v2190 = vsel %vm1235, %v2173, 0
          %v2193 = vsel %vm1235, %v2174, 0
          %v2196 = vsel %vm1239, %v2156, 0
          %2198 = vmatprep.subr.mxu0 0.0
          %2199 = vmatpush1.msra.mxu0 %v2196
          %2200 = vmatprep.subr.mxu0 0.0
          %2201 = vmatpush1.msra.mxu0 0.0
          %2202 = vmatprep.subr.mxu0 0.0
          %2203 = vmatpush1.msra.mxu0 0.0
          %2204 = vmatprep.subr.mxu0 0.0
          %2205 = vmatpush1.msra.mxu0 0.0
          %2206 = vmatprep.subr.mxu0 0.0
          %2207 = vmatpush1.msra.mxu0 0.0
          %2208 = vmatprep.subr.mxu0 0.0
          %2209 = vmatpush1.msra.mxu0 0.0
          %2210 = vmatprep.subr.mxu0 0.0
          %2211 = vmatpush1.msra.mxu0 0.0
          %2212 = vmatprep.subr.mxu0 0.0
          %2213 = vmatpush1.msra.mxu0 0.0
          %2214 = vmatprep.subr.mxu0 0.0
          %2215 = vmatpush1.msra.mxu0 0.0
          %2216 = vmatprep.subr.mxu0 0.0
          %2217 = vmatpush1.msra.mxu0 0.0
          %2218 = vmatprep.subr.mxu0 0.0
          %2219 = vmatpush1.msra.mxu0 0.0
          %2220 = vmatprep.subr.mxu0 0.0
          %2221 = vmatpush1.msra.mxu0 0.0
          %2222 = vmatprep.subr.mxu0 0.0
          %2223 = vmatpush1.msra.mxu0 0.0
          %2224 = vmatprep.subr.mxu0 0.0
          %2225 = vmatpush1.msra.mxu0 0.0
          %2226 = vmatprep.subr.mxu0 0.0
          %2227 = vmatpush1.msra.mxu0 0.0
          %2228 = vmatprep.subr.mxu0 0.0
          %2229 = vmatpush1.msra.mxu0 0.0
          %2230 = vmatprep.subr.mxu0 0.0
          %2231 = vmatpush1.msra.mxu0 0.0
          %2232 = vmatprep.subr.mxu0 0.0
          %2233 = vmatpush1.msra.mxu0 0.0
          %2234 = vmatprep.subr.mxu0 0.0
          %2235 = vmatpush1.msra.mxu0 0.0
          %2236 = vmatprep.subr.mxu0 0.0
          %2237 = vmatpush1.msra.mxu0 0.0
          %2238 = vmatprep.subr.mxu0 0.0
          %2239 = vmatpush1.msra.mxu0 0.0
          %2240 = vmatprep.subr.mxu0 0.0
          %2241 = vmatpush1.msra.mxu0 0.0
          %2242 = vmatprep.subr.mxu0 0.0
          %2243 = vmatpush1.msra.mxu0 0.0
          %2244 = vmatprep.subr.mxu0 0.0
          %2245 = vmatpush1.msra.mxu0 0.0
          %2246 = vmatprep.subr.mxu0 0.0
          %2247 = vmatpush1.msra.mxu0 0.0
          %2248 = vmatprep.subr.mxu0 0.0
          %2249 = vmatpush1.msra.mxu0 0.0
          %2250 = vmatprep.subr.mxu0 0.0
          %2251 = vmatpush1.msra.mxu0 0.0
          %2252 = vmatprep.subr.mxu0 0.0
          %2253 = vmatpush1.msra.mxu0 0.0
          %2254 = vmatprep.subr.mxu0 0.0
          %2255 = vmatpush1.msra.mxu0 0.0
          %2256 = vmatprep.subr.mxu0 0.0
          %2257 = vmatpush1.msra.mxu0 0.0
          %2258 = vmatprep.subr.mxu0 0.0
          %2259 = vmatpush1.msra.mxu0 0.0
          %2260 = vmatprep.subr.mxu0 0.0
          %2261 = vmatpush1.msra.mxu0 0.0
          %2262 = vmatprep.mubr.f32.mxu0 0.0
          %2263 = vmatmul.mubr.f32.gmra.mrb[0].mxu0 %v2190
          %v2264 = vpop.f32.mrb[0].mxu0
          %v2265 = vadd.f32 0.0, %v2264
          %v2266 = vpop.f32.mrb[0].mxu0
          %2267 = vmatprep.mubr.f32.mxu0 0.0
          %2268 = vmatmul.mubr.f32.gmra.mrb[0].mxu0 %v2193
          %v2269 = vpop.f32.mrb[0].mxu0
          %v2270 = vadd.f32 0.0, %v2269
          %v2271 = vpop.f32.mrb[0].mxu0
          %2272 = vdwg.mxu0
          %v2273 = vmul.f32 %v2265, %v870
          %v2274 = vmul.f32 %v2270, %v871
          %v2276 = vsel %vm795, %v2273, 0
          %v2279 = vsel %vm795, %v2274, 0
          %v2282 = vsel %vm795, %v867, 0
          %v2285 = vsel %vm795, %v868, 0
          %2287 = vmatprep.subr.mxu0 0.0
          %2288 = vmatpush1.xpose.msra.mxu0 %v2282
          %2289 = vmatprep.subr.mxu0 0.0
          %2290 = vmatpush1.xpose.msra.mxu0 %v2285
          %2291 = vmatprep.subr.mxu0 0.0
          %2292 = vmatpush1.xpose.msra.mxu0 0.0
          %2293 = vmatprep.subr.mxu0 0.0
          %2294 = vmatpush1.xpose.msra.mxu0 0.0
          %2295 = vmatprep.subr.mxu0 0.0
          %2296 = vmatpush1.xpose.msra.mxu0 0.0
          %2297 = vmatprep.subr.mxu0 0.0
          %2298 = vmatpush1.xpose.msra.mxu0 0.0
          %2299 = vmatprep.subr.mxu0 0.0
          %2300 = vmatpush1.xpose.msra.mxu0 0.0
          %2301 = vmatprep.subr.mxu0 0.0
          %2302 = vmatpush1.xpose.msra.mxu0 0.0
          %2303 = vmatprep.subr.mxu0 0.0
          %2304 = vmatpush1.xpose.msra.mxu0 0.0
          %2305 = vmatprep.subr.mxu0 0.0
          %2306 = vmatpush1.xpose.msra.mxu0 0.0
          %2307 = vmatprep.subr.mxu0 0.0
          %2308 = vmatpush1.xpose.msra.mxu0 0.0
          %2309 = vmatprep.subr.mxu0 0.0
          %2310 = vmatpush1.xpose.msra.mxu0 0.0
          %2311 = vmatprep.subr.mxu0 0.0
          %2312 = vmatpush1.xpose.msra.mxu0 0.0
          %2313 = vmatprep.subr.mxu0 0.0
          %2314 = vmatpush1.xpose.msra.mxu0 0.0
          %2315 = vmatprep.subr.mxu0 0.0
          %2316 = vmatpush1.xpose.msra.mxu0 0.0
          %2317 = vmatprep.subr.mxu0 0.0
          %2318 = vmatpush1.xpose.msra.mxu0 0.0
          %2319 = vmatprep.subr.mxu0 0.0
          %2320 = vmatpush1.xpose.msra.mxu0 0.0
          %2321 = vmatprep.subr.mxu0 0.0
          %2322 = vmatpush1.xpose.msra.mxu0 0.0
          %2323 = vmatprep.subr.mxu0 0.0
          %2324 = vmatpush1.xpose.msra.mxu0 0.0
          %2325 = vmatprep.subr.mxu0 0.0
          %2326 = vmatpush1.xpose.msra.mxu0 0.0
          %2327 = vmatprep.subr.mxu0 0.0
          %2328 = vmatpush1.xpose.msra.mxu0 0.0
          %2329 = vmatprep.subr.mxu0 0.0
          %2330 = vmatpush1.xpose.msra.mxu0 0.0
          %2331 = vmatprep.subr.mxu0 0.0
          %2332 = vmatpush1.xpose.msra.mxu0 0.0
          %2333 = vmatprep.subr.mxu0 0.0
          %2334 = vmatpush1.xpose.msra.mxu0 0.0
          %2335 = vmatprep.subr.mxu0 0.0
          %2336 = vmatpush1.xpose.msra.mxu0 0.0
          %2337 = vmatprep.subr.mxu0 0.0
          %2338 = vmatpush1.xpose.msra.mxu0 0.0
          %2339 = vmatprep.subr.mxu0 0.0
          %2340 = vmatpush1.xpose.msra.mxu0 0.0
          %2341 = vmatprep.subr.mxu0 0.0
          %2342 = vmatpush1.xpose.msra.mxu0 0.0
          %2343 = vmatprep.subr.mxu0 0.0
          %2344 = vmatpush1.xpose.msra.mxu0 0.0
          %2345 = vmatprep.subr.mxu0 0.0
          %2346 = vmatpush1.xpose.msra.mxu0 0.0
          %2347 = vmatprep.subr.mxu0 0.0
          %2348 = vmatpush1.xpose.msra.mxu0 0.0
          %2349 = vmatprep.subr.mxu0 0.0
          %2350 = vmatpush1.xpose.msra.mxu0 0.0
          %2351 = vmatprep.mubr.f32.mxu0 0.0
          %2352 = vmatmul.mubr.f32.gmra.mrb[0].mxu0 %v2276
          %v2353 = vpop.f32.mrb[0].mxu0
          %v2354 = vadd.f32 0.0, %v2353
          %v2355 = vpop.f32.mrb[0].mxu0
          %2356 = vmatprep.mubr.f32.mxu0 0.0
          %2357 = vmatmul.mubr.f32.gmra.mrb[0].mxu0 %v2279
          %v2358 = vpop.f32.mrb[0].mxu0
          %v2359 = vadd.f32 0.0, %v2358
          %v2360 = vpop.f32.mrb[0].mxu0
          %2361 = vdwg.mxu0
          %v2362 = vmul.f32 %v2354, %v865
          %v2363 = vmul.f32 %v2359, %v866
          %v2364 = vld [vmem:[#allocation22] sm:$0xff]
          %v2365 = vld [vmem:[#allocation22 + $0x8] sm:$0xff]
          %2366 = vxpose.xlu0.b32.start [1/16] %v2364, 128
          %2367 = vxpose.xlu0.b32.cont [2/16] %v2365, 128
          %2368 = vxpose.xlu0.b32.cont [3/16] 0.0, 128
          %2369 = vxpose.xlu0.b32.cont [4/16] 0.0, 128
          %2370 = vxpose.xlu0.b32.cont [5/16] 0.0, 128
          %2371 = vxpose.xlu0.b32.cont [6/16] 0.0, 128
          %2372 = vxpose.xlu0.b32.cont [7/16] 0.0, 128
          %2373 = vxpose.xlu0.b32.cont [8/16] 0.0, 128
          %2374 = vxpose.xlu0.b32.cont [9/16] 0.0, 128
          %2375 = vxpose.xlu0.b32.cont [10/16] 0.0, 128
          %2376 = vxpose.xlu0.b32.cont [11/16] 0.0, 128
          %2377 = vxpose.xlu0.b32.cont [12/16] 0.0, 128
          %2378 = vxpose.xlu0.b32.cont [13/16] 0.0, 128
          %2379 = vxpose.xlu0.b32.cont [14/16] 0.0, 128
          %2380 = vxpose.xlu0.b32.cont [15/16] 0.0, 128
          %2381 = vxpose.xlu0.b32.end [16/16] 0.0, 128
          %v2382 = vpop.trf.xlu0
          %v2383 = vpop.trf.xlu0
          %v2384 = vpop.trf.xlu0
          %v2385 = vpop.trf.xlu0
          %v2386 = vpop.trf.xlu0
          %v2387 = vpop.trf.xlu0
          %v2388 = vpop.trf.xlu0
          %v2389 = vpop.trf.xlu0
          %v2390 = vpop.trf.xlu0
          %v2391 = vpop.trf.xlu0
          %v2392 = vpop.trf.xlu0
          %v2393 = vpop.trf.xlu0
          %v2394 = vpop.trf.xlu0
          %v2395 = vpop.trf.xlu0
          %v2396 = vpop.trf.xlu0
          %v2397 = vpop.trf.xlu0
          %v2399 = vsel %vm795, %v2382, 0
          %v2402 = vsel %vm795, %v2383, 0
          %2404 = vmatprep.subr.mxu0 0.0
          %2405 = vmatpush1.msra.mxu0 %v2362
          %2406 = vmatprep.subr.mxu0 0.0
          %2407 = vmatpush1.msra.mxu0 %v2363
          %2408 = vmatprep.subr.mxu0 0.0
          %2409 = vmatpush1.msra.mxu0 0.0
          %2410 = vmatprep.subr.mxu0 0.0
          %2411 = vmatpush1.msra.mxu0 0.0
          %2412 = vmatprep.subr.mxu0 0.0
          %2413 = vmatpush1.msra.mxu0 0.0
          %2414 = vmatprep.subr.mxu0 0.0
          %2415 = vmatpush1.msra.mxu0 0.0
          %2416 = vmatprep.subr.mxu0 0.0
          %2417 = vmatpush1.msra.mxu0 0.0
          %2418 = vmatprep.subr.mxu0 0.0
          %2419 = vmatpush1.msra.mxu0 0.0
          %2420 = vmatprep.subr.mxu0 0.0
          %2421 = vmatpush1.msra.mxu0 0.0
          %2422 = vmatprep.subr.mxu0 0.0
          %2423 = vmatpush1.msra.mxu0 0.0
          %2424 = vmatprep.subr.mxu0 0.0
          %2425 = vmatpush1.msra.mxu0 0.0
          %2426 = vmatprep.subr.mxu0 0.0
          %2427 = vmatpush1.msra.mxu0 0.0
          %2428 = vmatprep.subr.mxu0 0.0
          %2429 = vmatpush1.msra.mxu0 0.0
          %2430 = vmatprep.subr.mxu0 0.0
          %2431 = vmatpush1.msra.mxu0 0.0
          %2432 = vmatprep.subr.mxu0 0.0
          %2433 = vmatpush1.msra.mxu0 0.0
          %2434 = vmatprep.subr.mxu0 0.0
          %2435 = vmatpush1.msra.mxu0 0.0
          %2436 = vmatprep.subr.mxu0 0.0
          %2437 = vmatpush1.msra.mxu0 0.0
          %2438 = vmatprep.subr.mxu0 0.0
          %2439 = vmatpush1.msra.mxu0 0.0
          %2440 = vmatprep.subr.mxu0 0.0
          %2441 = vmatpush1.msra.mxu0 0.0
          %2442 = vmatprep.subr.mxu0 0.0
          %2443 = vmatpush1.msra.mxu0 0.0
          %2444 = vmatprep.subr.mxu0 0.0
          %2445 = vmatpush1.msra.mxu0 0.0
          %2446 = vmatprep.subr.mxu0 0.0
          %2447 = vmatpush1.msra.mxu0 0.0
          %2448 = vmatprep.subr.mxu0 0.0
          %2449 = vmatpush1.msra.mxu0 0.0
          %2450 = vmatprep.subr.mxu0 0.0
          %2451 = vmatpush1.msra.mxu0 0.0
          %2452 = vmatprep.subr.mxu0 0.0
          %2453 = vmatpush1.msra.mxu0 0.0
          %2454 = vmatprep.subr.mxu0 0.0
          %2455 = vmatpush1.msra.mxu0 0.0
          %2456 = vmatprep.subr.mxu0 0.0
          %2457 = vmatpush1.msra.mxu0 0.0
          %2458 = vmatprep.subr.mxu0 0.0
          %2459 = vmatpush1.msra.mxu0 0.0
          %2460 = vmatprep.subr.mxu0 0.0
          %2461 = vmatpush1.msra.mxu0 0.0
          %2462 = vmatprep.subr.mxu0 0.0
          %2463 = vmatpush1.msra.mxu0 0.0
          %2464 = vmatprep.subr.mxu0 0.0
          %2465 = vmatpush1.msra.mxu0 0.0
          %2466 = vmatprep.subr.mxu0 0.0
          %2467 = vmatpush1.msra.mxu0 0.0
          %2468 = vmatprep.mubr.f32.mxu0 0.0
          %2469 = vmatmul.mubr.f32.gmra.mrb[0].mxu0 %v2399
          %v2470 = vpop.f32.mrb[0].mxu0
          %v2471 = vadd.f32 0.0, %v2470
          %v2472 = vpop.f32.mrb[0].mxu0
          %2473 = vmatprep.mubr.f32.mxu0 0.0
          %2474 = vmatmul.mubr.f32.gmra.mrb[0].mxu0 %v2402
          %v2475 = vpop.f32.mrb[0].mxu0
          %v2476 = vadd.f32 0.0, %v2475
          %v2477 = vpop.f32.mrb[0].mxu0
          %2478 = vdwg.mxu0
          %2479 = vst.msk [vmem:[%s593] sm:$0xff] %vm795, %v2471
          %2480 = vst.msk [vmem:[%s593 + $0x8] sm:$0xff] %vm795, %v2476
        $region124: #{attention_forward.4} parent=67 // pred_fallthru
          _
        %s2481 = sand.u32 %s314, 1
        %s2482 = scalar_lea.sflag [#allocation6], %s2481
        %s2483 = sand.u32 %s314, 1
        %s2484 = smul.addr %s2483, 16
        %s2485 = scalar_lea.vmem [#allocation24], %s2484
        // Predicated region
        $region125: #{attention_forward.4} parent=67 // pred_check
          %p2486 = pneg %p324
        $region126: #{attention_forward.4} parent=67 // pred_check_branch
          %2488 = sbr.rel (%p2486) target = $region128
        $region127: #{attention_forward.4} parent=67 // pred_region
          %s2490 = ssub.s32 256, 256
          %2491 = vsyncadd %s2482, %s2490
          %s2492 = smul.addr %s39, 2
          %s2493 = smul.addr %s2492, 128
          %s2494 = scalar_lea.hbm %s12, %s2493
          %s2495 = sshll.u32 %s2485, 4
          %s2496 = int_to_ptr.vmem [resolvable:$true] %s2495
          %2501 = dma.vmem_to_hbm [thread:$0]  %s2496, 256, %s2494, %s2482, 128, 128, 8
        $region128: #{attention_forward.4} parent=67 // pred_fallthru
          _
      $region68: #{attention_forward.4} parent=5 // pred_fallthru
        _
      %p2502 = scmp.le.s32.totalorder 2, %s30
      // Predicated region
      $region129: #{attention_forward.4} parent=5 // pred_check
        %p2503 = pneg %p2502
      $region130: #{attention_forward.4} parent=5 // pred_check_branch
        %2505 = sbr.rel (%p2503) target = $region132
      $region131: #{attention_forward.4} parent=5 // pred_region
        %s2506 = ssub.s32 %s30, 2
        // Predicated region
        $region133: #{attention_forward.4} parent=131 // pred_check
          %p2507 = pneg %p330
        $region134: #{attention_forward.4} parent=131 // pred_check_branch
          %2509 = sbr.rel (%p2507) target = $region136
        $region135: #{attention_forward.4} parent=131 // pred_region
          %s2510 = sand.u32 %s315, 1
          %s2511 = scalar_lea.sflag [#allocation6], %s2510
          %s2512 = sand.u32 %s315, 1
          %s2513 = smul.addr %s2512, 16
          %s2514 = scalar_lea.vmem [#allocation24], %s2513
          %2515 = dma.done %s2511, 256
        $region136: #{attention_forward.4} parent=131 // pred_fallthru
          _
      $region132: #{attention_forward.4} parent=5 // pred_fallthru
        _
    $region6: #{attention_forward.4} parent=1 // loop_footer
      %s34 = sadd.s32 1, %s30
    $region7: #{attention_forward.4} parent=1 // loop_footer_branch
      %29 = sbr.rel target = $region3
    $region8: #{attention_forward.4} parent=1 // loop_exit
      _
    %2516 = vsyncpa [#allocation5], 1
    %s2517 = scalar_lea.sflag [#allocation5], 1
    %2518 = vsyncpa %s2517, 1
    %2519 = vsyncpa [#allocation8], 1
    %2520 = vsyncpa [#allocation11], 1
    %2521 = vsyncpa [#allocation14], 1
    %2522 = vsyncpa [#allocation17], 1
    %2523 = vsyncpa [#allocation20], 1
    %2524 = vsyncpa [#allocation23], 1
    %2525 = vsyncpa [#allocation6], 1
    %s2526 = scalar_lea.sflag [#allocation6], 1
    %2527 = vsyncpa %s2526, 1

</llo_original>
